<compile_context>
chip_gen: v7x
topology: tpu7x:2x2x1
jax: 0.10.0
libtpu: 0.0.40
codegen_flags: <defaults>
</compile_context>

<pallas_src>
import jax
import jax.numpy as jnp
from jax.experimental import pallas as pl
from jax.experimental.pallas import tpu as pltpu

C_FEAT = 512      # per-branch feature channels (ResNet final width, 2*512 -> fc 1024)
NUM_CLASS = 10
NPAD = 128        # lane-padded logits width


def _make_fused_kernel(inv_p):
    def kernel(rgb_ref, depth_ref, w_bb_ref, b_bb_ref, w_fc_ref, b_fc_ref,
               o_ref, pool_rgb, pool_dep):
        # TODO(synk): ResNet{9,18,34,50,101,152}/HandsResNet bodies are not in
        # train.py; stand-in backbone = 1x1 conv (pointwise matmul) + ReLU,
        # shared by both branches (the original assigns the SAME module
        # instance to resnet_rgb and resnet_depth).
        pi = pl.program_id(1)

        @pl.when(pi == 0)
        def _():
            pool_rgb[...] = jnp.zeros_like(pool_rgb)
            pool_dep[...] = jnp.zeros_like(pool_dep)

        w_bb = w_bb_ref[...]          # (C_FEAT, C_in) bf16, resident
        b_bb = b_bb_ref[...]          # (C_FEAT, 1)   f32,  resident

        def branch_partial(x_ref):
            x = x_ref[0]              # (C_in, PT) bf16, pixels on lanes (dense)
            y = jnp.dot(w_bb, x, preferred_element_type=jnp.float32)  # (C_FEAT, PT) f32
            y = jnp.maximum(y + b_bb, 0.0)
            return jnp.sum(y, axis=1, keepdims=True)                  # (C_FEAT, 1)

        pool_rgb[...] += branch_partial(rgb_ref)
        pool_dep[...] += branch_partial(depth_ref)

        # Finalize: avg-pool scale + fc. Split matmul == cat((rgb, depth), 1) @ W.
        @pl.when(pi == pl.num_programs(1) - 1)
        def _():
            pr = pool_rgb[...] * inv_p                    # (C_FEAT, 1)
            pd = pool_dep[...] * inv_p
            logits = (jnp.sum(pr * w_fc_ref[0], axis=0, keepdims=True)
                      + jnp.sum(pd * w_fc_ref[1], axis=0, keepdims=True)
                      + b_fc_ref[...])                    # (1, NPAD), lane-dense
            o_ref[0] = logits

    return kernel


def _pick_pixel_tile(p):
    if p <= 1024:
        return p
    for t in (2048, 1024, 512, 256, 128):
        if p % t == 0:
            return t
    return p  # TODO(synk): ragged pixel counts fall back to one full-extent tile


def classify_model_forward(rgb_nchw, depth_nchw, params):
    B, C, H, W = rgb_nchw.shape
    P = H * W
    PT = _pick_pixel_tile(P)
    n_pt = P // PT

    # Native NCHW already has pixels last -> channels-first tiles need only a
    # (free) reshape; inputs move HBM->VMEM as bf16.
    rgb = rgb_nchw.reshape(B, C, P).astype(jnp.bfloat16)
    depth = depth_nchw.reshape(B, C, P).astype(jnp.bfloat16)

    out = pl.pallas_call(
        _make_fused_kernel(1.0 / P),
        out_shape=jax.ShapeDtypeStruct((B, 1, NPAD), jnp.float32),
        grid_spec=pltpu.PrefetchScalarGridSpec(
            num_scalar_prefetch=0,
            grid=(B, n_pt),
            in_specs=[
                pl.BlockSpec((1, C, PT), lambda bi, pi: (bi, 0, pi)),        # rgb tile
                pl.BlockSpec((1, C, PT), lambda bi, pi: (bi, 0, pi)),        # depth tile
                pl.BlockSpec((C_FEAT, C), lambda bi, pi: (0, 0)),            # w_bb (resident)
                pl.BlockSpec((C_FEAT, 1), lambda bi, pi: (0, 0)),            # b_bb (resident)
                pl.BlockSpec((2, C_FEAT, NPAD), lambda bi, pi: (0, 0, 0)),   # w_fc halves (resident)
                pl.BlockSpec((1, NPAD), lambda bi, pi: (0, 0)),              # b_fc (resident)
            ],
            out_specs=pl.BlockSpec((1, 1, NPAD), lambda bi, pi: (bi, 0, 0)),
            scratch_shapes=[
                pltpu.VMEM((C_FEAT, 1), jnp.float32),   # rgb pooled-sum accumulator
                pltpu.VMEM((C_FEAT, 1), jnp.float32),   # depth pooled-sum accumulator
            ],
        ),
        compiler_params=pltpu.CompilerParams(
            dimension_semantics=("parallel", "arbitrary")),
    )(rgb, depth, params["w_bb"], params["b_bb"], params["w_fc"], params["b_fc"])
    return out[:, 0, :NUM_CLASS]


def init_params(c_in, key):
    k1, k2, k3, k4 = jax.random.split(key, 4)
    w_bb = (jax.random.normal(k1, (C_FEAT, c_in), jnp.float32) * 0.05).astype(jnp.bfloat16)
    b_bb = jax.random.normal(k2, (C_FEAT, 1), jnp.float32) * 0.01
    # nn.Linear(1024, num_class): torch weight is (num_class, 1024). Stored here
    # as two transposed halves (rgb, depth), zero-padded to NPAD lanes.
    w_fc = jnp.zeros((2, C_FEAT, NPAD), jnp.float32)
    w_fc = w_fc.at[:, :, :NUM_CLASS].set(
        jax.random.normal(k3, (2, C_FEAT, NUM_CLASS), jnp.float32) * 0.02)
    b_fc = jnp.zeros((1, NPAD), jnp.float32)
    b_fc = b_fc.at[:, :NUM_CLASS].set(
        jax.random.normal(k4, (1, NUM_CLASS), jnp.float32) * 0.01)
    return {"w_bb": w_bb, "b_bb": b_bb, "w_fc": w_fc, "b_fc": b_fc}


def _reference_forward(rgb_nchw, depth_nchw, params):
    # Pure-JAX reference with identical numerics (bf16 inputs/weights, f32 acc).
    B, C, H, W = rgb_nchw.shape
    p = H * W

    def backbone_pool(x):
        xb = x.reshape(B, C, p).astype(jnp.bfloat16)
        y = jnp.einsum("oc,bcp->bop", params["w_bb"], xb,
                       preferred_element_type=jnp.float32)
        y = jnp.maximum(y + params["b_bb"][None], 0.0)
        return jnp.mean(y, axis=2)                       # (B, C_FEAT)

    fr = backbone_pool(rgb_nchw)
    fd = backbone_pool(depth_nchw)
    return (fr @ params["w_fc"][0, :, :NUM_CLASS]
            + fd @ params["w_fc"][1, :, :NUM_CLASS]
            + params["b_fc"][:, :NUM_CLASS])


if __name__ == "__main__":
    B, C_IN, H, W = 2, 3, 16, 16
    key = jax.random.PRNGKey(0)
    k_rgb, k_depth, k_param = jax.random.split(key, 3)
    rgb = jax.random.normal(k_rgb, (B, C_IN, H, W), jnp.float32)
    depth = jax.random.normal(k_depth, (B, C_IN, H, W), jnp.float32)
    params = init_params(C_IN, k_param)

    logits = jax.jit(classify_model_forward)(rgb, depth, params)
    logits = jax.block_until_ready(logits)

    ref = _reference_forward(rgb, depth, params)
    assert logits.shape == (B, NUM_CLASS)
    assert jnp.allclose(logits, ref, atol=1e-3, rtol=1e-3)

    print("KERNEL_OK")
</pallas_src>

<mosaic_0001>
module attributes {stable_mosaic.version = 11 : i64} {
  func.func @kernel(%arg0: i32, %arg1: i32, %arg2: memref<1x3x256xbf16, #tpu.memory_space<vmem>>, %arg3: memref<1x3x256xbf16, #tpu.memory_space<vmem>>, %arg4: memref<512x3xbf16, #tpu.memory_space<vmem>>, %arg5: memref<512x1xf32, #tpu.memory_space<vmem>>, %arg6: memref<2x512x128xf32, #tpu.memory_space<vmem>>, %arg7: memref<1x128xf32, #tpu.memory_space<vmem>>, %arg8: memref<1x1x128xf32, #tpu.memory_space<vmem>>, %arg9: memref<512x1xf32, #tpu.memory_space<vmem>>, %arg10: memref<512x1xf32, #tpu.memory_space<vmem>>) attributes {dimension_semantics = [#tpu.dimension_semantics<parallel>, #tpu.dimension_semantics<arbitrary>], iteration_bounds = array<i64: 2, 1>, scalar_prefetch = 0 : i64, scratch_operands = 2 : i64, tpu.core_type = #tpu.core_type<tc>, window_params = [{transform_indices = @transform_0, window_bounds = array<i64: 1, 3, 256>}, {transform_indices = @transform_1, window_bounds = array<i64: 1, 3, 256>}, {pipeline_mode = #tpu.pipeline_mode<synchronous>, transform_indices = @transform_2, window_bounds = array<i64: 512, 3>}, {pipeline_mode = #tpu.pipeline_mode<synchronous>, transform_indices = @transform_3, window_bounds = array<i64: 512, 1>}, {pipeline_mode = #tpu.pipeline_mode<synchronous>, transform_indices = @transform_4, window_bounds = array<i64: 2, 512, 128>}, {pipeline_mode = #tpu.pipeline_mode<synchronous>, transform_indices = @transform_5, window_bounds = array<i64: 1, 128>}, {transform_indices = @transform_6, window_bounds = array<i64: 1, 1, 128>}]} {
    %c0_i32 = arith.constant 0 : i32
    %0 = arith.cmpi eq, %arg1, %c0_i32 : i32
    %1 = arith.extui %0 : i1 to i32
    %c0_i32_0 = arith.constant 0 : i32
    %2 = arith.cmpi ne, %1, %c0_i32_0 : i32
    scf.if %2 {
      %cst_25 = arith.constant 0.000000e+00 : f32
      %32 = vector.broadcast %cst_25 : f32 to vector<512x1xf32>
      %c0_26 = arith.constant 0 : index
      %c0_27 = arith.constant 0 : index
      %33 = vector.load %arg9[%c0_26, %c0_27] : memref<512x1xf32, #tpu.memory_space<vmem>>, vector<512x1xf32>
      tpu.vector_store %arg9[%c0_26, %c0_27], %32 {strides = array<i32>} : memref<512x1xf32, #tpu.memory_space<vmem>>, vector<512x1xf32>,
      %cst_28 = arith.constant 0.000000e+00 : f32
      %34 = vector.broadcast %cst_28 : f32 to vector<512x1xf32>
      %c0_29 = arith.constant 0 : index
      %c0_30 = arith.constant 0 : index
      %35 = vector.load %arg10[%c0_29, %c0_30] : memref<512x1xf32, #tpu.memory_space<vmem>>, vector<512x1xf32>
      tpu.vector_store %arg10[%c0_29, %c0_30], %34 {strides = array<i32>} : memref<512x1xf32, #tpu.memory_space<vmem>>, vector<512x1xf32>,
    } else {
    }
    %c0 = arith.constant 0 : index
    %c0_1 = arith.constant 0 : index
    %3 = vector.load %arg4[%c0, %c0_1] : memref<512x3xbf16, #tpu.memory_space<vmem>>, vector<512x3xbf16>
    %c0_2 = arith.constant 0 : index
    %c0_3 = arith.constant 0 : index
    %4 = vector.load %arg5[%c0_2, %c0_3] : memref<512x1xf32, #tpu.memory_space<vmem>>, vector<512x1xf32>
    %c0_4 = arith.constant 0 : index
    %c0_5 = arith.constant 0 : index
    %5 = vector.load %arg9[%c0_4, %c0_5] : memref<512x1xf32, #tpu.memory_space<vmem>>, vector<512x1xf32>
    %c0_6 = arith.constant 0 : index
    %c0_7 = arith.constant 0 : index
    %c0_8 = arith.constant 0 : index
    %6 = vector.load %arg2[%c0_6, %c0_7, %c0_8] : memref<1x3x256xbf16, #tpu.memory_space<vmem>>, vector<1x3x256xbf16>
    %7 = vector.shape_cast %6 : vector<1x3x256xbf16> to vector<3x256xbf16>
    %cst = arith.constant dense<0.000000e+00> : vector<512x256xf32>
    %8 = tpu.matmul %3, %7, %cst {dimension_numbers = #tpu.dot_dimension_numbers<[1], [0], [0], [1], [0, 0, 1, 1], [], []>} : vector<512x3xbf16>, vector<3x256xbf16>, vector<512x256xf32> -> vector<512x256xf32>
    %9 = vector.broadcast %4 : vector<512x1xf32> to vector<512x256xf32>
    %10 = arith.addf %8, %9 : vector<512x256xf32>
    %cst_9 = arith.constant 0.000000e+00 : f32
    %11 = vector.broadcast %cst_9 : f32 to vector<512x256xf32>
    %12 = arith.maximumf %10, %11 : vector<512x256xf32>
    %cst_10 = arith.constant dense<0.000000e+00> : vector<512xf32>
    %13 = vector.multi_reduction <add>, %12, %cst_10 [1] : vector<512x256xf32> to vector<512xf32>
    %14 = vector.shape_cast %13 : vector<512xf32> to vector<512x1xf32>
    %15 = arith.addf %5, %14 : vector<512x1xf32>
    %c0_11 = arith.constant 0 : index
    %c0_12 = arith.constant 0 : index
    %16 = vector.load %arg9[%c0_11, %c0_12] : memref<512x1xf32, #tpu.memory_space<vmem>>, vector<512x1xf32>
    tpu.vector_store %arg9[%c0_11, %c0_12], %15 {strides = array<i32>} : memref<512x1xf32, #tpu.memory_space<vmem>>, vector<512x1xf32>,
    %c0_13 = arith.constant 0 : index
    %c0_14 = arith.constant 0 : index
    %17 = vector.load %arg10[%c0_13, %c0_14] : memref<512x1xf32, #tpu.memory_space<vmem>>, vector<512x1xf32>
    %c0_15 = arith.constant 0 : index
    %c0_16 = arith.constant 0 : index
    %c0_17 = arith.constant 0 : index
    %18 = vector.load %arg3[%c0_15, %c0_16, %c0_17] : memref<1x3x256xbf16, #tpu.memory_space<vmem>>, vector<1x3x256xbf16>
    %19 = vector.shape_cast %18 : vector<1x3x256xbf16> to vector<3x256xbf16>
    %cst_18 = arith.constant dense<0.000000e+00> : vector<512x256xf32>
    %20 = tpu.matmul %3, %19, %cst_18 {dimension_numbers = #tpu.dot_dimension_numbers<[1], [0], [0], [1], [0, 0, 1, 1], [], []>} : vector<512x3xbf16>, vector<3x256xbf16>, vector<512x256xf32> -> vector<512x256xf32>
    %21 = vector.broadcast %4 : vector<512x1xf32> to vector<512x256xf32>
    %22 = arith.addf %20, %21 : vector<512x256xf32>
    %cst_19 = arith.constant 0.000000e+00 : f32
    %23 = vector.broadcast %cst_19 : f32 to vector<512x256xf32>
    %24 = arith.maximumf %22, %23 : vector<512x256xf32>
    %cst_20 = arith.constant dense<0.000000e+00> : vector<512xf32>
    %25 = vector.multi_reduction <add>, %24, %cst_20 [1] : vector<512x256xf32> to vector<512xf32>
    %26 = vector.shape_cast %25 : vector<512xf32> to vector<512x1xf32>
    %27 = arith.addf %17, %26 : vector<512x1xf32>
    %c0_21 = arith.constant 0 : index
    %c0_22 = arith.constant 0 : index
    %28 = vector.load %arg10[%c0_21, %c0_22] : memref<512x1xf32, #tpu.memory_space<vmem>>, vector<512x1xf32>
    tpu.vector_store %arg10[%c0_21, %c0_22], %27 {strides = array<i32>} : memref<512x1xf32, #tpu.memory_space<vmem>>, vector<512x1xf32>,
    %c0_i32_23 = arith.constant 0 : i32
    %29 = arith.cmpi eq, %arg1, %c0_i32_23 : i32
    %30 = arith.extui %29 : i1 to i32
    %c0_i32_24 = arith.constant 0 : i32
    %31 = arith.cmpi ne, %30, %c0_i32_24 : i32
    scf.if %31 {
      %c0_25 = arith.constant 0 : index
      %c0_26 = arith.constant 0 : index
      %32 = vector.load %arg9[%c0_25, %c0_26] : memref<512x1xf32, #tpu.memory_space<vmem>>, vector<512x1xf32>
      %cst_27 = arith.constant 3.906250e-03 : f32
      %33 = vector.broadcast %cst_27 : f32 to vector<512x1xf32>
      %34 = arith.mulf %32, %33 : vector<512x1xf32>
      %c0_28 = arith.constant 0 : index
      %c0_29 = arith.constant 0 : index
      %35 = vector.load %arg10[%c0_28, %c0_29] : memref<512x1xf32, #tpu.memory_space<vmem>>, vector<512x1xf32>
      %cst_30 = arith.constant 3.906250e-03 : f32
      %36 = vector.broadcast %cst_30 : f32 to vector<512x1xf32>
      %37 = arith.mulf %35, %36 : vector<512x1xf32>
      %c0_31 = arith.constant 0 : index
      %c0_32 = arith.constant 0 : index
      %c0_33 = arith.constant 0 : index
      %38 = vector.load %arg6[%c0_31, %c0_32, %c0_33] : memref<2x512x128xf32, #tpu.memory_space<vmem>>, vector<1x512x128xf32>
      %39 = vector.shape_cast %38 : vector<1x512x128xf32> to vector<512x128xf32>
      %40 = vector.broadcast %34 : vector<512x1xf32> to vector<512x128xf32>
      %41 = arith.mulf %40, %39 : vector<512x128xf32>
      %cst_34 = arith.constant dense<0.000000e+00> : vector<128xf32>
      %42 = vector.multi_reduction <add>, %41, %cst_34 [0] : vector<512x128xf32> to vector<128xf32>
      %43 = vector.shape_cast %42 : vector<128xf32> to vector<1x128xf32>
      %c1 = arith.constant 1 : index
      %c0_35 = arith.constant 0 : index
      %c0_36 = arith.constant 0 : index
      %44 = vector.load %arg6[%c1, %c0_35, %c0_36] : memref<2x512x128xf32, #tpu.memory_space<vmem>>, vector<1x512x128xf32>
      %45 = vector.shape_cast %44 : vector<1x512x128xf32> to vector<512x128xf32>
      %46 = vector.broadcast %37 : vector<512x1xf32> to vector<512x128xf32>
      %47 = arith.mulf %46, %45 : vector<512x128xf32>
      %cst_37 = arith.constant dense<0.000000e+00> : vector<128xf32>
      %48 = vector.multi_reduction <add>, %47, %cst_37 [0] : vector<512x128xf32> to vector<128xf32>
      %49 = vector.shape_cast %48 : vector<128xf32> to vector<1x128xf32>
      %50 = arith.addf %43, %49 : vector<1x128xf32>
      %c0_38 = arith.constant 0 : index
      %c0_39 = arith.constant 0 : index
      %51 = vector.load %arg7[%c0_38, %c0_39] : memref<1x128xf32, #tpu.memory_space<vmem>>, vector<1x128xf32>
      %52 = arith.addf %50, %51 : vector<1x128xf32>
      %c0_40 = arith.constant 0 : index
      %c0_41 = arith.constant 0 : index
      %c0_42 = arith.constant 0 : index
      %53 = vector.load %arg8[%c0_40, %c0_41, %c0_42] : memref<1x1x128xf32, #tpu.memory_space<vmem>>, vector<1x1x128xf32>
      %54 = vector.shape_cast %53 : vector<1x1x128xf32> to vector<1x128xf32>
      %55 = vector.shape_cast %52 : vector<1x128xf32> to vector<1x1x128xf32>
      tpu.vector_store %arg8[%c0_40, %c0_41, %c0_42], %55 {strides = array<i32>} : memref<1x1x128xf32, #tpu.memory_space<vmem>>, vector<1x1x128xf32>,
    } else {
    }
    return
  }
  func.func @transform_0(%arg0: i32, %arg1: i32) -> (i32, i32, i32) {
    %c0_i32 = arith.constant 0 : i32
    %c0_i32_0 = arith.constant 0 : i32
    return %arg0, %c0_i32, %arg1 : i32, i32, i32
  }
  func.func @transform_1(%arg0: i32, %arg1: i32) -> (i32, i32, i32) {
    %c0_i32 = arith.constant 0 : i32
    %c0_i32_0 = arith.constant 0 : i32
    return %arg0, %c0_i32, %arg1 : i32, i32, i32
  }
  func.func @transform_2(%arg0: i32, %arg1: i32) -> (i32, i32) {
    %c0_i32 = arith.constant 0 : i32
    %c0_i32_0 = arith.constant 0 : i32
    %c0_i32_1 = arith.constant 0 : i32
    return %c0_i32, %c0_i32_0 : i32, i32
  }
  func.func @transform_3(%arg0: i32, %arg1: i32) -> (i32, i32) {
    %c0_i32 = arith.constant 0 : i32
    %c0_i32_0 = arith.constant 0 : i32
    %c0_i32_1 = arith.constant 0 : i32
    return %c0_i32, %c0_i32_0 : i32, i32
  }
  func.func @transform_4(%arg0: i32, %arg1: i32) -> (i32, i32, i32) {
    %c0_i32 = arith.constant 0 : i32
    %c0_i32_0 = arith.constant 0 : i32
    %c0_i32_1 = arith.constant 0 : i32
    %c0_i32_2 = arith.constant 0 : i32
    return %c0_i32, %c0_i32_0, %c0_i32_1 : i32, i32, i32
  }
  func.func @transform_5(%arg0: i32, %arg1: i32) -> (i32, i32) {
    %c0_i32 = arith.constant 0 : i32
    %c0_i32_0 = arith.constant 0 : i32
    %c0_i32_1 = arith.constant 0 : i32
    return %c0_i32, %c0_i32_0 : i32, i32
  }
  func.func @transform_6(%arg0: i32, %arg1: i32) -> (i32, i32, i32) {
    %c0_i32 = arith.constant 0 : i32
    %c0_i32_0 = arith.constant 0 : i32
    %c0_i32_1 = arith.constant 0 : i32
    return %arg0, %c0_i32, %c0_i32_0 : i32, i32, i32
  }
}

</mosaic_0001>

<llo_original>
// kernel: classify_model_forward.1
$region0: #{classify_model_forward.1}
  #allocation0 [shape = 'u32[]', space=smem, size = 0x4, offset = 0x4, fixed_abs, tag = 'smem constant byte address 0x4 - core index']
  #allocation1 [shape = 'u32[144,128]{1,0:T(1,128)}', space=vmem, size = 0x12000, scoped, tag = 'internal scratch']
  #allocation2 [shape = 'f32[512,1]{1,0:T(8,128)}', space=vmem, size = 0x40000, scoped, tag = 'scratch operand']
  #allocation3 [shape = 'f32[512,1]{1,0:T(8,128)}', space=vmem, size = 0x40000, scoped, tag = 'scratch operand']
  %s0 = inlined_call_operand.vmem [shape: bf16[2,3,256], index: 0, kind: input, shape index: {}]
  %s1 = inlined_call_operand.vmem [shape: bf16[2,3,256], index: 1, kind: input, shape index: {}]
  %s2 = inlined_call_operand.vmem [shape: bf16[512,3], index: 2, kind: input, shape index: {}]
  %s3 = inlined_call_operand.vmem [shape: f32[512,1], index: 3, kind: input, shape index: {}]
  %s4 = inlined_call_operand.vmem [shape: f32[2,512,128], index: 4, kind: input, shape index: {}]
  %s5 = inlined_call_operand.vmem [shape: f32[1,128], index: 5, kind: input, shape index: {}]
  %s6 = inlined_call_operand.hbm [shape: f32[2,1,128], index: 6, kind: output, shape index: {}]
  %s7 = sld [smem:[#allocation0]]
  $region65: #{classify_model_forward.1} parent=0
    _
  %s9 = ssub.s32 1, %s7
  %s10 = scalar_select 0, %s9, %s7
  $region1: #{classify_model_forward.1} parent=0
    #allocation4 [shape = 'u8[1024]{0}', space=vmem, size = 0x400, scoped, tag = 'output window, operand 0']
    #allocation5 [shape = 's32[2]{0}', space=sflag, size = 0x8, scoped, tag = 'scoped memory for classify_model_forward.1']
    %11 = vsyncpa [#allocation5], 0
    %s12 = scalar_lea.sflag [#allocation5], 1
    %13 = vsyncpa %s12, 0
    loop: start=0, step=1, limit=4
    $region2: #{classify_model_forward.1} parent=1 // loop_pre_header
      _
    $region3: #{classify_model_forward.1} parent=1 // loop_header
      %s15 = sphi 0, %s19
      %p16 = scmp.ge.s32.totalorder %s15, 4
      %s22 = sphi 0, %s34
      %s23 = sphi 0, %s30
      %s24 = sphi 0, %s22
      %s25 = sphi 0, %s23
      %s26 = sphi 0, %s24
      %s27 = sphi 0, %s25
      %s39 = sphi 0, %s41
      %s42 = sphi 0, %s39
      %s43 = sphi 0, %s42
      %s59 = sphi 0, %s43
      %s67 = sphi 0, %s69
      %s70 = sphi 0, %s67
      %s71 = sphi 0, %s70
      %s87 = sphi 0, %s71
      %s91 = sphi 0, %s91
      %s93 = sphi 0, %s91
      %s94 = sphi 0, %s93
      %s108 = sphi 0, %s94
      %s112 = sphi 0, %s112
      %s114 = sphi 0, %s112
      %s115 = sphi 0, %s114
      %s129 = sphi 0, %s115
      %s133 = sphi 0, %s133
      %s135 = sphi 0, %s133
      %s136 = sphi 0, %s135
      %s150 = sphi 0, %s136
      %s154 = sphi 0, %s154
      %s156 = sphi 0, %s154
      %s157 = sphi 0, %s156
      %s171 = sphi 0, %s157
      %s177 = sphi 0, %s179
      %s180 = sphi 0, %s177
      %s181 = sphi 0, %s180
      %s197 = sphi 0, %s181
    $region4: #{classify_model_forward.1} parent=1 // loop_header_branch
      %18 = sbr.rel (%p16) target = $region8
    $region5: #{classify_model_forward.1} parent=1 // loop_body
      %s20 = ssub.s32 %s15, 1
      %s21 = ssub.s32 %s15, 2
      %s28 = sadd.s32 1, %s23
      %p29 = scmp.ge.s32.totalorder %s28, 1
      %s30 = scalar_select %p29, 0, %s28
      %s31 = sadd.s32 1, %s22
      %s32 = scalar_select %p29, %s31, %s22
      %p33 = scmp.ge.s32.totalorder %s32, 2
      %s34 = scalar_select %p33, 0, %s32
      %s35 = ssub.s32 %s22, %s34
      %s36 = ssub.s32 %s23, %s30
      %s37 = sor.u32 %s35, %s36
      %p38 = scmp.eq.s32.totalorder %s37, 0
      %s40 = sadd.s32 %s39, 1
      %s41 = scalar_select %p38, %s39, %s40
      %p44 = pneg %p38
      %p45 = scmp.eq.s32.totalorder %s15, 1
      %p46 = por %p44, %p45
      %p47 = scmp.ne.s32.totalorder %s39, %s42
      %p48 = scmp.eq.s32.totalorder %s15, 0
      %p49 = por %p47, %p48
      %p50 = scmp.ne.s32.totalorder %s39, %s42
      %p51 = scmp.eq.s32.totalorder %s20, 1
      %p52 = por %p50, %p51
      %p53 = scmp.ne.s32.totalorder %s42, %s43
      %p54 = scmp.eq.s32.totalorder %s20, 0
      %p55 = por %p53, %p54
      %p56 = scmp.ne.s32.totalorder %s42, %s43
      %p57 = scmp.eq.s32.totalorder %s21, 1
      %p58 = por %p56, %p57
      %p60 = scmp.ne.s32.totalorder %s43, %s59
      %p61 = scmp.eq.s32.totalorder %s21, 0
      %p62 = por %p60, %p61
      %s63 = ssub.s32 %s22, %s34
      %s64 = ssub.s32 %s23, %s30
      %s65 = sor.u32 %s63, %s64
      %p66 = scmp.eq.s32.totalorder %s65, 0
      %s68 = sadd.s32 %s67, 1
      %s69 = scalar_select %p66, %s67, %s68
      %p72 = pneg %p66
      %p73 = scmp.eq.s32.totalorder %s15, 1
      %p74 = por %p72, %p73
      %p75 = scmp.ne.s32.totalorder %s67, %s70
      %p76 = scmp.eq.s32.totalorder %s15, 0
      %p77 = por %p75, %p76
      %p78 = scmp.ne.s32.totalorder %s67, %s70
      %p79 = scmp.eq.s32.totalorder %s20, 1
      %p80 = por %p78, %p79
      %p81 = scmp.ne.s32.totalorder %s70, %s71
      %p82 = scmp.eq.s32.totalorder %s20, 0
      %p83 = por %p81, %p82
      %p84 = scmp.ne.s32.totalorder %s70, %s71
      %p85 = scmp.eq.s32.totalorder %s21, 1
      %p86 = por %p84, %p85
      %p88 = scmp.ne.s32.totalorder %s71, %s87
      %p89 = scmp.eq.s32.totalorder %s21, 0
      %p90 = por %p88, %p89
      %s92 = sadd.s32 %s91, 1
      %p95 = scmp.eq.s32.totalorder %s15, 1
      %p96 = scmp.ne.s32.totalorder %s91, %s93
      %p97 = scmp.eq.s32.totalorder %s15, 0
      %p98 = por %p96, %p97
      %p99 = scmp.ne.s32.totalorder %s91, %s93
      %p100 = scmp.eq.s32.totalorder %s20, 1
      %p101 = por %p99, %p100
      %p102 = scmp.ne.s32.totalorder %s93, %s94
      %p103 = scmp.eq.s32.totalorder %s20, 0
      %p104 = por %p102, %p103
      %p105 = scmp.ne.s32.totalorder %s93, %s94
      %p106 = scmp.eq.s32.totalorder %s21, 1
      %p107 = por %p105, %p106
      %p109 = scmp.ne.s32.totalorder %s94, %s108
      %p110 = scmp.eq.s32.totalorder %s21, 0
      %p111 = por %p109, %p110
      %s113 = sadd.s32 %s112, 1
      %p116 = scmp.eq.s32.totalorder %s15, 1
      %p117 = scmp.ne.s32.totalorder %s112, %s114
      %p118 = scmp.eq.s32.totalorder %s15, 0
      %p119 = por %p117, %p118
      %p120 = scmp.ne.s32.totalorder %s112, %s114
      %p121 = scmp.eq.s32.totalorder %s20, 1
      %p122 = por %p120, %p121
      %p123 = scmp.ne.s32.totalorder %s114, %s115
      %p124 = scmp.eq.s32.totalorder %s20, 0
      %p125 = por %p123, %p124
      %p126 = scmp.ne.s32.totalorder %s114, %s115
      %p127 = scmp.eq.s32.totalorder %s21, 1
      %p128 = por %p126, %p127
      %p130 = scmp.ne.s32.totalorder %s115, %s129
      %p131 = scmp.eq.s32.totalorder %s21, 0
      %p132 = por %p130, %p131
      %s134 = sadd.s32 %s133, 1
      %p137 = scmp.eq.s32.totalorder %s15, 1
      %p138 = scmp.ne.s32.totalorder %s133, %s135
      %p139 = scmp.eq.s32.totalorder %s15, 0
      %p140 = por %p138, %p139
      %p141 = scmp.ne.s32.totalorder %s133, %s135
      %p142 = scmp.eq.s32.totalorder %s20, 1
      %p143 = por %p141, %p142
      %p144 = scmp.ne.s32.totalorder %s135, %s136
      %p145 = scmp.eq.s32.totalorder %s20, 0
      %p146 = por %p144, %p145
      %p147 = scmp.ne.s32.totalorder %s135, %s136
      %p148 = scmp.eq.s32.totalorder %s21, 1
      %p149 = por %p147, %p148
      %p151 = scmp.ne.s32.totalorder %s136, %s150
      %p152 = scmp.eq.s32.totalorder %s21, 0
      %p153 = por %p151, %p152
      %s155 = sadd.s32 %s154, 1
      %p158 = scmp.eq.s32.totalorder %s15, 1
      %p159 = scmp.ne.s32.totalorder %s154, %s156
      %p160 = scmp.eq.s32.totalorder %s15, 0
      %p161 = por %p159, %p160
      %p162 = scmp.ne.s32.totalorder %s154, %s156
      %p163 = scmp.eq.s32.totalorder %s20, 1
      %p164 = por %p162, %p163
      %p165 = scmp.ne.s32.totalorder %s156, %s157
      %p166 = scmp.eq.s32.totalorder %s20, 0
      %p167 = por %p165, %p166
      %p168 = scmp.ne.s32.totalorder %s156, %s157
      %p169 = scmp.eq.s32.totalorder %s21, 1
      %p170 = por %p168, %p169
      %p172 = scmp.ne.s32.totalorder %s157, %s171
      %p173 = scmp.eq.s32.totalorder %s21, 0
      %p174 = por %p172, %p173
      %s175 = ssub.s32 %s22, %s34
      %p176 = scmp.eq.s32.totalorder %s175, 0
      %s178 = sadd.s32 %s177, 1
      %s179 = scalar_select %p176, %s177, %s178
      %p182 = pneg %p176
      %p183 = scmp.eq.s32.totalorder %s15, 1
      %p184 = por %p182, %p183
      %p185 = scmp.ne.s32.totalorder %s177, %s180
      %p186 = scmp.eq.s32.totalorder %s15, 0
      %p187 = por %p185, %p186
      %p188 = scmp.ne.s32.totalorder %s177, %s180
      %p189 = scmp.eq.s32.totalorder %s20, 1
      %p190 = por %p188, %p189
      %p191 = scmp.ne.s32.totalorder %s180, %s181
      %p192 = scmp.eq.s32.totalorder %s20, 0
      %p193 = por %p191, %p192
      %p194 = scmp.ne.s32.totalorder %s180, %s181
      %p195 = scmp.eq.s32.totalorder %s21, 1
      %p196 = por %p194, %p195
      %p198 = scmp.ne.s32.totalorder %s181, %s197
      %p199 = scmp.eq.s32.totalorder %s21, 0
      %p200 = por %p198, %p199
      %p201 = scmp.le.s32.totalorder 1, %s15
      %p202 = scmp.lt.s32.totalorder %s15, 3
      %p203 = pnand %p201, %p202
      %p204 = pneg %p203
      // Predicated region
      $region9: #{classify_model_forward.1} parent=5 // pred_check
        _
      $region10: #{classify_model_forward.1} parent=5 // pred_check_branch
        %206 = sbr.rel (%p203) target = $region12
      $region11: #{classify_model_forward.1} parent=5 // pred_region
        %s207 = ssub.s32 %s15, 1
        // Predicated region
        $region13: #{classify_model_forward.1} parent=11 // pred_check
          %p208 = pneg %p104
        $region14: #{classify_model_forward.1} parent=11 // pred_check_branch
          %210 = sbr.rel (%p208) target = $region16
        $region15: #{classify_model_forward.1} parent=11 // pred_region
          _
        $region16: #{classify_model_forward.1} parent=11 // pred_fallthru
          _
        // Predicated region
        $region17: #{classify_model_forward.1} parent=11 // pred_check
          %p211 = pneg %p125
        $region18: #{classify_model_forward.1} parent=11 // pred_check_branch
          %213 = sbr.rel (%p211) target = $region20
        $region19: #{classify_model_forward.1} parent=11 // pred_region
          _
        $region20: #{classify_model_forward.1} parent=11 // pred_fallthru
          _
        // Predicated region
        $region21: #{classify_model_forward.1} parent=11 // pred_check
          %p214 = pneg %p146
        $region22: #{classify_model_forward.1} parent=11 // pred_check_branch
          %216 = sbr.rel (%p214) target = $region24
        $region23: #{classify_model_forward.1} parent=11 // pred_region
          _
        $region24: #{classify_model_forward.1} parent=11 // pred_fallthru
          _
        // Predicated region
        $region25: #{classify_model_forward.1} parent=11 // pred_check
          %p217 = pneg %p167
        $region26: #{classify_model_forward.1} parent=11 // pred_check_branch
          %219 = sbr.rel (%p217) target = $region28
        $region27: #{classify_model_forward.1} parent=11 // pred_region
          _
        $region28: #{classify_model_forward.1} parent=11 // pred_fallthru
          _
      $region12: #{classify_model_forward.1} parent=5 // pred_fallthru
        _
      %p220 = scmp.lt.s32.totalorder %s15, 2
      // Predicated region
      $region29: #{classify_model_forward.1} parent=5 // pred_check
        %p221 = pneg %p220
      $region30: #{classify_model_forward.1} parent=5 // pred_check_branch
        %223 = sbr.rel (%p221) target = $region32
      $region31: #{classify_model_forward.1} parent=5 // pred_region
        // Predicated region
        $region33: #{classify_model_forward.1} parent=31 // pred_check
          %p224 = pneg %p49
        $region34: #{classify_model_forward.1} parent=31 // pred_check_branch
          %226 = sbr.rel (%p224) target = $region36
        $region35: #{classify_model_forward.1} parent=31 // pred_region
          %s227 = smul.u32 2, %s23
          %p228 = scmp.lt.s32.totalorder %s22, 1
          %s229 = scalar_select %p228, %s22, 1
          %p230 = scmp.lt.s32.totalorder %s227, 1
          %s231 = scalar_select %p230, %s227, 1
          %s232 = smul.addr %s229, 2
          %s233 = sadd.s32 %s231, %s232
          %s234 = smul.addr %s233, 2
          %s235 = scalar_lea.vmem %s0, %s234
          %s236 = smul.u32 2, %s23
        $region36: #{classify_model_forward.1} parent=31 // pred_fallthru
          _
        // Predicated region
        $region37: #{classify_model_forward.1} parent=31 // pred_check
          %p237 = pneg %p77
        $region38: #{classify_model_forward.1} parent=31 // pred_check_branch
          %239 = sbr.rel (%p237) target = $region40
        $region39: #{classify_model_forward.1} parent=31 // pred_region
          %s240 = smul.u32 2, %s23
          %p241 = scmp.lt.s32.totalorder %s22, 1
          %s242 = scalar_select %p241, %s22, 1
          %p243 = scmp.lt.s32.totalorder %s240, 1
          %s244 = scalar_select %p243, %s240, 1
          %s245 = smul.addr %s242, 2
          %s246 = sadd.s32 %s244, %s245
          %s247 = smul.addr %s246, 2
          %s248 = scalar_lea.vmem %s1, %s247
          %s249 = smul.u32 2, %s23
        $region40: #{classify_model_forward.1} parent=31 // pred_fallthru
          _
      $region32: #{classify_model_forward.1} parent=5 // pred_fallthru
        _
      %p250 = scmp.le.s32.totalorder 1, %s15
      %p251 = scmp.lt.s32.totalorder %s15, 3
      %p252 = pnand %p250, %p251
      %p253 = pneg %p252
      // Predicated region
      $region41: #{classify_model_forward.1} parent=5 // pred_check
        _
      $region42: #{classify_model_forward.1} parent=5 // pred_check_branch
        %255 = sbr.rel (%p252) target = $region44
      $region43: #{classify_model_forward.1} parent=5 // pred_region
        %s256 = ssub.s32 %s15, 1
        %s257 = smul.u32 2, %s25
        %p258 = scmp.lt.s32.totalorder %s24, 1
        %s259 = scalar_select %p258, %s24, 1
        %p260 = scmp.lt.s32.totalorder %s257, 1
        %s261 = scalar_select %p260, %s257, 1
        %s262 = smul.addr %s259, 2
        %s263 = sadd.s32 %s261, %s262
        %s264 = smul.addr %s263, 2
        %s265 = scalar_lea.vmem %s0, %s264
        %p266 = pneg %p55
        %p267 = pneg %p52
        %s268 = smul.u32 2, %s25
        %p269 = scmp.lt.s32.totalorder %s24, 1
        %s270 = scalar_select %p269, %s24, 1
        %p271 = scmp.lt.s32.totalorder %s268, 1
        %s272 = scalar_select %p271, %s268, 1
        %s273 = smul.addr %s270, 2
        %s274 = sadd.s32 %s272, %s273
        %s275 = smul.addr %s274, 2
        %s276 = scalar_lea.vmem %s1, %s275
        %p277 = pneg %p83
        %p278 = pneg %p80
        %p279 = pneg %p104
        %p280 = pneg %p101
        %p281 = pneg %p125
        %p282 = pneg %p122
        %p283 = pneg %p146
        %p284 = pneg %p143
        %p285 = pneg %p167
        %p286 = pneg %p164
        %p287 = pneg %p193
        %p288 = pneg %p190
        %s289 = sand.u32 %s180, 1
        %s290 = scalar_lea.sflag [#allocation5], %s289
        %s291 = sand.u32 %s180, 1
        %s292 = scalar_lea.vmem [#allocation4], %s291
        %s293 = smul.u32 2, %s25
        %p294 = scmp.lt.s32.totalorder %s24, 1
        %s295 = scalar_select %p294, %s24, 1
        %p296 = scmp.lt.s32.totalorder %s293, 1
        %s297 = scalar_select %p296, %s293, 1
        %s298 = smul.addr %s295, 2
        %s299 = sadd.s32 %s297, %s298
        %s300 = smul.addr %s299, 2
        %s301 = scalar_lea.vmem %s0, %s300
        %s302 = smul.u32 2, %s25
        %s303 = smul.u32 2, %s25
        %p304 = scmp.lt.s32.totalorder %s24, 1
        %s305 = scalar_select %p304, %s24, 1
        %p306 = scmp.lt.s32.totalorder %s303, 1
        %s307 = scalar_select %p306, %s303, 1
        %s308 = smul.addr %s305, 2
        %s309 = sadd.s32 %s307, %s308
        %s310 = smul.addr %s309, 2
        %s311 = scalar_lea.vmem %s1, %s310
        %s312 = smul.u32 2, %s25
        %p314 = scmp.eq.s32.totalorder %s25, 0
        // Predicated region
        $region45: #{classify_model_forward.1} parent=43 // pred_check
          %p315 = pneg %p314
        $region46: #{classify_model_forward.1} parent=43 // pred_check_branch
          %317 = sbr.rel (%p315) target = $region48
        $region47: #{classify_model_forward.1} parent=43 // pred_region
          %vm318 = vcmask 7168
          %319 = vst.msk [vmem:[#allocation2] sm:$0xff] %vm318, 0.0
          %320 = vst.msk [vmem:[#allocation2 + $0x8] sm:$0xff] %vm318, 0.0
          %321 = vst.msk [vmem:[#allocation2 + $0x10] sm:$0xff] %vm318, 0.0
          %322 = vst.msk [vmem:[#allocation2 + $0x18] sm:$0xff] %vm318, 0.0
          %323 = vst.msk [vmem:[#allocation2 + $0x20] sm:$0xff] %vm318, 0.0
          %324 = vst.msk [vmem:[#allocation2 + $0x28] sm:$0xff] %vm318, 0.0
          %325 = vst.msk [vmem:[#allocation2 + $0x30] sm:$0xff] %vm318, 0.0
          %326 = vst.msk [vmem:[#allocation2 + $0x38] sm:$0xff] %vm318, 0.0
          %327 = vst.msk [vmem:[#allocation2 + $0x40] sm:$0xff] %vm318, 0.0
          %328 = vst.msk [vmem:[#allocation2 + $0x48] sm:$0xff] %vm318, 0.0
          %329 = vst.msk [vmem:[#allocation2 + $0x50] sm:$0xff] %vm318, 0.0
          %330 = vst.msk [vmem:[#allocation2 + $0x58] sm:$0xff] %vm318, 0.0
          %331 = vst.msk [vmem:[#allocation2 + $0x60] sm:$0xff] %vm318, 0.0
          %332 = vst.msk [vmem:[#allocation2 + $0x68] sm:$0xff] %vm318, 0.0
          %333 = vst.msk [vmem:[#allocation2 + $0x70] sm:$0xff] %vm318, 0.0
          %334 = vst.msk [vmem:[#allocation2 + $0x78] sm:$0xff] %vm318, 0.0
          %335 = vst.msk [vmem:[#allocation2 + $0x80] sm:$0xff] %vm318, 0.0
          %336 = vst.msk [vmem:[#allocation2 + $0x88] sm:$0xff] %vm318, 0.0
          %337 = vst.msk [vmem:[#allocation2 + $0x90] sm:$0xff] %vm318, 0.0
          %338 = vst.msk [vmem:[#allocation2 + $0x98] sm:$0xff] %vm318, 0.0
          %339 = vst.msk [vmem:[#allocation2 + $0xa0] sm:$0xff] %vm318, 0.0
          %340 = vst.msk [vmem:[#allocation2 + $0xa8] sm:$0xff] %vm318, 0.0
          %341 = vst.msk [vmem:[#allocation2 + $0xb0] sm:$0xff] %vm318, 0.0
          %342 = vst.msk [vmem:[#allocation2 + $0xb8] sm:$0xff] %vm318, 0.0
          %343 = vst.msk [vmem:[#allocation2 + $0xc0] sm:$0xff] %vm318, 0.0
          %344 = vst.msk [vmem:[#allocation2 + $0xc8] sm:$0xff] %vm318, 0.0
          %345 = vst.msk [vmem:[#allocation2 + $0xd0] sm:$0xff] %vm318, 0.0
          %346 = vst.msk [vmem:[#allocation2 + $0xd8] sm:$0xff] %vm318, 0.0
          %347 = vst.msk [vmem:[#allocation2 + $0xe0] sm:$0xff] %vm318, 0.0
          %348 = vst.msk [vmem:[#allocation2 + $0xe8] sm:$0xff] %vm318, 0.0
          %349 = vst.msk [vmem:[#allocation2 + $0xf0] sm:$0xff] %vm318, 0.0
          %350 = vst.msk [vmem:[#allocation2 + $0xf8] sm:$0xff] %vm318, 0.0
          %351 = vst.msk [vmem:[#allocation2 + $0x100] sm:$0xff] %vm318, 0.0
          %352 = vst.msk [vmem:[#allocation2 + $0x108] sm:$0xff] %vm318, 0.0
          %353 = vst.msk [vmem:[#allocation2 + $0x110] sm:$0xff] %vm318, 0.0
          %354 = vst.msk [vmem:[#allocation2 + $0x118] sm:$0xff] %vm318, 0.0
          %355 = vst.msk [vmem:[#allocation2 + $0x120] sm:$0xff] %vm318, 0.0
          %356 = vst.msk [vmem:[#allocation2 + $0x128] sm:$0xff] %vm318, 0.0
          %357 = vst.msk [vmem:[#allocation2 + $0x130] sm:$0xff] %vm318, 0.0
          %358 = vst.msk [vmem:[#allocation2 + $0x138] sm:$0xff] %vm318, 0.0
          %359 = vst.msk [vmem:[#allocation2 + $0x140] sm:$0xff] %vm318, 0.0
          %360 = vst.msk [vmem:[#allocation2 + $0x148] sm:$0xff] %vm318, 0.0
          %361 = vst.msk [vmem:[#allocation2 + $0x150] sm:$0xff] %vm318, 0.0
          %362 = vst.msk [vmem:[#allocation2 + $0x158] sm:$0xff] %vm318, 0.0
          %363 = vst.msk [vmem:[#allocation2 + $0x160] sm:$0xff] %vm318, 0.0
          %364 = vst.msk [vmem:[#allocation2 + $0x168] sm:$0xff] %vm318, 0.0
          %365 = vst.msk [vmem:[#allocation2 + $0x170] sm:$0xff] %vm318, 0.0
          %366 = vst.msk [vmem:[#allocation2 + $0x178] sm:$0xff] %vm318, 0.0
          %367 = vst.msk [vmem:[#allocation2 + $0x180] sm:$0xff] %vm318, 0.0
          %368 = vst.msk [vmem:[#allocation2 + $0x188] sm:$0xff] %vm318, 0.0
          %369 = vst.msk [vmem:[#allocation2 + $0x190] sm:$0xff] %vm318, 0.0
          %370 = vst.msk [vmem:[#allocation2 + $0x198] sm:$0xff] %vm318, 0.0
          %371 = vst.msk [vmem:[#allocation2 + $0x1a0] sm:$0xff] %vm318, 0.0
          %372 = vst.msk [vmem:[#allocation2 + $0x1a8] sm:$0xff] %vm318, 0.0
          %373 = vst.msk [vmem:[#allocation2 + $0x1b0] sm:$0xff] %vm318, 0.0
          %374 = vst.msk [vmem:[#allocation2 + $0x1b8] sm:$0xff] %vm318, 0.0
          %375 = vst.msk [vmem:[#allocation2 + $0x1c0] sm:$0xff] %vm318, 0.0
          %376 = vst.msk [vmem:[#allocation2 + $0x1c8] sm:$0xff] %vm318, 0.0
          %377 = vst.msk [vmem:[#allocation2 + $0x1d0] sm:$0xff] %vm318, 0.0
          %378 = vst.msk [vmem:[#allocation2 + $0x1d8] sm:$0xff] %vm318, 0.0
          %379 = vst.msk [vmem:[#allocation2 + $0x1e0] sm:$0xff] %vm318, 0.0
          %380 = vst.msk [vmem:[#allocation2 + $0x1e8] sm:$0xff] %vm318, 0.0
          %381 = vst.msk [vmem:[#allocation2 + $0x1f0] sm:$0xff] %vm318, 0.0
          %382 = vst.msk [vmem:[#allocation2 + $0x1f8] sm:$0xff] %vm318, 0.0
          %383 = vst.msk [vmem:[#allocation3] sm:$0xff] %vm318, 0.0
          %384 = vst.msk [vmem:[#allocation3 + $0x8] sm:$0xff] %vm318, 0.0
          %385 = vst.msk [vmem:[#allocation3 + $0x10] sm:$0xff] %vm318, 0.0
          %386 = vst.msk [vmem:[#allocation3 + $0x18] sm:$0xff] %vm318, 0.0
          %387 = vst.msk [vmem:[#allocation3 + $0x20] sm:$0xff] %vm318, 0.0
          %388 = vst.msk [vmem:[#allocation3 + $0x28] sm:$0xff] %vm318, 0.0
          %389 = vst.msk [vmem:[#allocation3 + $0x30] sm:$0xff] %vm318, 0.0
          %390 = vst.msk [vmem:[#allocation3 + $0x38] sm:$0xff] %vm318, 0.0
          %391 = vst.msk [vmem:[#allocation3 + $0x40] sm:$0xff] %vm318, 0.0
          %392 = vst.msk [vmem:[#allocation3 + $0x48] sm:$0xff] %vm318, 0.0
          %393 = vst.msk [vmem:[#allocation3 + $0x50] sm:$0xff] %vm318, 0.0
          %394 = vst.msk [vmem:[#allocation3 + $0x58] sm:$0xff] %vm318, 0.0
          %395 = vst.msk [vmem:[#allocation3 + $0x60] sm:$0xff] %vm318, 0.0
          %396 = vst.msk [vmem:[#allocation3 + $0x68] sm:$0xff] %vm318, 0.0
          %397 = vst.msk [vmem:[#allocation3 + $0x70] sm:$0xff] %vm318, 0.0
          %398 = vst.msk [vmem:[#allocation3 + $0x78] sm:$0xff] %vm318, 0.0
          %399 = vst.msk [vmem:[#allocation3 + $0x80] sm:$0xff] %vm318, 0.0
          %400 = vst.msk [vmem:[#allocation3 + $0x88] sm:$0xff] %vm318, 0.0
          %401 = vst.msk [vmem:[#allocation3 + $0x90] sm:$0xff] %vm318, 0.0
          %402 = vst.msk [vmem:[#allocation3 + $0x98] sm:$0xff] %vm318, 0.0
          %403 = vst.msk [vmem:[#allocation3 + $0xa0] sm:$0xff] %vm318, 0.0
          %404 = vst.msk [vmem:[#allocation3 + $0xa8] sm:$0xff] %vm318, 0.0
          %405 = vst.msk [vmem:[#allocation3 + $0xb0] sm:$0xff] %vm318, 0.0
          %406 = vst.msk [vmem:[#allocation3 + $0xb8] sm:$0xff] %vm318, 0.0
          %407 = vst.msk [vmem:[#allocation3 + $0xc0] sm:$0xff] %vm318, 0.0
          %408 = vst.msk [vmem:[#allocation3 + $0xc8] sm:$0xff] %vm318, 0.0
          %409 = vst.msk [vmem:[#allocation3 + $0xd0] sm:$0xff] %vm318, 0.0
          %410 = vst.msk [vmem:[#allocation3 + $0xd8] sm:$0xff] %vm318, 0.0
          %411 = vst.msk [vmem:[#allocation3 + $0xe0] sm:$0xff] %vm318, 0.0
          %412 = vst.msk [vmem:[#allocation3 + $0xe8] sm:$0xff] %vm318, 0.0
          %413 = vst.msk [vmem:[#allocation3 + $0xf0] sm:$0xff] %vm318, 0.0
          %414 = vst.msk [vmem:[#allocation3 + $0xf8] sm:$0xff] %vm318, 0.0
          %415 = vst.msk [vmem:[#allocation3 + $0x100] sm:$0xff] %vm318, 0.0
          %416 = vst.msk [vmem:[#allocation3 + $0x108] sm:$0xff] %vm318, 0.0
          %417 = vst.msk [vmem:[#allocation3 + $0x110] sm:$0xff] %vm318, 0.0
          %418 = vst.msk [vmem:[#allocation3 + $0x118] sm:$0xff] %vm318, 0.0
          %419 = vst.msk [vmem:[#allocation3 + $0x120] sm:$0xff] %vm318, 0.0
          %420 = vst.msk [vmem:[#allocation3 + $0x128] sm:$0xff] %vm318, 0.0
          %421 = vst.msk [vmem:[#allocation3 + $0x130] sm:$0xff] %vm318, 0.0
          %422 = vst.msk [vmem:[#allocation3 + $0x138] sm:$0xff] %vm318, 0.0
          %423 = vst.msk [vmem:[#allocation3 + $0x140] sm:$0xff] %vm318, 0.0
          %424 = vst.msk [vmem:[#allocation3 + $0x148] sm:$0xff] %vm318, 0.0
          %425 = vst.msk [vmem:[#allocation3 + $0x150] sm:$0xff] %vm318, 0.0
          %426 = vst.msk [vmem:[#allocation3 + $0x158] sm:$0xff] %vm318, 0.0
          %427 = vst.msk [vmem:[#allocation3 + $0x160] sm:$0xff] %vm318, 0.0
          %428 = vst.msk [vmem:[#allocation3 + $0x168] sm:$0xff] %vm318, 0.0
          %429 = vst.msk [vmem:[#allocation3 + $0x170] sm:$0xff] %vm318, 0.0
          %430 = vst.msk [vmem:[#allocation3 + $0x178] sm:$0xff] %vm318, 0.0
          %431 = vst.msk [vmem:[#allocation3 + $0x180] sm:$0xff] %vm318, 0.0
          %432 = vst.msk [vmem:[#allocation3 + $0x188] sm:$0xff] %vm318, 0.0
          %433 = vst.msk [vmem:[#allocation3 + $0x190] sm:$0xff] %vm318, 0.0
          %434 = vst.msk [vmem:[#allocation3 + $0x198] sm:$0xff] %vm318, 0.0
          %435 = vst.msk [vmem:[#allocation3 + $0x1a0] sm:$0xff] %vm318, 0.0
          %436 = vst.msk [vmem:[#allocation3 + $0x1a8] sm:$0xff] %vm318, 0.0
          %437 = vst.msk [vmem:[#allocation3 + $0x1b0] sm:$0xff] %vm318, 0.0
          %438 = vst.msk [vmem:[#allocation3 + $0x1b8] sm:$0xff] %vm318, 0.0
          %439 = vst.msk [vmem:[#allocation3 + $0x1c0] sm:$0xff] %vm318, 0.0
          %440 = vst.msk [vmem:[#allocation3 + $0x1c8] sm:$0xff] %vm318, 0.0
          %441 = vst.msk [vmem:[#allocation3 + $0x1d0] sm:$0xff] %vm318, 0.0
          %442 = vst.msk [vmem:[#allocation3 + $0x1d8] sm:$0xff] %vm318, 0.0
          %443 = vst.msk [vmem:[#allocation3 + $0x1e0] sm:$0xff] %vm318, 0.0
          %444 = vst.msk [vmem:[#allocation3 + $0x1e8] sm:$0xff] %vm318, 0.0
          %445 = vst.msk [vmem:[#allocation3 + $0x1f0] sm:$0xff] %vm318, 0.0
          %446 = vst.msk [vmem:[#allocation3 + $0x1f8] sm:$0xff] %vm318, 0.0
        $region48: #{classify_model_forward.1} parent=43 // pred_fallthru
          _
        %v447 = vld [vmem:[%s2] sm:$0xf]
        %v448 = vld [vmem:[%s2 + $0x4] sm:$0xf]
        %v449 = vld [vmem:[%s2 + $0x8] sm:$0xf]
        %v450 = vld [vmem:[%s2 + $0xc] sm:$0xf]
        %v451 = vld [vmem:[%s2 + $0x10] sm:$0xf]
        %v452 = vld [vmem:[%s2 + $0x14] sm:$0xf]
        %v453 = vld [vmem:[%s2 + $0x18] sm:$0xf]
        %v454 = vld [vmem:[%s2 + $0x1c] sm:$0xf]
        %v455 = vld [vmem:[%s2 + $0x20] sm:$0xf]
        %v456 = vld [vmem:[%s2 + $0x24] sm:$0xf]
        %v457 = vld [vmem:[%s2 + $0x28] sm:$0xf]
        %v458 = vld [vmem:[%s2 + $0x2c] sm:$0xf]
        %v459 = vld [vmem:[%s2 + $0x30] sm:$0xf]
        %v460 = vld [vmem:[%s2 + $0x34] sm:$0xf]
        %v461 = vld [vmem:[%s2 + $0x38] sm:$0xf]
        %v462 = vld [vmem:[%s2 + $0x3c] sm:$0xf]
        %v463 = vld [vmem:[%s2 + $0x40] sm:$0xf]
        %v464 = vld [vmem:[%s2 + $0x44] sm:$0xf]
        %v465 = vld [vmem:[%s2 + $0x48] sm:$0xf]
        %v466 = vld [vmem:[%s2 + $0x4c] sm:$0xf]
        %v467 = vld [vmem:[%s2 + $0x50] sm:$0xf]
        %v468 = vld [vmem:[%s2 + $0x54] sm:$0xf]
        %v469 = vld [vmem:[%s2 + $0x58] sm:$0xf]
        %v470 = vld [vmem:[%s2 + $0x5c] sm:$0xf]
        %v471 = vld [vmem:[%s2 + $0x60] sm:$0xf]
        %v472 = vld [vmem:[%s2 + $0x64] sm:$0xf]
        %v473 = vld [vmem:[%s2 + $0x68] sm:$0xf]
        %v474 = vld [vmem:[%s2 + $0x6c] sm:$0xf]
        %v475 = vld [vmem:[%s2 + $0x70] sm:$0xf]
        %v476 = vld [vmem:[%s2 + $0x74] sm:$0xf]
        %v477 = vld [vmem:[%s2 + $0x78] sm:$0xf]
        %v478 = vld [vmem:[%s2 + $0x7c] sm:$0xf]
        %v479 = vld [vmem:[%s2 + $0x80] sm:$0xf]
        %v480 = vld [vmem:[%s2 + $0x84] sm:$0xf]
        %v481 = vld [vmem:[%s2 + $0x88] sm:$0xf]
        %v482 = vld [vmem:[%s2 + $0x8c] sm:$0xf]
        %v483 = vld [vmem:[%s2 + $0x90] sm:$0xf]
        %v484 = vld [vmem:[%s2 + $0x94] sm:$0xf]
        %v485 = vld [vmem:[%s2 + $0x98] sm:$0xf]
        %v486 = vld [vmem:[%s2 + $0x9c] sm:$0xf]
        %v487 = vld [vmem:[%s2 + $0xa0] sm:$0xf]
        %v488 = vld [vmem:[%s2 + $0xa4] sm:$0xf]
        %v489 = vld [vmem:[%s2 + $0xa8] sm:$0xf]
        %v490 = vld [vmem:[%s2 + $0xac] sm:$0xf]
        %v491 = vld [vmem:[%s2 + $0xb0] sm:$0xf]
        %v492 = vld [vmem:[%s2 + $0xb4] sm:$0xf]
        %v493 = vld [vmem:[%s2 + $0xb8] sm:$0xf]
        %v494 = vld [vmem:[%s2 + $0xbc] sm:$0xf]
        %v495 = vld [vmem:[%s2 + $0xc0] sm:$0xf]
        %v496 = vld [vmem:[%s2 + $0xc4] sm:$0xf]
        %v497 = vld [vmem:[%s2 + $0xc8] sm:$0xf]
        %v498 = vld [vmem:[%s2 + $0xcc] sm:$0xf]
        %v499 = vld [vmem:[%s2 + $0xd0] sm:$0xf]
        %v500 = vld [vmem:[%s2 + $0xd4] sm:$0xf]
        %v501 = vld [vmem:[%s2 + $0xd8] sm:$0xf]
        %v502 = vld [vmem:[%s2 + $0xdc] sm:$0xf]
        %v503 = vld [vmem:[%s2 + $0xe0] sm:$0xf]
        %v504 = vld [vmem:[%s2 + $0xe4] sm:$0xf]
        %v505 = vld [vmem:[%s2 + $0xe8] sm:$0xf]
        %v506 = vld [vmem:[%s2 + $0xec] sm:$0xf]
        %v507 = vld [vmem:[%s2 + $0xf0] sm:$0xf]
        %v508 = vld [vmem:[%s2 + $0xf4] sm:$0xf]
        %v509 = vld [vmem:[%s2 + $0xf8] sm:$0xf]
        %v510 = vld [vmem:[%s2 + $0xfc] sm:$0xf]
        %v511 = vld [vmem:[%s3] sm:$0xff]
        %v512 = vld [vmem:[%s3 + $0x8] sm:$0xff]
        %v513 = vld [vmem:[%s3 + $0x10] sm:$0xff]
        %v514 = vld [vmem:[%s3 + $0x18] sm:$0xff]
        %v515 = vld [vmem:[%s3 + $0x20] sm:$0xff]
        %v516 = vld [vmem:[%s3 + $0x28] sm:$0xff]
        %v517 = vld [vmem:[%s3 + $0x30] sm:$0xff]
        %v518 = vld [vmem:[%s3 + $0x38] sm:$0xff]
        %v519 = vld [vmem:[%s3 + $0x40] sm:$0xff]
        %v520 = vld [vmem:[%s3 + $0x48] sm:$0xff]
        %v521 = vld [vmem:[%s3 + $0x50] sm:$0xff]
        %v522 = vld [vmem:[%s3 + $0x58] sm:$0xff]
        %v523 = vld [vmem:[%s3 + $0x60] sm:$0xff]
        %v524 = vld [vmem:[%s3 + $0x68] sm:$0xff]
        %v525 = vld [vmem:[%s3 + $0x70] sm:$0xff]
        %v526 = vld [vmem:[%s3 + $0x78] sm:$0xff]
        %v527 = vld [vmem:[%s3 + $0x80] sm:$0xff]
        %v528 = vld [vmem:[%s3 + $0x88] sm:$0xff]
        %v529 = vld [vmem:[%s3 + $0x90] sm:$0xff]
        %v530 = vld [vmem:[%s3 + $0x98] sm:$0xff]
        %v531 = vld [vmem:[%s3 + $0xa0] sm:$0xff]
        %v532 = vld [vmem:[%s3 + $0xa8] sm:$0xff]
        %v533 = vld [vmem:[%s3 + $0xb0] sm:$0xff]
        %v534 = vld [vmem:[%s3 + $0xb8] sm:$0xff]
        %v535 = vld [vmem:[%s3 + $0xc0] sm:$0xff]
        %v536 = vld [vmem:[%s3 + $0xc8] sm:$0xff]
        %v537 = vld [vmem:[%s3 + $0xd0] sm:$0xff]
        %v538 = vld [vmem:[%s3 + $0xd8] sm:$0xff]
        %v539 = vld [vmem:[%s3 + $0xe0] sm:$0xff]
        %v540 = vld [vmem:[%s3 + $0xe8] sm:$0xff]
        %v541 = vld [vmem:[%s3 + $0xf0] sm:$0xff]
        %v542 = vld [vmem:[%s3 + $0xf8] sm:$0xff]
        %v543 = vld [vmem:[%s3 + $0x100] sm:$0xff]
        %v544 = vld [vmem:[%s3 + $0x108] sm:$0xff]
        %v545 = vld [vmem:[%s3 + $0x110] sm:$0xff]
        %v546 = vld [vmem:[%s3 + $0x118] sm:$0xff]
        %v547 = vld [vmem:[%s3 + $0x120] sm:$0xff]
        %v548 = vld [vmem:[%s3 + $0x128] sm:$0xff]
        %v549 = vld [vmem:[%s3 + $0x130] sm:$0xff]
        %v550 = vld [vmem:[%s3 + $0x138] sm:$0xff]
        %v551 = vld [vmem:[%s3 + $0x140] sm:$0xff]
        %v552 = vld [vmem:[%s3 + $0x148] sm:$0xff]
        %v553 = vld [vmem:[%s3 + $0x150] sm:$0xff]
        %v554 = vld [vmem:[%s3 + $0x158] sm:$0xff]
        %v555 = vld [vmem:[%s3 + $0x160] sm:$0xff]
        %v556 = vld [vmem:[%s3 + $0x168] sm:$0xff]
        %v557 = vld [vmem:[%s3 + $0x170] sm:$0xff]
        %v558 = vld [vmem:[%s3 + $0x178] sm:$0xff]
        %v559 = vld [vmem:[%s3 + $0x180] sm:$0xff]
        %v560 = vld [vmem:[%s3 + $0x188] sm:$0xff]
        %v561 = vld [vmem:[%s3 + $0x190] sm:$0xff]
        %v562 = vld [vmem:[%s3 + $0x198] sm:$0xff]
        %v563 = vld [vmem:[%s3 + $0x1a0] sm:$0xff]
        %v564 = vld [vmem:[%s3 + $0x1a8] sm:$0xff]
        %v565 = vld [vmem:[%s3 + $0x1b0] sm:$0xff]
        %v566 = vld [vmem:[%s3 + $0x1b8] sm:$0xff]
        %v567 = vld [vmem:[%s3 + $0x1c0] sm:$0xff]
        %v568 = vld [vmem:[%s3 + $0x1c8] sm:$0xff]
        %v569 = vld [vmem:[%s3 + $0x1d0] sm:$0xff]
        %v570 = vld [vmem:[%s3 + $0x1d8] sm:$0xff]
        %v571 = vld [vmem:[%s3 + $0x1e0] sm:$0xff]
        %v572 = vld [vmem:[%s3 + $0x1e8] sm:$0xff]
        %v573 = vld [vmem:[%s3 + $0x1f0] sm:$0xff]
        %v574 = vld [vmem:[%s3 + $0x1f8] sm:$0xff]
        %v575 = vld [vmem:[#allocation2] sm:$0xff]
        %v576 = vld [vmem:[#allocation2 + $0x8] sm:$0xff]
        %v577 = vld [vmem:[#allocation2 + $0x10] sm:$0xff]
        %v578 = vld [vmem:[#allocation2 + $0x18] sm:$0xff]
        %v579 = vld [vmem:[#allocation2 + $0x20] sm:$0xff]
        %v580 = vld [vmem:[#allocation2 + $0x28] sm:$0xff]
        %v581 = vld [vmem:[#allocation2 + $0x30] sm:$0xff]
        %v582 = vld [vmem:[#allocation2 + $0x38] sm:$0xff]
        %v583 = vld [vmem:[#allocation2 + $0x40] sm:$0xff]
        %v584 = vld [vmem:[#allocation2 + $0x48] sm:$0xff]
        %v585 = vld [vmem:[#allocation2 + $0x50] sm:$0xff]
        %v586 = vld [vmem:[#allocation2 + $0x58] sm:$0xff]
        %v587 = vld [vmem:[#allocation2 + $0x60] sm:$0xff]
        %v588 = vld [vmem:[#allocation2 + $0x68] sm:$0xff]
        %v589 = vld [vmem:[#allocation2 + $0x70] sm:$0xff]
        %v590 = vld [vmem:[#allocation2 + $0x78] sm:$0xff]
        %v591 = vld [vmem:[#allocation2 + $0x80] sm:$0xff]
        %v592 = vld [vmem:[#allocation2 + $0x88] sm:$0xff]
        %v593 = vld [vmem:[#allocation2 + $0x90] sm:$0xff]
        %v594 = vld [vmem:[#allocation2 + $0x98] sm:$0xff]
        %v595 = vld [vmem:[#allocation2 + $0xa0] sm:$0xff]
        %v596 = vld [vmem:[#allocation2 + $0xa8] sm:$0xff]
        %v597 = vld [vmem:[#allocation2 + $0xb0] sm:$0xff]
        %v598 = vld [vmem:[#allocation2 + $0xb8] sm:$0xff]
        %v599 = vld [vmem:[#allocation2 + $0xc0] sm:$0xff]
        %v600 = vld [vmem:[#allocation2 + $0xc8] sm:$0xff]
        %v601 = vld [vmem:[#allocation2 + $0xd0] sm:$0xff]
        %v602 = vld [vmem:[#allocation2 + $0xd8] sm:$0xff]
        %v603 = vld [vmem:[#allocation2 + $0xe0] sm:$0xff]
        %v604 = vld [vmem:[#allocation2 + $0xe8] sm:$0xff]
        %v605 = vld [vmem:[#allocation2 + $0xf0] sm:$0xff]
        %v606 = vld [vmem:[#allocation2 + $0xf8] sm:$0xff]
        %v607 = vld [vmem:[#allocation2 + $0x100] sm:$0xff]
        %v608 = vld [vmem:[#allocation2 + $0x108] sm:$0xff]
        %v609 = vld [vmem:[#allocation2 + $0x110] sm:$0xff]
        %v610 = vld [vmem:[#allocation2 + $0x118] sm:$0xff]
        %v611 = vld [vmem:[#allocation2 + $0x120] sm:$0xff]
        %v612 = vld [vmem:[#allocation2 + $0x128] sm:$0xff]
        %v613 = vld [vmem:[#allocation2 + $0x130] sm:$0xff]
        %v614 = vld [vmem:[#allocation2 + $0x138] sm:$0xff]
        %v615 = vld [vmem:[#allocation2 + $0x140] sm:$0xff]
        %v616 = vld [vmem:[#allocation2 + $0x148] sm:$0xff]
        %v617 = vld [vmem:[#allocation2 + $0x150] sm:$0xff]
        %v618 = vld [vmem:[#allocation2 + $0x158] sm:$0xff]
        %v619 = vld [vmem:[#allocation2 + $0x160] sm:$0xff]
        %v620 = vld [vmem:[#allocation2 + $0x168] sm:$0xff]
        %v621 = vld [vmem:[#allocation2 + $0x170] sm:$0xff]
        %v622 = vld [vmem:[#allocation2 + $0x178] sm:$0xff]
        %v623 = vld [vmem:[#allocation2 + $0x180] sm:$0xff]
        %v624 = vld [vmem:[#allocation2 + $0x188] sm:$0xff]
        %v625 = vld [vmem:[#allocation2 + $0x190] sm:$0xff]
        %v626 = vld [vmem:[#allocation2 + $0x198] sm:$0xff]
        %v627 = vld [vmem:[#allocation2 + $0x1a0] sm:$0xff]
        %v628 = vld [vmem:[#allocation2 + $0x1a8] sm:$0xff]
        %v629 = vld [vmem:[#allocation2 + $0x1b0] sm:$0xff]
        %v630 = vld [vmem:[#allocation2 + $0x1b8] sm:$0xff]
        %v631 = vld [vmem:[#allocation2 + $0x1c0] sm:$0xff]
        %v632 = vld [vmem:[#allocation2 + $0x1c8] sm:$0xff]
        %v633 = vld [vmem:[#allocation2 + $0x1d0] sm:$0xff]
        %v634 = vld [vmem:[#allocation2 + $0x1d8] sm:$0xff]
        %v635 = vld [vmem:[#allocation2 + $0x1e0] sm:$0xff]
        %v636 = vld [vmem:[#allocation2 + $0x1e8] sm:$0xff]
        %v637 = vld [vmem:[#allocation2 + $0x1f0] sm:$0xff]
        %v638 = vld [vmem:[#allocation2 + $0x1f8] sm:$0xff]
        %v639 = vld [vmem:[%s301] sm:$0xf]
        %641 = vset.pattern.permute.xlu0 0
        %642 = vperm.xlu0 %641, %v511
        %v643 = vpop.permute.xlu0 %642
        %646 = vset.pattern.permute.xlu0 0
        %647 = vperm.xlu0 %646, %v512
        %v648 = vpop.permute.xlu0 %647
        %651 = vset.pattern.permute.xlu0 0
        %652 = vperm.xlu0 %651, %v513
        %v653 = vpop.permute.xlu0 %652
        %656 = vset.pattern.permute.xlu0 0
        %657 = vperm.xlu0 %656, %v514
        %v658 = vpop.permute.xlu0 %657
        %661 = vset.pattern.permute.xlu0 0
        %662 = vperm.xlu0 %661, %v515
        %v663 = vpop.permute.xlu0 %662
        %666 = vset.pattern.permute.xlu0 0
        %667 = vperm.xlu0 %666, %v516
        %v668 = vpop.permute.xlu0 %667
        %671 = vset.pattern.permute.xlu0 0
        %672 = vperm.xlu0 %671, %v517
        %v673 = vpop.permute.xlu0 %672
        %676 = vset.pattern.permute.xlu0 0
        %677 = vperm.xlu0 %676, %v518
        %v678 = vpop.permute.xlu0 %677
        %681 = vset.pattern.permute.xlu0 0
        %682 = vperm.xlu0 %681, %v519
        %v683 = vpop.permute.xlu0 %682
        %686 = vset.pattern.permute.xlu0 0
        %687 = vperm.xlu0 %686, %v520
        %v688 = vpop.permute.xlu0 %687
        %691 = vset.pattern.permute.xlu0 0
        %692 = vperm.xlu0 %691, %v521
        %v693 = vpop.permute.xlu0 %692
        %696 = vset.pattern.permute.xlu0 0
        %697 = vperm.xlu0 %696, %v522
        %v698 = vpop.permute.xlu0 %697
        %701 = vset.pattern.permute.xlu0 0
        %702 = vperm.xlu0 %701, %v523
        %v703 = vpop.permute.xlu0 %702
        %706 = vset.pattern.permute.xlu0 0
        %707 = vperm.xlu0 %706, %v524
        %v708 = vpop.permute.xlu0 %707
        %711 = vset.pattern.permute.xlu0 0
        %712 = vperm.xlu0 %711, %v525
        %v713 = vpop.permute.xlu0 %712
        %716 = vset.pattern.permute.xlu0 0
        %717 = vperm.xlu0 %716, %v526
        %v718 = vpop.permute.xlu0 %717
        %721 = vset.pattern.permute.xlu0 0
        %722 = vperm.xlu0 %721, %v527
        %v723 = vpop.permute.xlu0 %722
        %726 = vset.pattern.permute.xlu0 0
        %727 = vperm.xlu0 %726, %v528
        %v728 = vpop.permute.xlu0 %727
        %731 = vset.pattern.permute.xlu0 0
        %732 = vperm.xlu0 %731, %v529
        %v733 = vpop.permute.xlu0 %732
        %736 = vset.pattern.permute.xlu0 0
        %737 = vperm.xlu0 %736, %v530
        %v738 = vpop.permute.xlu0 %737
        %741 = vset.pattern.permute.xlu0 0
        %742 = vperm.xlu0 %741, %v531
        %v743 = vpop.permute.xlu0 %742
        %746 = vset.pattern.permute.xlu0 0
        %747 = vperm.xlu0 %746, %v532
        %v748 = vpop.permute.xlu0 %747
        %751 = vset.pattern.permute.xlu0 0
        %752 = vperm.xlu0 %751, %v533
        %v753 = vpop.permute.xlu0 %752
        %756 = vset.pattern.permute.xlu0 0
        %757 = vperm.xlu0 %756, %v534
        %v758 = vpop.permute.xlu0 %757
        %761 = vset.pattern.permute.xlu0 0
        %762 = vperm.xlu0 %761, %v535
        %v763 = vpop.permute.xlu0 %762
        %766 = vset.pattern.permute.xlu0 0
        %767 = vperm.xlu0 %766, %v536
        %v768 = vpop.permute.xlu0 %767
        %771 = vset.pattern.permute.xlu0 0
        %772 = vperm.xlu0 %771, %v537
        %v773 = vpop.permute.xlu0 %772
        %776 = vset.pattern.permute.xlu0 0
        %777 = vperm.xlu0 %776, %v538
        %v778 = vpop.permute.xlu0 %777
        %781 = vset.pattern.permute.xlu0 0
        %782 = vperm.xlu0 %781, %v539
        %v783 = vpop.permute.xlu0 %782
        %786 = vset.pattern.permute.xlu0 0
        %787 = vperm.xlu0 %786, %v540
        %v788 = vpop.permute.xlu0 %787
        %791 = vset.pattern.permute.xlu0 0
        %792 = vperm.xlu0 %791, %v541
        %v793 = vpop.permute.xlu0 %792
        %796 = vset.pattern.permute.xlu0 0
        %797 = vperm.xlu0 %796, %v542
        %v798 = vpop.permute.xlu0 %797
        %801 = vset.pattern.permute.xlu0 0
        %802 = vperm.xlu0 %801, %v543
        %v803 = vpop.permute.xlu0 %802
        %806 = vset.pattern.permute.xlu0 0
        %807 = vperm.xlu0 %806, %v544
        %v808 = vpop.permute.xlu0 %807
        %811 = vset.pattern.permute.xlu0 0
        %812 = vperm.xlu0 %811, %v545
        %v813 = vpop.permute.xlu0 %812
        %816 = vset.pattern.permute.xlu0 0
        %817 = vperm.xlu0 %816, %v546
        %v818 = vpop.permute.xlu0 %817
        %821 = vset.pattern.permute.xlu0 0
        %822 = vperm.xlu0 %821, %v547
        %v823 = vpop.permute.xlu0 %822
        %826 = vset.pattern.permute.xlu0 0
        %827 = vperm.xlu0 %826, %v548
        %v828 = vpop.permute.xlu0 %827
        %831 = vset.pattern.permute.xlu0 0
        %832 = vperm.xlu0 %831, %v549
        %v833 = vpop.permute.xlu0 %832
        %836 = vset.pattern.permute.xlu0 0
        %837 = vperm.xlu0 %836, %v550
        %v838 = vpop.permute.xlu0 %837
        %841 = vset.pattern.permute.xlu0 0
        %842 = vperm.xlu0 %841, %v551
        %v843 = vpop.permute.xlu0 %842
        %846 = vset.pattern.permute.xlu0 0
        %847 = vperm.xlu0 %846, %v552
        %v848 = vpop.permute.xlu0 %847
        %851 = vset.pattern.permute.xlu0 0
        %852 = vperm.xlu0 %851, %v553
        %v853 = vpop.permute.xlu0 %852
        %856 = vset.pattern.permute.xlu0 0
        %857 = vperm.xlu0 %856, %v554
        %v858 = vpop.permute.xlu0 %857
        %861 = vset.pattern.permute.xlu0 0
        %862 = vperm.xlu0 %861, %v555
        %v863 = vpop.permute.xlu0 %862
        %866 = vset.pattern.permute.xlu0 0
        %867 = vperm.xlu0 %866, %v556
        %v868 = vpop.permute.xlu0 %867
        %871 = vset.pattern.permute.xlu0 0
        %872 = vperm.xlu0 %871, %v557
        %v873 = vpop.permute.xlu0 %872
        %876 = vset.pattern.permute.xlu0 0
        %877 = vperm.xlu0 %876, %v558
        %v878 = vpop.permute.xlu0 %877
        %881 = vset.pattern.permute.xlu0 0
        %882 = vperm.xlu0 %881, %v559
        %v883 = vpop.permute.xlu0 %882
        %886 = vset.pattern.permute.xlu0 0
        %887 = vperm.xlu0 %886, %v560
        %v888 = vpop.permute.xlu0 %887
        %891 = vset.pattern.permute.xlu0 0
        %892 = vperm.xlu0 %891, %v561
        %v893 = vpop.permute.xlu0 %892
        %896 = vset.pattern.permute.xlu0 0
        %897 = vperm.xlu0 %896, %v562
        %v898 = vpop.permute.xlu0 %897
        %901 = vset.pattern.permute.xlu0 0
        %902 = vperm.xlu0 %901, %v563
        %v903 = vpop.permute.xlu0 %902
        %906 = vset.pattern.permute.xlu0 0
        %907 = vperm.xlu0 %906, %v564
        %v908 = vpop.permute.xlu0 %907
        %911 = vset.pattern.permute.xlu0 0
        %912 = vperm.xlu0 %911, %v565
        %v913 = vpop.permute.xlu0 %912
        %916 = vset.pattern.permute.xlu0 0
        %917 = vperm.xlu0 %916, %v566
        %v918 = vpop.permute.xlu0 %917
        %921 = vset.pattern.permute.xlu0 0
        %922 = vperm.xlu0 %921, %v567
        %v923 = vpop.permute.xlu0 %922
        %926 = vset.pattern.permute.xlu0 0
        %927 = vperm.xlu0 %926, %v568
        %v928 = vpop.permute.xlu0 %927
        %931 = vset.pattern.permute.xlu0 0
        %932 = vperm.xlu0 %931, %v569
        %v933 = vpop.permute.xlu0 %932
        %936 = vset.pattern.permute.xlu0 0
        %937 = vperm.xlu0 %936, %v570
        %v938 = vpop.permute.xlu0 %937
        %941 = vset.pattern.permute.xlu0 0
        %942 = vperm.xlu0 %941, %v571
        %v943 = vpop.permute.xlu0 %942
        %946 = vset.pattern.permute.xlu0 0
        %947 = vperm.xlu0 %946, %v572
        %v948 = vpop.permute.xlu0 %947
        %951 = vset.pattern.permute.xlu0 0
        %952 = vperm.xlu0 %951, %v573
        %v953 = vpop.permute.xlu0 %952
        %956 = vset.pattern.permute.xlu0 0
        %957 = vperm.xlu0 %956, %v574
        %v958 = vpop.permute.xlu0 %957
        %v1024 = vunpack.c.l.b16 %v447
        %v1025 = vunpack.c.l.b16 %v448
        %v1026 = vunpack.c.l.b16 %v449
        %v1027 = vunpack.c.l.b16 %v450
        %v1028 = vunpack.c.l.b16 %v451
        %v1029 = vunpack.c.l.b16 %v452
        %v1030 = vunpack.c.l.b16 %v453
        %v1031 = vunpack.c.l.b16 %v454
        %v1032 = vunpack.c.l.b16 %v455
        %v1033 = vunpack.c.l.b16 %v456
        %v1034 = vunpack.c.l.b16 %v457
        %v1035 = vunpack.c.l.b16 %v458
        %v1036 = vunpack.c.l.b16 %v459
        %v1037 = vunpack.c.l.b16 %v460
        %v1038 = vunpack.c.l.b16 %v461
        %v1039 = vunpack.c.l.b16 %v462
        %v1040 = vunpack.c.l.b16 %v463
        %v1041 = vunpack.c.l.b16 %v464
        %v1042 = vunpack.c.l.b16 %v465
        %v1043 = vunpack.c.l.b16 %v466
        %v1044 = vunpack.c.l.b16 %v467
        %v1045 = vunpack.c.l.b16 %v468
        %v1046 = vunpack.c.l.b16 %v469
        %v1047 = vunpack.c.l.b16 %v470
        %v1048 = vunpack.c.l.b16 %v471
        %v1049 = vunpack.c.l.b16 %v472
        %v1050 = vunpack.c.l.b16 %v473
        %v1051 = vunpack.c.l.b16 %v474
        %v1052 = vunpack.c.l.b16 %v475
        %v1053 = vunpack.c.l.b16 %v476
        %v1054 = vunpack.c.l.b16 %v477
        %v1055 = vunpack.c.l.b16 %v478
        %v1056 = vunpack.c.l.b16 %v479
        %v1057 = vunpack.c.l.b16 %v480
        %v1058 = vunpack.c.l.b16 %v481
        %v1059 = vunpack.c.l.b16 %v482
        %v1060 = vunpack.c.l.b16 %v483
        %v1061 = vunpack.c.l.b16 %v484
        %v1062 = vunpack.c.l.b16 %v485
        %v1063 = vunpack.c.l.b16 %v486
        %v1064 = vunpack.c.l.b16 %v487
        %v1065 = vunpack.c.l.b16 %v488
        %v1066 = vunpack.c.l.b16 %v489
        %v1067 = vunpack.c.l.b16 %v490
        %v1068 = vunpack.c.l.b16 %v491
        %v1069 = vunpack.c.l.b16 %v492
        %v1070 = vunpack.c.l.b16 %v493
        %v1071 = vunpack.c.l.b16 %v494
        %v1072 = vunpack.c.l.b16 %v495
        %v1073 = vunpack.c.l.b16 %v496
        %v1074 = vunpack.c.l.b16 %v497
        %v1075 = vunpack.c.l.b16 %v498
        %v1076 = vunpack.c.l.b16 %v499
        %v1077 = vunpack.c.l.b16 %v500
        %v1078 = vunpack.c.l.b16 %v501
        %v1079 = vunpack.c.l.b16 %v502
        %v1080 = vunpack.c.l.b16 %v503
        %v1081 = vunpack.c.l.b16 %v504
        %v1082 = vunpack.c.l.b16 %v505
        %v1083 = vunpack.c.l.b16 %v506
        %v1084 = vunpack.c.l.b16 %v507
        %v1085 = vunpack.c.l.b16 %v508
        %v1086 = vunpack.c.l.b16 %v509
        %v1087 = vunpack.c.l.b16 %v510
        %v1088 = vpack.c.b16 %v1025, %v1024
        %v1089 = vpack.c.b16 %v1027, %v1026
        %v1090 = vpack.c.b16 %v1029, %v1028
        %v1091 = vpack.c.b16 %v1031, %v1030
        %v1092 = vpack.c.b16 %v1033, %v1032
        %v1093 = vpack.c.b16 %v1035, %v1034
        %v1094 = vpack.c.b16 %v1037, %v1036
        %v1095 = vpack.c.b16 %v1039, %v1038
        %v1096 = vpack.c.b16 %v1041, %v1040
        %v1097 = vpack.c.b16 %v1043, %v1042
        %v1098 = vpack.c.b16 %v1045, %v1044
        %v1099 = vpack.c.b16 %v1047, %v1046
        %v1100 = vpack.c.b16 %v1049, %v1048
        %v1101 = vpack.c.b16 %v1051, %v1050
        %v1102 = vpack.c.b16 %v1053, %v1052
        %v1103 = vpack.c.b16 %v1055, %v1054
        %v1104 = vpack.c.b16 %v1057, %v1056
        %v1105 = vpack.c.b16 %v1059, %v1058
        %v1106 = vpack.c.b16 %v1061, %v1060
        %v1107 = vpack.c.b16 %v1063, %v1062
        %v1108 = vpack.c.b16 %v1065, %v1064
        %v1109 = vpack.c.b16 %v1067, %v1066
        %v1110 = vpack.c.b16 %v1069, %v1068
        %v1111 = vpack.c.b16 %v1071, %v1070
        %v1112 = vpack.c.b16 %v1073, %v1072
        %v1113 = vpack.c.b16 %v1075, %v1074
        %v1114 = vpack.c.b16 %v1077, %v1076
        %v1115 = vpack.c.b16 %v1079, %v1078
        %v1116 = vpack.c.b16 %v1081, %v1080
        %v1117 = vpack.c.b16 %v1083, %v1082
        %v1118 = vpack.c.b16 %v1085, %v1084
        %v1119 = vpack.c.b16 %v1087, %v1086
        %v1122 = vunpack.c.l.s4 1983009808
        %v1123 = vunpack.c.0.s8 %v1122
        %v1124 = vlaneseq
        %v1125 = vshrl.u32 %v1124, 7
        %v1126 = vsub.s32 %v1123, %v1125
        %v1127 = vrot.slane %v639, %v1126
        %v1128 = vcombine.high %v1127, %v1127
        %vm1129 = vcmask 23552
        %v1131 = vsel %vm1129, %v1088, 0
        %v1134 = vsel %vm1129, %v1089, 0
        %v1137 = vsel %vm1129, %v1090, 0
        %v1140 = vsel %vm1129, %v1091, 0
        %v1143 = vsel %vm1129, %v1092, 0
        %v1146 = vsel %vm1129, %v1093, 0
        %v1149 = vsel %vm1129, %v1094, 0
        %v1152 = vsel %vm1129, %v1095, 0
        %v1155 = vsel %vm1129, %v1096, 0
        %v1158 = vsel %vm1129, %v1097, 0
        %v1161 = vsel %vm1129, %v1098, 0
        %v1164 = vsel %vm1129, %v1099, 0
        %v1167 = vsel %vm1129, %v1100, 0
        %v1170 = vsel %vm1129, %v1101, 0
        %v1173 = vsel %vm1129, %v1102, 0
        %v1176 = vsel %vm1129, %v1103, 0
        %v1179 = vsel %vm1129, %v1104, 0
        %v1182 = vsel %vm1129, %v1105, 0
        %v1185 = vsel %vm1129, %v1106, 0
        %v1188 = vsel %vm1129, %v1107, 0
        %v1191 = vsel %vm1129, %v1108, 0
        %v1194 = vsel %vm1129, %v1109, 0
        %v1197 = vsel %vm1129, %v1110, 0
        %v1200 = vsel %vm1129, %v1111, 0
        %v1203 = vsel %vm1129, %v1112, 0
        %v1206 = vsel %vm1129, %v1113, 0
        %v1209 = vsel %vm1129, %v1114, 0
        %v1212 = vsel %vm1129, %v1115, 0
        %v1215 = vsel %vm1129, %v1116, 0
        %v1218 = vsel %vm1129, %v1117, 0
        %v1221 = vsel %vm1129, %v1118, 0
        %v1224 = vsel %vm1129, %v1119, 0
        %vm1226 = vcmask 1040384
        %vm1227 = vcmask 1041408
        %v1228 = vsel %vm1226, 4294967295, 65535
        %v1229 = vsel %vm1227, %v1228, 0
        %v1231 = vand.u32 %v1127, %v1229
        %v1234 = vand.u32 %v1128, %v1229
        %1236 = vmatprep.subr.bf16.mxu0 %v1234
        %1237 = vmatpush1.bf16.msra.mxu0 %v1231
        %1238 = vmatprep.subr.bf16.mxu0 0
        %1239 = vmatpush1.bf16.msra.mxu0 0
        %1240 = vmatprep.subr.bf16.mxu0 0
        %1241 = vmatpush1.bf16.msra.mxu0 0
        %1242 = vmatprep.subr.bf16.mxu0 0
        %1243 = vmatpush1.bf16.msra.mxu0 0
        %1244 = vmatprep.subr.bf16.mxu0 0
        %1245 = vmatpush1.bf16.msra.mxu0 0
        %1246 = vmatprep.subr.bf16.mxu0 0
        %1247 = vmatpush1.bf16.msra.mxu0 0
        %1248 = vmatprep.subr.bf16.mxu0 0
        %1249 = vmatpush1.bf16.msra.mxu0 0
        %1250 = vmatprep.subr.bf16.mxu0 0
        %1251 = vmatpush1.bf16.msra.mxu0 0
        %1252 = vmatprep.subr.bf16.mxu0 0
        %1253 = vmatpush1.bf16.msra.mxu0 0
        %1254 = vmatprep.subr.bf16.mxu0 0
        %1255 = vmatpush1.bf16.msra.mxu0 0
        %1256 = vmatprep.subr.bf16.mxu0 0
        %1257 = vmatpush1.bf16.msra.mxu0 0
        %1258 = vmatprep.subr.bf16.mxu0 0
        %1259 = vmatpush1.bf16.msra.mxu0 0
        %1260 = vmatprep.subr.bf16.mxu0 0
        %1261 = vmatpush1.bf16.msra.mxu0 0
        %1262 = vmatprep.subr.bf16.mxu0 0
        %1263 = vmatpush1.bf16.msra.mxu0 0
        %1264 = vmatprep.subr.bf16.mxu0 0
        %1265 = vmatpush1.bf16.msra.mxu0 0
        %1266 = vmatprep.subr.bf16.mxu0 0
        %1267 = vmatpush1.bf16.msra.mxu0 0
        %1268 = vmatprep.mubr.bf16.mxu0 0
        %1269 = vmatmul.mubr.bf16.gmra.mrb[0].mxu0 %v1131
        %v1270 = vpop.f32.mrb[0].mxu0
        %v1271 = vadd.f32 %v643, %v1270
        %v1272 = vpop.f32.mrb[0].mxu0
        %v1273 = vadd.f32 %v643, %v1272
        %v1274 = vpop.f32.mrb[0].mxu0
        %v1275 = vadd.f32 %v648, %v1274
        %v1276 = vpop.f32.mrb[0].mxu0
        %v1277 = vadd.f32 %v648, %v1276
        %1278 = vmatprep.mubr.bf16.mxu0 0
        %1279 = vmatmul.mubr.bf16.gmra.mrb[0].mxu0 %v1134
        %v1280 = vpop.f32.mrb[0].mxu0
        %v1281 = vadd.f32 %v653, %v1280
        %v1282 = vpop.f32.mrb[0].mxu0
        %v1283 = vadd.f32 %v653, %v1282
        %v1284 = vpop.f32.mrb[0].mxu0
        %v1285 = vadd.f32 %v658, %v1284
        %v1286 = vpop.f32.mrb[0].mxu0
        %v1287 = vadd.f32 %v658, %v1286
        %1288 = vmatprep.mubr.bf16.mxu0 0
        %1289 = vmatmul.mubr.bf16.gmra.mrb[0].mxu0 %v1137
        %v1290 = vpop.f32.mrb[0].mxu0
        %v1291 = vadd.f32 %v663, %v1290
        %v1292 = vpop.f32.mrb[0].mxu0
        %v1293 = vadd.f32 %v663, %v1292
        %v1294 = vpop.f32.mrb[0].mxu0
        %v1295 = vadd.f32 %v668, %v1294
        %v1296 = vpop.f32.mrb[0].mxu0
        %v1297 = vadd.f32 %v668, %v1296
        %1298 = vmatprep.mubr.bf16.mxu0 0
        %1299 = vmatmul.mubr.bf16.gmra.mrb[0].mxu0 %v1140
        %v1300 = vpop.f32.mrb[0].mxu0
        %v1301 = vadd.f32 %v673, %v1300
        %v1302 = vpop.f32.mrb[0].mxu0
        %v1303 = vadd.f32 %v673, %v1302
        %v1304 = vpop.f32.mrb[0].mxu0
        %v1305 = vadd.f32 %v678, %v1304
        %v1306 = vpop.f32.mrb[0].mxu0
        %v1307 = vadd.f32 %v678, %v1306
        %1308 = vmatprep.mubr.bf16.mxu0 0
        %1309 = vmatmul.mubr.bf16.gmra.mrb[0].mxu0 %v1143
        %v1310 = vpop.f32.mrb[0].mxu0
        %v1311 = vadd.f32 %v683, %v1310
        %v1312 = vpop.f32.mrb[0].mxu0
        %v1313 = vadd.f32 %v683, %v1312
        %v1314 = vpop.f32.mrb[0].mxu0
        %v1315 = vadd.f32 %v688, %v1314
        %v1316 = vpop.f32.mrb[0].mxu0
        %v1317 = vadd.f32 %v688, %v1316
        %1318 = vmatprep.mubr.bf16.mxu0 0
        %1319 = vmatmul.mubr.bf16.gmra.mrb[0].mxu0 %v1146
        %v1320 = vpop.f32.mrb[0].mxu0
        %v1321 = vadd.f32 %v693, %v1320
        %v1322 = vpop.f32.mrb[0].mxu0
        %v1323 = vadd.f32 %v693, %v1322
        %v1324 = vpop.f32.mrb[0].mxu0
        %v1325 = vadd.f32 %v698, %v1324
        %v1326 = vpop.f32.mrb[0].mxu0
        %v1327 = vadd.f32 %v698, %v1326
        %1328 = vmatprep.mubr.bf16.mxu0 0
        %1329 = vmatmul.mubr.bf16.gmra.mrb[0].mxu0 %v1149
        %v1330 = vpop.f32.mrb[0].mxu0
        %v1331 = vadd.f32 %v703, %v1330
        %v1332 = vpop.f32.mrb[0].mxu0
        %v1333 = vadd.f32 %v703, %v1332
        %v1334 = vpop.f32.mrb[0].mxu0
        %v1335 = vadd.f32 %v708, %v1334
        %v1336 = vpop.f32.mrb[0].mxu0
        %v1337 = vadd.f32 %v708, %v1336
        %1338 = vmatprep.mubr.bf16.mxu0 0
        %1339 = vmatmul.mubr.bf16.gmra.mrb[0].mxu0 %v1152
        %v1340 = vpop.f32.mrb[0].mxu0
        %v1341 = vadd.f32 %v713, %v1340
        %v1342 = vpop.f32.mrb[0].mxu0
        %v1343 = vadd.f32 %v713, %v1342
        %v1344 = vpop.f32.mrb[0].mxu0
        %v1345 = vadd.f32 %v718, %v1344
        %v1346 = vpop.f32.mrb[0].mxu0
        %v1347 = vadd.f32 %v718, %v1346
        %1348 = vmatprep.mubr.bf16.mxu0 0
        %1349 = vmatmul.mubr.bf16.gmra.mrb[0].mxu0 %v1155
        %v1350 = vpop.f32.mrb[0].mxu0
        %v1351 = vadd.f32 %v723, %v1350
        %v1352 = vpop.f32.mrb[0].mxu0
        %v1353 = vadd.f32 %v723, %v1352
        %v1354 = vpop.f32.mrb[0].mxu0
        %v1355 = vadd.f32 %v728, %v1354
        %v1356 = vpop.f32.mrb[0].mxu0
        %v1357 = vadd.f32 %v728, %v1356
        %1358 = vmatprep.mubr.bf16.mxu0 0
        %1359 = vmatmul.mubr.bf16.gmra.mrb[0].mxu0 %v1158
        %v1360 = vpop.f32.mrb[0].mxu0
        %v1361 = vadd.f32 %v733, %v1360
        %v1362 = vpop.f32.mrb[0].mxu0
        %v1363 = vadd.f32 %v733, %v1362
        %v1364 = vpop.f32.mrb[0].mxu0
        %v1365 = vadd.f32 %v738, %v1364
        %v1366 = vpop.f32.mrb[0].mxu0
        %v1367 = vadd.f32 %v738, %v1366
        %1368 = vmatprep.mubr.bf16.mxu0 0
        %1369 = vmatmul.mubr.bf16.gmra.mrb[0].mxu0 %v1161
        %v1370 = vpop.f32.mrb[0].mxu0
        %v1371 = vadd.f32 %v743, %v1370
        %v1372 = vpop.f32.mrb[0].mxu0
        %v1373 = vadd.f32 %v743, %v1372
        %v1374 = vpop.f32.mrb[0].mxu0
        %v1375 = vadd.f32 %v748, %v1374
        %v1376 = vpop.f32.mrb[0].mxu0
        %v1377 = vadd.f32 %v748, %v1376
        %1378 = vmatprep.mubr.bf16.mxu0 0
        %1379 = vmatmul.mubr.bf16.gmra.mrb[0].mxu0 %v1164
        %v1380 = vpop.f32.mrb[0].mxu0
        %v1381 = vadd.f32 %v753, %v1380
        %v1382 = vpop.f32.mrb[0].mxu0
        %v1383 = vadd.f32 %v753, %v1382
        %v1384 = vpop.f32.mrb[0].mxu0
        %v1385 = vadd.f32 %v758, %v1384
        %v1386 = vpop.f32.mrb[0].mxu0
        %v1387 = vadd.f32 %v758, %v1386
        %1388 = vmatprep.mubr.bf16.mxu0 0
        %1389 = vmatmul.mubr.bf16.gmra.mrb[0].mxu0 %v1167
        %v1390 = vpop.f32.mrb[0].mxu0
        %v1391 = vadd.f32 %v763, %v1390
        %v1392 = vpop.f32.mrb[0].mxu0
        %v1393 = vadd.f32 %v763, %v1392
        %v1394 = vpop.f32.mrb[0].mxu0
        %v1395 = vadd.f32 %v768, %v1394
        %v1396 = vpop.f32.mrb[0].mxu0
        %v1397 = vadd.f32 %v768, %v1396
        %1398 = vmatprep.mubr.bf16.mxu0 0
        %1399 = vmatmul.mubr.bf16.gmra.mrb[0].mxu0 %v1170
        %v1400 = vpop.f32.mrb[0].mxu0
        %v1401 = vadd.f32 %v773, %v1400
        %v1402 = vpop.f32.mrb[0].mxu0
        %v1403 = vadd.f32 %v773, %v1402
        %v1404 = vpop.f32.mrb[0].mxu0
        %v1405 = vadd.f32 %v778, %v1404
        %v1406 = vpop.f32.mrb[0].mxu0
        %v1407 = vadd.f32 %v778, %v1406
        %1408 = vmatprep.mubr.bf16.mxu0 0
        %1409 = vmatmul.mubr.bf16.gmra.mrb[0].mxu0 %v1173
        %v1410 = vpop.f32.mrb[0].mxu0
        %v1411 = vadd.f32 %v783, %v1410
        %v1412 = vpop.f32.mrb[0].mxu0
        %v1413 = vadd.f32 %v783, %v1412
        %v1414 = vpop.f32.mrb[0].mxu0
        %v1415 = vadd.f32 %v788, %v1414
        %v1416 = vpop.f32.mrb[0].mxu0
        %v1417 = vadd.f32 %v788, %v1416
        %1418 = vmatprep.mubr.bf16.mxu0 0
        %1419 = vmatmul.mubr.bf16.gmra.mrb[0].mxu0 %v1176
        %v1420 = vpop.f32.mrb[0].mxu0
        %v1421 = vadd.f32 %v793, %v1420
        %v1422 = vpop.f32.mrb[0].mxu0
        %v1423 = vadd.f32 %v793, %v1422
        %v1424 = vpop.f32.mrb[0].mxu0
        %v1425 = vadd.f32 %v798, %v1424
        %v1426 = vpop.f32.mrb[0].mxu0
        %v1427 = vadd.f32 %v798, %v1426
        %1428 = vmatprep.mubr.bf16.mxu0 0
        %1429 = vmatmul.mubr.bf16.gmra.mrb[0].mxu0 %v1179
        %v1430 = vpop.f32.mrb[0].mxu0
        %v1431 = vadd.f32 %v803, %v1430
        %v1432 = vpop.f32.mrb[0].mxu0
        %v1433 = vadd.f32 %v803, %v1432
        %v1434 = vpop.f32.mrb[0].mxu0
        %v1435 = vadd.f32 %v808, %v1434
        %v1436 = vpop.f32.mrb[0].mxu0
        %v1437 = vadd.f32 %v808, %v1436
        %1438 = vmatprep.mubr.bf16.mxu0 0
        %1439 = vmatmul.mubr.bf16.gmra.mrb[0].mxu0 %v1182
        %v1440 = vpop.f32.mrb[0].mxu0
        %v1441 = vadd.f32 %v813, %v1440
        %v1442 = vpop.f32.mrb[0].mxu0
        %v1443 = vadd.f32 %v813, %v1442
        %v1444 = vpop.f32.mrb[0].mxu0
        %v1445 = vadd.f32 %v818, %v1444
        %v1446 = vpop.f32.mrb[0].mxu0
        %v1447 = vadd.f32 %v818, %v1446
        %1448 = vmatprep.mubr.bf16.mxu0 0
        %1449 = vmatmul.mubr.bf16.gmra.mrb[0].mxu0 %v1185
        %v1450 = vpop.f32.mrb[0].mxu0
        %v1451 = vadd.f32 %v823, %v1450
        %v1452 = vpop.f32.mrb[0].mxu0
        %v1453 = vadd.f32 %v823, %v1452
        %v1454 = vpop.f32.mrb[0].mxu0
        %v1455 = vadd.f32 %v828, %v1454
        %v1456 = vpop.f32.mrb[0].mxu0
        %v1457 = vadd.f32 %v828, %v1456
        %1458 = vmatprep.mubr.bf16.mxu0 0
        %1459 = vmatmul.mubr.bf16.gmra.mrb[0].mxu0 %v1188
        %v1460 = vpop.f32.mrb[0].mxu0
        %v1461 = vadd.f32 %v833, %v1460
        %v1462 = vpop.f32.mrb[0].mxu0
        %v1463 = vadd.f32 %v833, %v1462
        %v1464 = vpop.f32.mrb[0].mxu0
        %v1465 = vadd.f32 %v838, %v1464
        %v1466 = vpop.f32.mrb[0].mxu0
        %v1467 = vadd.f32 %v838, %v1466
        %1468 = vmatprep.mubr.bf16.mxu0 0
        %1469 = vmatmul.mubr.bf16.gmra.mrb[0].mxu0 %v1191
        %v1470 = vpop.f32.mrb[0].mxu0
        %v1471 = vadd.f32 %v843, %v1470
        %v1472 = vpop.f32.mrb[0].mxu0
        %v1473 = vadd.f32 %v843, %v1472
        %v1474 = vpop.f32.mrb[0].mxu0
        %v1475 = vadd.f32 %v848, %v1474
        %v1476 = vpop.f32.mrb[0].mxu0
        %v1477 = vadd.f32 %v848, %v1476
        %1478 = vmatprep.mubr.bf16.mxu0 0
        %1479 = vmatmul.mubr.bf16.gmra.mrb[0].mxu0 %v1194
        %v1480 = vpop.f32.mrb[0].mxu0
        %v1481 = vadd.f32 %v853, %v1480
        %v1482 = vpop.f32.mrb[0].mxu0
        %v1483 = vadd.f32 %v853, %v1482
        %v1484 = vpop.f32.mrb[0].mxu0
        %v1485 = vadd.f32 %v858, %v1484
        %v1486 = vpop.f32.mrb[0].mxu0
        %v1487 = vadd.f32 %v858, %v1486
        %1488 = vmatprep.mubr.bf16.mxu0 0
        %1489 = vmatmul.mubr.bf16.gmra.mrb[0].mxu0 %v1197
        %v1490 = vpop.f32.mrb[0].mxu0
        %v1491 = vadd.f32 %v863, %v1490
        %v1492 = vpop.f32.mrb[0].mxu0
        %v1493 = vadd.f32 %v863, %v1492
        %v1494 = vpop.f32.mrb[0].mxu0
        %v1495 = vadd.f32 %v868, %v1494
        %v1496 = vpop.f32.mrb[0].mxu0
        %v1497 = vadd.f32 %v868, %v1496
        %1498 = vmatprep.mubr.bf16.mxu0 0
        %1499 = vmatmul.mubr.bf16.gmra.mrb[0].mxu0 %v1200
        %v1500 = vpop.f32.mrb[0].mxu0
        %v1501 = vadd.f32 %v873, %v1500
        %v1502 = vpop.f32.mrb[0].mxu0
        %v1503 = vadd.f32 %v873, %v1502
        %v1504 = vpop.f32.mrb[0].mxu0
        %v1505 = vadd.f32 %v878, %v1504
        %v1506 = vpop.f32.mrb[0].mxu0
        %v1507 = vadd.f32 %v878, %v1506
        %1508 = vmatprep.mubr.bf16.mxu0 0
        %1509 = vmatmul.mubr.bf16.gmra.mrb[0].mxu0 %v1203
        %v1510 = vpop.f32.mrb[0].mxu0
        %v1511 = vadd.f32 %v883, %v1510
        %v1512 = vpop.f32.mrb[0].mxu0
        %v1513 = vadd.f32 %v883, %v1512
        %v1514 = vpop.f32.mrb[0].mxu0
        %v1515 = vadd.f32 %v888, %v1514
        %v1516 = vpop.f32.mrb[0].mxu0
        %v1517 = vadd.f32 %v888, %v1516
        %1518 = vmatprep.mubr.bf16.mxu0 0
        %1519 = vmatmul.mubr.bf16.gmra.mrb[0].mxu0 %v1206
        %v1520 = vpop.f32.mrb[0].mxu0
        %v1521 = vadd.f32 %v893, %v1520
        %v1522 = vpop.f32.mrb[0].mxu0
        %v1523 = vadd.f32 %v893, %v1522
        %v1524 = vpop.f32.mrb[0].mxu0
        %v1525 = vadd.f32 %v898, %v1524
        %v1526 = vpop.f32.mrb[0].mxu0
        %v1527 = vadd.f32 %v898, %v1526
        %1528 = vmatprep.mubr.bf16.mxu0 0
        %1529 = vmatmul.mubr.bf16.gmra.mrb[0].mxu0 %v1209
        %v1530 = vpop.f32.mrb[0].mxu0
        %v1531 = vadd.f32 %v903, %v1530
        %v1532 = vpop.f32.mrb[0].mxu0
        %v1533 = vadd.f32 %v903, %v1532
        %v1534 = vpop.f32.mrb[0].mxu0
        %v1535 = vadd.f32 %v908, %v1534
        %v1536 = vpop.f32.mrb[0].mxu0
        %v1537 = vadd.f32 %v908, %v1536
        %1538 = vmatprep.mubr.bf16.mxu0 0
        %1539 = vmatmul.mubr.bf16.gmra.mrb[0].mxu0 %v1212
        %v1540 = vpop.f32.mrb[0].mxu0
        %v1541 = vadd.f32 %v913, %v1540
        %v1542 = vpop.f32.mrb[0].mxu0
        %v1543 = vadd.f32 %v913, %v1542
        %v1544 = vpop.f32.mrb[0].mxu0
        %v1545 = vadd.f32 %v918, %v1544
        %v1546 = vpop.f32.mrb[0].mxu0
        %v1547 = vadd.f32 %v918, %v1546
        %1548 = vmatprep.mubr.bf16.mxu0 0
        %1549 = vmatmul.mubr.bf16.gmra.mrb[0].mxu0 %v1215
        %v1550 = vpop.f32.mrb[0].mxu0
        %v1551 = vadd.f32 %v923, %v1550
        %v1552 = vpop.f32.mrb[0].mxu0
        %v1553 = vadd.f32 %v923, %v1552
        %v1554 = vpop.f32.mrb[0].mxu0
        %v1555 = vadd.f32 %v928, %v1554
        %v1556 = vpop.f32.mrb[0].mxu0
        %v1557 = vadd.f32 %v928, %v1556
        %1558 = vmatprep.mubr.bf16.mxu0 0
        %1559 = vmatmul.mubr.bf16.gmra.mrb[0].mxu0 %v1218
        %v1560 = vpop.f32.mrb[0].mxu0
        %v1561 = vadd.f32 %v933, %v1560
        %v1562 = vpop.f32.mrb[0].mxu0
        %v1563 = vadd.f32 %v933, %v1562
        %v1564 = vpop.f32.mrb[0].mxu0
        %v1565 = vadd.f32 %v938, %v1564
        %v1566 = vpop.f32.mrb[0].mxu0
        %v1567 = vadd.f32 %v938, %v1566
        %1568 = vmatprep.mubr.bf16.mxu0 0
        %1569 = vmatmul.mubr.bf16.gmra.mrb[0].mxu0 %v1221
        %v1570 = vpop.f32.mrb[0].mxu0
        %v1571 = vadd.f32 %v943, %v1570
        %v1572 = vpop.f32.mrb[0].mxu0
        %v1573 = vadd.f32 %v943, %v1572
        %v1574 = vpop.f32.mrb[0].mxu0
        %v1575 = vadd.f32 %v948, %v1574
        %v1576 = vpop.f32.mrb[0].mxu0
        %v1577 = vadd.f32 %v948, %v1576
        %1578 = vmatprep.mubr.bf16.mxu0 0
        %1579 = vmatmul.mubr.bf16.gmra.mrb[0].mxu0 %v1224
        %v1580 = vpop.f32.mrb[0].mxu0
        %v1581 = vadd.f32 %v953, %v1580
        %v1582 = vpop.f32.mrb[0].mxu0
        %v1583 = vadd.f32 %v953, %v1582
        %v1584 = vpop.f32.mrb[0].mxu0
        %v1585 = vadd.f32 %v958, %v1584
        %v1586 = vpop.f32.mrb[0].mxu0
        %v1587 = vadd.f32 %v958, %v1586
        %1588 = vdwg.mxu0
        %v1589 = vmax.f32 %v1271, 0.0
        %v1590 = vmax.f32 %v1273, 0.0
        %v1591 = vmax.f32 %v1275, 0.0
        %v1592 = vmax.f32 %v1277, 0.0
        %v1593 = vmax.f32 %v1281, 0.0
        %v1594 = vmax.f32 %v1283, 0.0
        %v1595 = vmax.f32 %v1285, 0.0
        %v1596 = vmax.f32 %v1287, 0.0
        %v1597 = vmax.f32 %v1291, 0.0
        %v1598 = vmax.f32 %v1293, 0.0
        %v1599 = vmax.f32 %v1295, 0.0
        %v1600 = vmax.f32 %v1297, 0.0
        %v1601 = vmax.f32 %v1301, 0.0
        %v1602 = vmax.f32 %v1303, 0.0
        %v1603 = vmax.f32 %v1305, 0.0
        %v1604 = vmax.f32 %v1307, 0.0
        %v1605 = vmax.f32 %v1311, 0.0
        %v1606 = vmax.f32 %v1313, 0.0
        %v1607 = vmax.f32 %v1315, 0.0
        %v1608 = vmax.f32 %v1317, 0.0
        %v1609 = vmax.f32 %v1321, 0.0
        %v1610 = vmax.f32 %v1323, 0.0
        %v1611 = vmax.f32 %v1325, 0.0
        %v1612 = vmax.f32 %v1327, 0.0
        %v1613 = vmax.f32 %v1331, 0.0
        %v1614 = vmax.f32 %v1333, 0.0
        %v1615 = vmax.f32 %v1335, 0.0
        %v1616 = vmax.f32 %v1337, 0.0
        %v1617 = vmax.f32 %v1341, 0.0
        %v1618 = vmax.f32 %v1343, 0.0
        %v1619 = vmax.f32 %v1345, 0.0
        %v1620 = vmax.f32 %v1347, 0.0
        %v1621 = vmax.f32 %v1351, 0.0
        %v1622 = vmax.f32 %v1353, 0.0
        %v1623 = vmax.f32 %v1355, 0.0
        %v1624 = vmax.f32 %v1357, 0.0
        %v1625 = vmax.f32 %v1361, 0.0
        %v1626 = vmax.f32 %v1363, 0.0
        %v1627 = vmax.f32 %v1365, 0.0
        %v1628 = vmax.f32 %v1367, 0.0
        %v1629 = vmax.f32 %v1371, 0.0
        %v1630 = vmax.f32 %v1373, 0.0
        %v1631 = vmax.f32 %v1375, 0.0
        %v1632 = vmax.f32 %v1377, 0.0
        %v1633 = vmax.f32 %v1381, 0.0
        %v1634 = vmax.f32 %v1383, 0.0
        %v1635 = vmax.f32 %v1385, 0.0
        %v1636 = vmax.f32 %v1387, 0.0
        %v1637 = vmax.f32 %v1391, 0.0
        %v1638 = vmax.f32 %v1393, 0.0
        %v1639 = vmax.f32 %v1395, 0.0
        %v1640 = vmax.f32 %v1397, 0.0
        %v1641 = vmax.f32 %v1401, 0.0
        %v1642 = vmax.f32 %v1403, 0.0
        %v1643 = vmax.f32 %v1405, 0.0
        %v1644 = vmax.f32 %v1407, 0.0
        %v1645 = vmax.f32 %v1411, 0.0
        %v1646 = vmax.f32 %v1413, 0.0
        %v1647 = vmax.f32 %v1415, 0.0
        %v1648 = vmax.f32 %v1417, 0.0
        %v1649 = vmax.f32 %v1421, 0.0
        %v1650 = vmax.f32 %v1423, 0.0
        %v1651 = vmax.f32 %v1425, 0.0
        %v1652 = vmax.f32 %v1427, 0.0
        %v1653 = vmax.f32 %v1431, 0.0
        %v1654 = vmax.f32 %v1433, 0.0
        %v1655 = vmax.f32 %v1435, 0.0
        %v1656 = vmax.f32 %v1437, 0.0
        %v1657 = vmax.f32 %v1441, 0.0
        %v1658 = vmax.f32 %v1443, 0.0
        %v1659 = vmax.f32 %v1445, 0.0
        %v1660 = vmax.f32 %v1447, 0.0
        %v1661 = vmax.f32 %v1451, 0.0
        %v1662 = vmax.f32 %v1453, 0.0
        %v1663 = vmax.f32 %v1455, 0.0
        %v1664 = vmax.f32 %v1457, 0.0
        %v1665 = vmax.f32 %v1461, 0.0
        %v1666 = vmax.f32 %v1463, 0.0
        %v1667 = vmax.f32 %v1465, 0.0
        %v1668 = vmax.f32 %v1467, 0.0
        %v1669 = vmax.f32 %v1471, 0.0
        %v1670 = vmax.f32 %v1473, 0.0
        %v1671 = vmax.f32 %v1475, 0.0
        %v1672 = vmax.f32 %v1477, 0.0
        %v1673 = vmax.f32 %v1481, 0.0
        %v1674 = vmax.f32 %v1483, 0.0
        %v1675 = vmax.f32 %v1485, 0.0
        %v1676 = vmax.f32 %v1487, 0.0
        %v1677 = vmax.f32 %v1491, 0.0
        %v1678 = vmax.f32 %v1493, 0.0
        %v1679 = vmax.f32 %v1495, 0.0
        %v1680 = vmax.f32 %v1497, 0.0
        %v1681 = vmax.f32 %v1501, 0.0
        %v1682 = vmax.f32 %v1503, 0.0
        %v1683 = vmax.f32 %v1505, 0.0
        %v1684 = vmax.f32 %v1507, 0.0
        %v1685 = vmax.f32 %v1511, 0.0
        %v1686 = vmax.f32 %v1513, 0.0
        %v1687 = vmax.f32 %v1515, 0.0
        %v1688 = vmax.f32 %v1517, 0.0
        %v1689 = vmax.f32 %v1521, 0.0
        %v1690 = vmax.f32 %v1523, 0.0
        %v1691 = vmax.f32 %v1525, 0.0
        %v1692 = vmax.f32 %v1527, 0.0
        %v1693 = vmax.f32 %v1531, 0.0
        %v1694 = vmax.f32 %v1533, 0.0
        %v1695 = vmax.f32 %v1535, 0.0
        %v1696 = vmax.f32 %v1537, 0.0
        %v1697 = vmax.f32 %v1541, 0.0
        %v1698 = vmax.f32 %v1543, 0.0
        %v1699 = vmax.f32 %v1545, 0.0
        %v1700 = vmax.f32 %v1547, 0.0
        %v1701 = vmax.f32 %v1551, 0.0
        %v1702 = vmax.f32 %v1553, 0.0
        %v1703 = vmax.f32 %v1555, 0.0
        %v1704 = vmax.f32 %v1557, 0.0
        %v1705 = vmax.f32 %v1561, 0.0
        %v1706 = vmax.f32 %v1563, 0.0
        %v1707 = vmax.f32 %v1565, 0.0
        %v1708 = vmax.f32 %v1567, 0.0
        %v1709 = vmax.f32 %v1571, 0.0
        %v1710 = vmax.f32 %v1573, 0.0
        %v1711 = vmax.f32 %v1575, 0.0
        %v1712 = vmax.f32 %v1577, 0.0
        %v1713 = vmax.f32 %v1581, 0.0
        %v1714 = vmax.f32 %v1583, 0.0
        %v1715 = vmax.f32 %v1585, 0.0
        %v1716 = vmax.f32 %v1587, 0.0
        %v1717 = vadd.f32 %v1589, %v1590
        %1718 = vadd.xlane.f32.xlu0 %v1717
        %v1719 = vpop.xlane.xlu0 %1718
        %v1720 = vadd.f32 %v1591, %v1592
        %1721 = vadd.xlane.f32.xlu0 %v1720
        %v1722 = vpop.xlane.xlu0 %1721
        %v1723 = vadd.f32 %v1593, %v1594
        %1724 = vadd.xlane.f32.xlu0 %v1723
        %v1725 = vpop.xlane.xlu0 %1724
        %v1726 = vadd.f32 %v1595, %v1596
        %1727 = vadd.xlane.f32.xlu0 %v1726
        %v1728 = vpop.xlane.xlu0 %1727
        %v1729 = vadd.f32 %v1597, %v1598
        %1730 = vadd.xlane.f32.xlu0 %v1729
        %v1731 = vpop.xlane.xlu0 %1730
        %v1732 = vadd.f32 %v1599, %v1600
        %1733 = vadd.xlane.f32.xlu0 %v1732
        %v1734 = vpop.xlane.xlu0 %1733
        %v1735 = vadd.f32 %v1601, %v1602
        %1736 = vadd.xlane.f32.xlu0 %v1735
        %v1737 = vpop.xlane.xlu0 %1736
        %v1738 = vadd.f32 %v1603, %v1604
        %1739 = vadd.xlane.f32.xlu0 %v1738
        %v1740 = vpop.xlane.xlu0 %1739
        %v1741 = vadd.f32 %v1605, %v1606
        %1742 = vadd.xlane.f32.xlu0 %v1741
        %v1743 = vpop.xlane.xlu0 %1742
        %v1744 = vadd.f32 %v1607, %v1608
        %1745 = vadd.xlane.f32.xlu0 %v1744
        %v1746 = vpop.xlane.xlu0 %1745
        %v1747 = vadd.f32 %v1609, %v1610
        %1748 = vadd.xlane.f32.xlu0 %v1747
        %v1749 = vpop.xlane.xlu0 %1748
        %v1750 = vadd.f32 %v1611, %v1612
        %1751 = vadd.xlane.f32.xlu0 %v1750
        %v1752 = vpop.xlane.xlu0 %1751
        %v1753 = vadd.f32 %v1613, %v1614
        %1754 = vadd.xlane.f32.xlu0 %v1753
        %v1755 = vpop.xlane.xlu0 %1754
        %v1756 = vadd.f32 %v1615, %v1616
        %1757 = vadd.xlane.f32.xlu0 %v1756
        %v1758 = vpop.xlane.xlu0 %1757
        %v1759 = vadd.f32 %v1617, %v1618
        %1760 = vadd.xlane.f32.xlu0 %v1759
        %v1761 = vpop.xlane.xlu0 %1760
        %v1762 = vadd.f32 %v1619, %v1620
        %1763 = vadd.xlane.f32.xlu0 %v1762
        %v1764 = vpop.xlane.xlu0 %1763
        %v1765 = vadd.f32 %v1621, %v1622
        %1766 = vadd.xlane.f32.xlu0 %v1765
        %v1767 = vpop.xlane.xlu0 %1766
        %v1768 = vadd.f32 %v1623, %v1624
        %1769 = vadd.xlane.f32.xlu0 %v1768
        %v1770 = vpop.xlane.xlu0 %1769
        %v1771 = vadd.f32 %v1625, %v1626
        %1772 = vadd.xlane.f32.xlu0 %v1771
        %v1773 = vpop.xlane.xlu0 %1772
        %v1774 = vadd.f32 %v1627, %v1628
        %1775 = vadd.xlane.f32.xlu0 %v1774
        %v1776 = vpop.xlane.xlu0 %1775
        %v1777 = vadd.f32 %v1629, %v1630
        %1778 = vadd.xlane.f32.xlu0 %v1777
        %v1779 = vpop.xlane.xlu0 %1778
        %v1780 = vadd.f32 %v1631, %v1632
        %1781 = vadd.xlane.f32.xlu0 %v1780
        %v1782 = vpop.xlane.xlu0 %1781
        %v1783 = vadd.f32 %v1633, %v1634
        %1784 = vadd.xlane.f32.xlu0 %v1783
        %v1785 = vpop.xlane.xlu0 %1784
        %v1786 = vadd.f32 %v1635, %v1636
        %1787 = vadd.xlane.f32.xlu0 %v1786
        %v1788 = vpop.xlane.xlu0 %1787
        %v1789 = vadd.f32 %v1637, %v1638
        %1790 = vadd.xlane.f32.xlu0 %v1789
        %v1791 = vpop.xlane.xlu0 %1790
        %v1792 = vadd.f32 %v1639, %v1640
        %1793 = vadd.xlane.f32.xlu0 %v1792
        %v1794 = vpop.xlane.xlu0 %1793
        %v1795 = vadd.f32 %v1641, %v1642
        %1796 = vadd.xlane.f32.xlu0 %v1795
        %v1797 = vpop.xlane.xlu0 %1796
        %v1798 = vadd.f32 %v1643, %v1644
        %1799 = vadd.xlane.f32.xlu0 %v1798
        %v1800 = vpop.xlane.xlu0 %1799
        %v1801 = vadd.f32 %v1645, %v1646
        %1802 = vadd.xlane.f32.xlu0 %v1801
        %v1803 = vpop.xlane.xlu0 %1802
        %v1804 = vadd.f32 %v1647, %v1648
        %1805 = vadd.xlane.f32.xlu0 %v1804
        %v1806 = vpop.xlane.xlu0 %1805
        %v1807 = vadd.f32 %v1649, %v1650
        %1808 = vadd.xlane.f32.xlu0 %v1807
        %v1809 = vpop.xlane.xlu0 %1808
        %v1810 = vadd.f32 %v1651, %v1652
        %1811 = vadd.xlane.f32.xlu0 %v1810
        %v1812 = vpop.xlane.xlu0 %1811
        %v1813 = vadd.f32 %v1653, %v1654
        %1814 = vadd.xlane.f32.xlu0 %v1813
        %v1815 = vpop.xlane.xlu0 %1814
        %v1816 = vadd.f32 %v1655, %v1656
        %1817 = vadd.xlane.f32.xlu0 %v1816
        %v1818 = vpop.xlane.xlu0 %1817
        %v1819 = vadd.f32 %v1657, %v1658
        %1820 = vadd.xlane.f32.xlu0 %v1819
        %v1821 = vpop.xlane.xlu0 %1820
        %v1822 = vadd.f32 %v1659, %v1660
        %1823 = vadd.xlane.f32.xlu0 %v1822
        %v1824 = vpop.xlane.xlu0 %1823
        %v1825 = vadd.f32 %v1661, %v1662
        %1826 = vadd.xlane.f32.xlu0 %v1825
        %v1827 = vpop.xlane.xlu0 %1826
        %v1828 = vadd.f32 %v1663, %v1664
        %1829 = vadd.xlane.f32.xlu0 %v1828
        %v1830 = vpop.xlane.xlu0 %1829
        %v1831 = vadd.f32 %v1665, %v1666
        %1832 = vadd.xlane.f32.xlu0 %v1831
        %v1833 = vpop.xlane.xlu0 %1832
        %v1834 = vadd.f32 %v1667, %v1668
        %1835 = vadd.xlane.f32.xlu0 %v1834
        %v1836 = vpop.xlane.xlu0 %1835
        %v1837 = vadd.f32 %v1669, %v1670
        %1838 = vadd.xlane.f32.xlu0 %v1837
        %v1839 = vpop.xlane.xlu0 %1838
        %v1840 = vadd.f32 %v1671, %v1672
        %1841 = vadd.xlane.f32.xlu0 %v1840
        %v1842 = vpop.xlane.xlu0 %1841
        %v1843 = vadd.f32 %v1673, %v1674
        %1844 = vadd.xlane.f32.xlu0 %v1843
        %v1845 = vpop.xlane.xlu0 %1844
        %v1846 = vadd.f32 %v1675, %v1676
        %1847 = vadd.xlane.f32.xlu0 %v1846
        %v1848 = vpop.xlane.xlu0 %1847
        %v1849 = vadd.f32 %v1677, %v1678
        %1850 = vadd.xlane.f32.xlu0 %v1849
        %v1851 = vpop.xlane.xlu0 %1850
        %v1852 = vadd.f32 %v1679, %v1680
        %1853 = vadd.xlane.f32.xlu0 %v1852
        %v1854 = vpop.xlane.xlu0 %1853
        %v1855 = vadd.f32 %v1681, %v1682
        %1856 = vadd.xlane.f32.xlu0 %v1855
        %v1857 = vpop.xlane.xlu0 %1856
        %v1858 = vadd.f32 %v1683, %v1684
        %1859 = vadd.xlane.f32.xlu0 %v1858
        %v1860 = vpop.xlane.xlu0 %1859
        %v1861 = vadd.f32 %v1685, %v1686
        %1862 = vadd.xlane.f32.xlu0 %v1861
        %v1863 = vpop.xlane.xlu0 %1862
        %v1864 = vadd.f32 %v1687, %v1688
        %1865 = vadd.xlane.f32.xlu0 %v1864
        %v1866 = vpop.xlane.xlu0 %1865
        %v1867 = vadd.f32 %v1689, %v1690
        %1868 = vadd.xlane.f32.xlu0 %v1867
        %v1869 = vpop.xlane.xlu0 %1868
        %v1870 = vadd.f32 %v1691, %v1692
        %1871 = vadd.xlane.f32.xlu0 %v1870
        %v1872 = vpop.xlane.xlu0 %1871
        %v1873 = vadd.f32 %v1693, %v1694
        %1874 = vadd.xlane.f32.xlu0 %v1873
        %v1875 = vpop.xlane.xlu0 %1874
        %v1876 = vadd.f32 %v1695, %v1696
        %1877 = vadd.xlane.f32.xlu0 %v1876
        %v1878 = vpop.xlane.xlu0 %1877
        %v1879 = vadd.f32 %v1697, %v1698
        %1880 = vadd.xlane.f32.xlu0 %v1879
        %v1881 = vpop.xlane.xlu0 %1880
        %v1882 = vadd.f32 %v1699, %v1700
        %1883 = vadd.xlane.f32.xlu0 %v1882
        %v1884 = vpop.xlane.xlu0 %1883
        %v1885 = vadd.f32 %v1701, %v1702
        %1886 = vadd.xlane.f32.xlu0 %v1885
        %v1887 = vpop.xlane.xlu0 %1886
        %v1888 = vadd.f32 %v1703, %v1704
        %1889 = vadd.xlane.f32.xlu0 %v1888
        %v1890 = vpop.xlane.xlu0 %1889
        %v1891 = vadd.f32 %v1705, %v1706
        %1892 = vadd.xlane.f32.xlu0 %v1891
        %v1893 = vpop.xlane.xlu0 %1892
        %v1894 = vadd.f32 %v1707, %v1708
        %1895 = vadd.xlane.f32.xlu0 %v1894
        %v1896 = vpop.xlane.xlu0 %1895
        %v1897 = vadd.f32 %v1709, %v1710
        %1898 = vadd.xlane.f32.xlu0 %v1897
        %v1899 = vpop.xlane.xlu0 %1898
        %v1900 = vadd.f32 %v1711, %v1712
        %1901 = vadd.xlane.f32.xlu0 %v1900
        %v1902 = vpop.xlane.xlu0 %1901
        %v1903 = vadd.f32 %v1713, %v1714
        %1904 = vadd.xlane.f32.xlu0 %v1903
        %v1905 = vpop.xlane.xlu0 %1904
        %v1906 = vadd.f32 %v1715, %v1716
        %1907 = vadd.xlane.f32.xlu0 %v1906
        %v1908 = vpop.xlane.xlu0 %1907
        %v1909 = vadd.f32 %v575, %v1719
        %v1910 = vadd.f32 %v576, %v1722
        %v1911 = vadd.f32 %v577, %v1725
        %v1912 = vadd.f32 %v578, %v1728
        %v1913 = vadd.f32 %v579, %v1731
        %v1914 = vadd.f32 %v580, %v1734
        %v1915 = vadd.f32 %v581, %v1737
        %v1916 = vadd.f32 %v582, %v1740
        %v1917 = vadd.f32 %v583, %v1743
        %v1918 = vadd.f32 %v584, %v1746
        %v1919 = vadd.f32 %v585, %v1749
        %v1920 = vadd.f32 %v586, %v1752
        %v1921 = vadd.f32 %v587, %v1755
        %v1922 = vadd.f32 %v588, %v1758
        %v1923 = vadd.f32 %v589, %v1761
        %v1924 = vadd.f32 %v590, %v1764
        %v1925 = vadd.f32 %v591, %v1767
        %v1926 = vadd.f32 %v592, %v1770
        %v1927 = vadd.f32 %v593, %v1773
        %v1928 = vadd.f32 %v594, %v1776
        %v1929 = vadd.f32 %v595, %v1779
        %v1930 = vadd.f32 %v596, %v1782
        %v1931 = vadd.f32 %v597, %v1785
        %v1932 = vadd.f32 %v598, %v1788
        %v1933 = vadd.f32 %v599, %v1791
        %v1934 = vadd.f32 %v600, %v1794
        %v1935 = vadd.f32 %v601, %v1797
        %v1936 = vadd.f32 %v602, %v1800
        %v1937 = vadd.f32 %v603, %v1803
        %v1938 = vadd.f32 %v604, %v1806
        %v1939 = vadd.f32 %v605, %v1809
        %v1940 = vadd.f32 %v606, %v1812
        %v1941 = vadd.f32 %v607, %v1815
        %v1942 = vadd.f32 %v608, %v1818
        %v1943 = vadd.f32 %v609, %v1821
        %v1944 = vadd.f32 %v610, %v1824
        %v1945 = vadd.f32 %v611, %v1827
        %v1946 = vadd.f32 %v612, %v1830
        %v1947 = vadd.f32 %v613, %v1833
        %v1948 = vadd.f32 %v614, %v1836
        %v1949 = vadd.f32 %v615, %v1839
        %v1950 = vadd.f32 %v616, %v1842
        %v1951 = vadd.f32 %v617, %v1845
        %v1952 = vadd.f32 %v618, %v1848
        %v1953 = vadd.f32 %v619, %v1851
        %v1954 = vadd.f32 %v620, %v1854
        %v1955 = vadd.f32 %v621, %v1857
        %v1956 = vadd.f32 %v622, %v1860
        %v1957 = vadd.f32 %v623, %v1863
        %v1958 = vadd.f32 %v624, %v1866
        %v1959 = vadd.f32 %v625, %v1869
        %v1960 = vadd.f32 %v626, %v1872
        %v1961 = vadd.f32 %v627, %v1875
        %v1962 = vadd.f32 %v628, %v1878
        %v1963 = vadd.f32 %v629, %v1881
        %v1964 = vadd.f32 %v630, %v1884
        %v1965 = vadd.f32 %v631, %v1887
        %v1966 = vadd.f32 %v632, %v1890
        %v1967 = vadd.f32 %v633, %v1893
        %v1968 = vadd.f32 %v634, %v1896
        %v1969 = vadd.f32 %v635, %v1899
        %v1970 = vadd.f32 %v636, %v1902
        %v1971 = vadd.f32 %v637, %v1905
        %v1972 = vadd.f32 %v638, %v1908
        %vm1973 = vcmask 7168
        %1974 = vst.msk [vmem:[#allocation2] sm:$0xff] %vm1973, %v1909
        %1975 = vst.msk [vmem:[#allocation2 + $0x8] sm:$0xff] %vm1973, %v1910
        %1976 = vst.msk [vmem:[#allocation2 + $0x10] sm:$0xff] %vm1973, %v1911
        %1977 = vst.msk [vmem:[#allocation2 + $0x18] sm:$0xff] %vm1973, %v1912
        %1978 = vst.msk [vmem:[#allocation2 + $0x20] sm:$0xff] %vm1973, %v1913
        %1979 = vst.msk [vmem:[#allocation2 + $0x28] sm:$0xff] %vm1973, %v1914
        %1980 = vst.msk [vmem:[#allocation2 + $0x30] sm:$0xff] %vm1973, %v1915
        %1981 = vst.msk [vmem:[#allocation2 + $0x38] sm:$0xff] %vm1973, %v1916
        %1982 = vst.msk [vmem:[#allocation2 + $0x40] sm:$0xff] %vm1973, %v1917
        %1983 = vst.msk [vmem:[#allocation2 + $0x48] sm:$0xff] %vm1973, %v1918
        %1984 = vst.msk [vmem:[#allocation2 + $0x50] sm:$0xff] %vm1973, %v1919
        %1985 = vst.msk [vmem:[#allocation2 + $0x58] sm:$0xff] %vm1973, %v1920
        %1986 = vst.msk [vmem:[#allocation2 + $0x60] sm:$0xff] %vm1973, %v1921
        %1987 = vst.msk [vmem:[#allocation2 + $0x68] sm:$0xff] %vm1973, %v1922
        %1988 = vst.msk [vmem:[#allocation2 + $0x70] sm:$0xff] %vm1973, %v1923
        %1989 = vst.msk [vmem:[#allocation2 + $0x78] sm:$0xff] %vm1973, %v1924
        %1990 = vst.msk [vmem:[#allocation2 + $0x80] sm:$0xff] %vm1973, %v1925
        %1991 = vst.msk [vmem:[#allocation2 + $0x88] sm:$0xff] %vm1973, %v1926
        %1992 = vst.msk [vmem:[#allocation2 + $0x90] sm:$0xff] %vm1973, %v1927
        %1993 = vst.msk [vmem:[#allocation2 + $0x98] sm:$0xff] %vm1973, %v1928
        %1994 = vst.msk [vmem:[#allocation2 + $0xa0] sm:$0xff] %vm1973, %v1929
        %1995 = vst.msk [vmem:[#allocation2 + $0xa8] sm:$0xff] %vm1973, %v1930
        %1996 = vst.msk [vmem:[#allocation2 + $0xb0] sm:$0xff] %vm1973, %v1931
        %1997 = vst.msk [vmem:[#allocation2 + $0xb8] sm:$0xff] %vm1973, %v1932
        %1998 = vst.msk [vmem:[#allocation2 + $0xc0] sm:$0xff] %vm1973, %v1933
        %1999 = vst.msk [vmem:[#allocation2 + $0xc8] sm:$0xff] %vm1973, %v1934
        %2000 = vst.msk [vmem:[#allocation2 + $0xd0] sm:$0xff] %vm1973, %v1935
        %2001 = vst.msk [vmem:[#allocation2 + $0xd8] sm:$0xff] %vm1973, %v1936
        %2002 = vst.msk [vmem:[#allocation2 + $0xe0] sm:$0xff] %vm1973, %v1937
        %2003 = vst.msk [vmem:[#allocation2 + $0xe8] sm:$0xff] %vm1973, %v1938
        %2004 = vst.msk [vmem:[#allocation2 + $0xf0] sm:$0xff] %vm1973, %v1939
        %2005 = vst.msk [vmem:[#allocation2 + $0xf8] sm:$0xff] %vm1973, %v1940
        %2006 = vst.msk [vmem:[#allocation2 + $0x100] sm:$0xff] %vm1973, %v1941
        %2007 = vst.msk [vmem:[#allocation2 + $0x108] sm:$0xff] %vm1973, %v1942
        %2008 = vst.msk [vmem:[#allocation2 + $0x110] sm:$0xff] %vm1973, %v1943
        %2009 = vst.msk [vmem:[#allocation2 + $0x118] sm:$0xff] %vm1973, %v1944
        %2010 = vst.msk [vmem:[#allocation2 + $0x120] sm:$0xff] %vm1973, %v1945
        %2011 = vst.msk [vmem:[#allocation2 + $0x128] sm:$0xff] %vm1973, %v1946
        %2012 = vst.msk [vmem:[#allocation2 + $0x130] sm:$0xff] %vm1973, %v1947
        %2013 = vst.msk [vmem:[#allocation2 + $0x138] sm:$0xff] %vm1973, %v1948
        %2014 = vst.msk [vmem:[#allocation2 + $0x140] sm:$0xff] %vm1973, %v1949
        %2015 = vst.msk [vmem:[#allocation2 + $0x148] sm:$0xff] %vm1973, %v1950
        %2016 = vst.msk [vmem:[#allocation2 + $0x150] sm:$0xff] %vm1973, %v1951
        %2017 = vst.msk [vmem:[#allocation2 + $0x158] sm:$0xff] %vm1973, %v1952
        %2018 = vst.msk [vmem:[#allocation2 + $0x160] sm:$0xff] %vm1973, %v1953
        %2019 = vst.msk [vmem:[#allocation2 + $0x168] sm:$0xff] %vm1973, %v1954
        %2020 = vst.msk [vmem:[#allocation2 + $0x170] sm:$0xff] %vm1973, %v1955
        %2021 = vst.msk [vmem:[#allocation2 + $0x178] sm:$0xff] %vm1973, %v1956
        %2022 = vst.msk [vmem:[#allocation2 + $0x180] sm:$0xff] %vm1973, %v1957
        %2023 = vst.msk [vmem:[#allocation2 + $0x188] sm:$0xff] %vm1973, %v1958
        %2024 = vst.msk [vmem:[#allocation2 + $0x190] sm:$0xff] %vm1973, %v1959
        %2025 = vst.msk [vmem:[#allocation2 + $0x198] sm:$0xff] %vm1973, %v1960
        %2026 = vst.msk [vmem:[#allocation2 + $0x1a0] sm:$0xff] %vm1973, %v1961
        %2027 = vst.msk [vmem:[#allocation2 + $0x1a8] sm:$0xff] %vm1973, %v1962
        %2028 = vst.msk [vmem:[#allocation2 + $0x1b0] sm:$0xff] %vm1973, %v1963
        %2029 = vst.msk [vmem:[#allocation2 + $0x1b8] sm:$0xff] %vm1973, %v1964
        %2030 = vst.msk [vmem:[#allocation2 + $0x1c0] sm:$0xff] %vm1973, %v1965
        %2031 = vst.msk [vmem:[#allocation2 + $0x1c8] sm:$0xff] %vm1973, %v1966
        %2032 = vst.msk [vmem:[#allocation2 + $0x1d0] sm:$0xff] %vm1973, %v1967
        %2033 = vst.msk [vmem:[#allocation2 + $0x1d8] sm:$0xff] %vm1973, %v1968
        %2034 = vst.msk [vmem:[#allocation2 + $0x1e0] sm:$0xff] %vm1973, %v1969
        %2035 = vst.msk [vmem:[#allocation2 + $0x1e8] sm:$0xff] %vm1973, %v1970
        %2036 = vst.msk [vmem:[#allocation2 + $0x1f0] sm:$0xff] %vm1973, %v1971
        %2037 = vst.msk [vmem:[#allocation2 + $0x1f8] sm:$0xff] %vm1973, %v1972
        %v2038 = vld [vmem:[#allocation3] sm:$0xff]
        %v2039 = vld [vmem:[#allocation3 + $0x8] sm:$0xff]
        %v2040 = vld [vmem:[#allocation3 + $0x10] sm:$0xff]
        %v2041 = vld [vmem:[#allocation3 + $0x18] sm:$0xff]
        %v2042 = vld [vmem:[#allocation3 + $0x20] sm:$0xff]
        %v2043 = vld [vmem:[#allocation3 + $0x28] sm:$0xff]
        %v2044 = vld [vmem:[#allocation3 + $0x30] sm:$0xff]
        %v2045 = vld [vmem:[#allocation3 + $0x38] sm:$0xff]
        %v2046 = vld [vmem:[#allocation3 + $0x40] sm:$0xff]
        %v2047 = vld [vmem:[#allocation3 + $0x48] sm:$0xff]
        %v2048 = vld [vmem:[#allocation3 + $0x50] sm:$0xff]
        %v2049 = vld [vmem:[#allocation3 + $0x58] sm:$0xff]
        %v2050 = vld [vmem:[#allocation3 + $0x60] sm:$0xff]
        %v2051 = vld [vmem:[#allocation3 + $0x68] sm:$0xff]
        %v2052 = vld [vmem:[#allocation3 + $0x70] sm:$0xff]
        %v2053 = vld [vmem:[#allocation3 + $0x78] sm:$0xff]
        %v2054 = vld [vmem:[#allocation3 + $0x80] sm:$0xff]
        %v2055 = vld [vmem:[#allocation3 + $0x88] sm:$0xff]
        %v2056 = vld [vmem:[#allocation3 + $0x90] sm:$0xff]
        %v2057 = vld [vmem:[#allocation3 + $0x98] sm:$0xff]
        %v2058 = vld [vmem:[#allocation3 + $0xa0] sm:$0xff]
        %v2059 = vld [vmem:[#allocation3 + $0xa8] sm:$0xff]
        %v2060 = vld [vmem:[#allocation3 + $0xb0] sm:$0xff]
        %v2061 = vld [vmem:[#allocation3 + $0xb8] sm:$0xff]
        %v2062 = vld [vmem:[#allocation3 + $0xc0] sm:$0xff]
        %v2063 = vld [vmem:[#allocation3 + $0xc8] sm:$0xff]
        %v2064 = vld [vmem:[#allocation3 + $0xd0] sm:$0xff]
        %v2065 = vld [vmem:[#allocation3 + $0xd8] sm:$0xff]
        %v2066 = vld [vmem:[#allocation3 + $0xe0] sm:$0xff]
        %v2067 = vld [vmem:[#allocation3 + $0xe8] sm:$0xff]
        %v2068 = vld [vmem:[#allocation3 + $0xf0] sm:$0xff]
        %v2069 = vld [vmem:[#allocation3 + $0xf8] sm:$0xff]
        %v2070 = vld [vmem:[#allocation3 + $0x100] sm:$0xff]
        %v2071 = vld [vmem:[#allocation3 + $0x108] sm:$0xff]
        %v2072 = vld [vmem:[#allocation3 + $0x110] sm:$0xff]
        %v2073 = vld [vmem:[#allocation3 + $0x118] sm:$0xff]
        %v2074 = vld [vmem:[#allocation3 + $0x120] sm:$0xff]
        %v2075 = vld [vmem:[#allocation3 + $0x128] sm:$0xff]
        %v2076 = vld [vmem:[#allocation3 + $0x130] sm:$0xff]
        %v2077 = vld [vmem:[#allocation3 + $0x138] sm:$0xff]
        %v2078 = vld [vmem:[#allocation3 + $0x140] sm:$0xff]
        %v2079 = vld [vmem:[#allocation3 + $0x148] sm:$0xff]
        %v2080 = vld [vmem:[#allocation3 + $0x150] sm:$0xff]
        %v2081 = vld [vmem:[#allocation3 + $0x158] sm:$0xff]
        %v2082 = vld [vmem:[#allocation3 + $0x160] sm:$0xff]
        %v2083 = vld [vmem:[#allocation3 + $0x168] sm:$0xff]
        %v2084 = vld [vmem:[#allocation3 + $0x170] sm:$0xff]
        %v2085 = vld [vmem:[#allocation3 + $0x178] sm:$0xff]
        %v2086 = vld [vmem:[#allocation3 + $0x180] sm:$0xff]
        %v2087 = vld [vmem:[#allocation3 + $0x188] sm:$0xff]
        %v2088 = vld [vmem:[#allocation3 + $0x190] sm:$0xff]
        %v2089 = vld [vmem:[#allocation3 + $0x198] sm:$0xff]
        %v2090 = vld [vmem:[#allocation3 + $0x1a0] sm:$0xff]
        %v2091 = vld [vmem:[#allocation3 + $0x1a8] sm:$0xff]
        %v2092 = vld [vmem:[#allocation3 + $0x1b0] sm:$0xff]
        %v2093 = vld [vmem:[#allocation3 + $0x1b8] sm:$0xff]
        %v2094 = vld [vmem:[#allocation3 + $0x1c0] sm:$0xff]
        %v2095 = vld [vmem:[#allocation3 + $0x1c8] sm:$0xff]
        %v2096 = vld [vmem:[#allocation3 + $0x1d0] sm:$0xff]
        %v2097 = vld [vmem:[#allocation3 + $0x1d8] sm:$0xff]
        %v2098 = vld [vmem:[#allocation3 + $0x1e0] sm:$0xff]
        %v2099 = vld [vmem:[#allocation3 + $0x1e8] sm:$0xff]
        %v2100 = vld [vmem:[#allocation3 + $0x1f0] sm:$0xff]
        %v2101 = vld [vmem:[#allocation3 + $0x1f8] sm:$0xff]
        %v2102 = vld [vmem:[%s311] sm:$0xf]
        %v2105 = vunpack.c.l.s4 1983009808
        %v2106 = vunpack.c.0.s8 %v2105
        %v2107 = vlaneseq
        %v2108 = vshrl.u32 %v2107, 7
        %v2109 = vsub.s32 %v2106, %v2108
        %v2110 = vrot.slane %v2102, %v2109
        %v2111 = vcombine.high %v2110, %v2110
        %v2113 = vand.u32 %v2110, %v1229
        %v2116 = vand.u32 %v2111, %v1229
        %2118 = vmatprep.subr.bf16.mxu0 %v2116
        %2119 = vmatpush1.bf16.msra.mxu0 %v2113
        %2120 = vmatprep.subr.bf16.mxu0 0
        %2121 = vmatpush1.bf16.msra.mxu0 0
        %2122 = vmatprep.subr.bf16.mxu0 0
        %2123 = vmatpush1.bf16.msra.mxu0 0
        %2124 = vmatprep.subr.bf16.mxu0 0
        %2125 = vmatpush1.bf16.msra.mxu0 0
        %2126 = vmatprep.subr.bf16.mxu0 0
        %2127 = vmatpush1.bf16.msra.mxu0 0
        %2128 = vmatprep.subr.bf16.mxu0 0
        %2129 = vmatpush1.bf16.msra.mxu0 0
        %2130 = vmatprep.subr.bf16.mxu0 0
        %2131 = vmatpush1.bf16.msra.mxu0 0
        %2132 = vmatprep.subr.bf16.mxu0 0
        %2133 = vmatpush1.bf16.msra.mxu0 0
        %2134 = vmatprep.subr.bf16.mxu0 0
        %2135 = vmatpush1.bf16.msra.mxu0 0
        %2136 = vmatprep.subr.bf16.mxu0 0
        %2137 = vmatpush1.bf16.msra.mxu0 0
        %2138 = vmatprep.subr.bf16.mxu0 0
        %2139 = vmatpush1.bf16.msra.mxu0 0
        %2140 = vmatprep.subr.bf16.mxu0 0
        %2141 = vmatpush1.bf16.msra.mxu0 0
        %2142 = vmatprep.subr.bf16.mxu0 0
        %2143 = vmatpush1.bf16.msra.mxu0 0
        %2144 = vmatprep.subr.bf16.mxu0 0
        %2145 = vmatpush1.bf16.msra.mxu0 0
        %2146 = vmatprep.subr.bf16.mxu0 0
        %2147 = vmatpush1.bf16.msra.mxu0 0
        %2148 = vmatprep.subr.bf16.mxu0 0
        %2149 = vmatpush1.bf16.msra.mxu0 0
        %2150 = vmatprep.mubr.bf16.mxu0 0
        %2151 = vmatmul.mubr.bf16.gmra.mrb[0].mxu0 %v1131
        %v2152 = vpop.f32.mrb[0].mxu0
        %v2153 = vadd.f32 %v643, %v2152
        %v2154 = vpop.f32.mrb[0].mxu0
        %v2155 = vadd.f32 %v643, %v2154
        %v2156 = vpop.f32.mrb[0].mxu0
        %v2157 = vadd.f32 %v648, %v2156
        %v2158 = vpop.f32.mrb[0].mxu0
        %v2159 = vadd.f32 %v648, %v2158
        %2160 = vmatprep.mubr.bf16.mxu0 0
        %2161 = vmatmul.mubr.bf16.gmra.mrb[0].mxu0 %v1134
        %v2162 = vpop.f32.mrb[0].mxu0
        %v2163 = vadd.f32 %v653, %v2162
        %v2164 = vpop.f32.mrb[0].mxu0
        %v2165 = vadd.f32 %v653, %v2164
        %v2166 = vpop.f32.mrb[0].mxu0
        %v2167 = vadd.f32 %v658, %v2166
        %v2168 = vpop.f32.mrb[0].mxu0
        %v2169 = vadd.f32 %v658, %v2168
        %2170 = vmatprep.mubr.bf16.mxu0 0
        %2171 = vmatmul.mubr.bf16.gmra.mrb[0].mxu0 %v1137
        %v2172 = vpop.f32.mrb[0].mxu0
        %v2173 = vadd.f32 %v663, %v2172
        %v2174 = vpop.f32.mrb[0].mxu0
        %v2175 = vadd.f32 %v663, %v2174
        %v2176 = vpop.f32.mrb[0].mxu0
        %v2177 = vadd.f32 %v668, %v2176
        %v2178 = vpop.f32.mrb[0].mxu0
        %v2179 = vadd.f32 %v668, %v2178
        %2180 = vmatprep.mubr.bf16.mxu0 0
        %2181 = vmatmul.mubr.bf16.gmra.mrb[0].mxu0 %v1140
        %v2182 = vpop.f32.mrb[0].mxu0
        %v2183 = vadd.f32 %v673, %v2182
        %v2184 = vpop.f32.mrb[0].mxu0
        %v2185 = vadd.f32 %v673, %v2184
        %v2186 = vpop.f32.mrb[0].mxu0
        %v2187 = vadd.f32 %v678, %v2186
        %v2188 = vpop.f32.mrb[0].mxu0
        %v2189 = vadd.f32 %v678, %v2188
        %2190 = vmatprep.mubr.bf16.mxu0 0
        %2191 = vmatmul.mubr.bf16.gmra.mrb[0].mxu0 %v1143
        %v2192 = vpop.f32.mrb[0].mxu0
        %v2193 = vadd.f32 %v683, %v2192
        %v2194 = vpop.f32.mrb[0].mxu0
        %v2195 = vadd.f32 %v683, %v2194
        %v2196 = vpop.f32.mrb[0].mxu0
        %v2197 = vadd.f32 %v688, %v2196
        %v2198 = vpop.f32.mrb[0].mxu0
        %v2199 = vadd.f32 %v688, %v2198
        %2200 = vmatprep.mubr.bf16.mxu0 0
        %2201 = vmatmul.mubr.bf16.gmra.mrb[0].mxu0 %v1146
        %v2202 = vpop.f32.mrb[0].mxu0
        %v2203 = vadd.f32 %v693, %v2202
        %v2204 = vpop.f32.mrb[0].mxu0
        %v2205 = vadd.f32 %v693, %v2204
        %v2206 = vpop.f32.mrb[0].mxu0
        %v2207 = vadd.f32 %v698, %v2206
        %v2208 = vpop.f32.mrb[0].mxu0
        %v2209 = vadd.f32 %v698, %v2208
        %2210 = vmatprep.mubr.bf16.mxu0 0
        %2211 = vmatmul.mubr.bf16.gmra.mrb[0].mxu0 %v1149
        %v2212 = vpop.f32.mrb[0].mxu0
        %v2213 = vadd.f32 %v703, %v2212
        %v2214 = vpop.f32.mrb[0].mxu0
        %v2215 = vadd.f32 %v703, %v2214
        %v2216 = vpop.f32.mrb[0].mxu0
        %v2217 = vadd.f32 %v708, %v2216
        %v2218 = vpop.f32.mrb[0].mxu0
        %v2219 = vadd.f32 %v708, %v2218
        %2220 = vmatprep.mubr.bf16.mxu0 0
        %2221 = vmatmul.mubr.bf16.gmra.mrb[0].mxu0 %v1152
        %v2222 = vpop.f32.mrb[0].mxu0
        %v2223 = vadd.f32 %v713, %v2222
        %v2224 = vpop.f32.mrb[0].mxu0
        %v2225 = vadd.f32 %v713, %v2224
        %v2226 = vpop.f32.mrb[0].mxu0
        %v2227 = vadd.f32 %v718, %v2226
        %v2228 = vpop.f32.mrb[0].mxu0
        %v2229 = vadd.f32 %v718, %v2228
        %2230 = vmatprep.mubr.bf16.mxu0 0
        %2231 = vmatmul.mubr.bf16.gmra.mrb[0].mxu0 %v1155
        %v2232 = vpop.f32.mrb[0].mxu0
        %v2233 = vadd.f32 %v723, %v2232
        %v2234 = vpop.f32.mrb[0].mxu0
        %v2235 = vadd.f32 %v723, %v2234
        %v2236 = vpop.f32.mrb[0].mxu0
        %v2237 = vadd.f32 %v728, %v2236
        %v2238 = vpop.f32.mrb[0].mxu0
        %v2239 = vadd.f32 %v728, %v2238
        %2240 = vmatprep.mubr.bf16.mxu0 0
        %2241 = vmatmul.mubr.bf16.gmra.mrb[0].mxu0 %v1158
        %v2242 = vpop.f32.mrb[0].mxu0
        %v2243 = vadd.f32 %v733, %v2242
        %v2244 = vpop.f32.mrb[0].mxu0
        %v2245 = vadd.f32 %v733, %v2244
        %v2246 = vpop.f32.mrb[0].mxu0
        %v2247 = vadd.f32 %v738, %v2246
        %v2248 = vpop.f32.mrb[0].mxu0
        %v2249 = vadd.f32 %v738, %v2248
        %2250 = vmatprep.mubr.bf16.mxu0 0
        %2251 = vmatmul.mubr.bf16.gmra.mrb[0].mxu0 %v1161
        %v2252 = vpop.f32.mrb[0].mxu0
        %v2253 = vadd.f32 %v743, %v2252
        %v2254 = vpop.f32.mrb[0].mxu0
        %v2255 = vadd.f32 %v743, %v2254
        %v2256 = vpop.f32.mrb[0].mxu0
        %v2257 = vadd.f32 %v748, %v2256
        %v2258 = vpop.f32.mrb[0].mxu0
        %v2259 = vadd.f32 %v748, %v2258
        %2260 = vmatprep.mubr.bf16.mxu0 0
        %2261 = vmatmul.mubr.bf16.gmra.mrb[0].mxu0 %v1164
        %v2262 = vpop.f32.mrb[0].mxu0
        %v2263 = vadd.f32 %v753, %v2262
        %v2264 = vpop.f32.mrb[0].mxu0
        %v2265 = vadd.f32 %v753, %v2264
        %v2266 = vpop.f32.mrb[0].mxu0
        %v2267 = vadd.f32 %v758, %v2266
        %v2268 = vpop.f32.mrb[0].mxu0
        %v2269 = vadd.f32 %v758, %v2268
        %2270 = vmatprep.mubr.bf16.mxu0 0
        %2271 = vmatmul.mubr.bf16.gmra.mrb[0].mxu0 %v1167
        %v2272 = vpop.f32.mrb[0].mxu0
        %v2273 = vadd.f32 %v763, %v2272
        %v2274 = vpop.f32.mrb[0].mxu0
        %v2275 = vadd.f32 %v763, %v2274
        %v2276 = vpop.f32.mrb[0].mxu0
        %v2277 = vadd.f32 %v768, %v2276
        %v2278 = vpop.f32.mrb[0].mxu0
        %v2279 = vadd.f32 %v768, %v2278
        %2280 = vmatprep.mubr.bf16.mxu0 0
        %2281 = vmatmul.mubr.bf16.gmra.mrb[0].mxu0 %v1170
        %v2282 = vpop.f32.mrb[0].mxu0
        %v2283 = vadd.f32 %v773, %v2282
        %v2284 = vpop.f32.mrb[0].mxu0
        %v2285 = vadd.f32 %v773, %v2284
        %v2286 = vpop.f32.mrb[0].mxu0
        %v2287 = vadd.f32 %v778, %v2286
        %v2288 = vpop.f32.mrb[0].mxu0
        %v2289 = vadd.f32 %v778, %v2288
        %2290 = vmatprep.mubr.bf16.mxu0 0
        %2291 = vmatmul.mubr.bf16.gmra.mrb[0].mxu0 %v1173
        %v2292 = vpop.f32.mrb[0].mxu0
        %v2293 = vadd.f32 %v783, %v2292
        %v2294 = vpop.f32.mrb[0].mxu0
        %v2295 = vadd.f32 %v783, %v2294
        %v2296 = vpop.f32.mrb[0].mxu0
        %v2297 = vadd.f32 %v788, %v2296
        %v2298 = vpop.f32.mrb[0].mxu0
        %v2299 = vadd.f32 %v788, %v2298
        %2300 = vmatprep.mubr.bf16.mxu0 0
        %2301 = vmatmul.mubr.bf16.gmra.mrb[0].mxu0 %v1176
        %v2302 = vpop.f32.mrb[0].mxu0
        %v2303 = vadd.f32 %v793, %v2302
        %v2304 = vpop.f32.mrb[0].mxu0
        %v2305 = vadd.f32 %v793, %v2304
        %v2306 = vpop.f32.mrb[0].mxu0
        %v2307 = vadd.f32 %v798, %v2306
        %v2308 = vpop.f32.mrb[0].mxu0
        %v2309 = vadd.f32 %v798, %v2308
        %2310 = vmatprep.mubr.bf16.mxu0 0
        %2311 = vmatmul.mubr.bf16.gmra.mrb[0].mxu0 %v1179
        %v2312 = vpop.f32.mrb[0].mxu0
        %v2313 = vadd.f32 %v803, %v2312
        %v2314 = vpop.f32.mrb[0].mxu0
        %v2315 = vadd.f32 %v803, %v2314
        %v2316 = vpop.f32.mrb[0].mxu0
        %v2317 = vadd.f32 %v808, %v2316
        %v2318 = vpop.f32.mrb[0].mxu0
        %v2319 = vadd.f32 %v808, %v2318
        %2320 = vmatprep.mubr.bf16.mxu0 0
        %2321 = vmatmul.mubr.bf16.gmra.mrb[0].mxu0 %v1182
        %v2322 = vpop.f32.mrb[0].mxu0
        %v2323 = vadd.f32 %v813, %v2322
        %v2324 = vpop.f32.mrb[0].mxu0
        %v2325 = vadd.f32 %v813, %v2324
        %v2326 = vpop.f32.mrb[0].mxu0
        %v2327 = vadd.f32 %v818, %v2326
        %v2328 = vpop.f32.mrb[0].mxu0
        %v2329 = vadd.f32 %v818, %v2328
        %2330 = vmatprep.mubr.bf16.mxu0 0
        %2331 = vmatmul.mubr.bf16.gmra.mrb[0].mxu0 %v1185
        %v2332 = vpop.f32.mrb[0].mxu0
        %v2333 = vadd.f32 %v823, %v2332
        %v2334 = vpop.f32.mrb[0].mxu0
        %v2335 = vadd.f32 %v823, %v2334
        %v2336 = vpop.f32.mrb[0].mxu0
        %v2337 = vadd.f32 %v828, %v2336
        %v2338 = vpop.f32.mrb[0].mxu0
        %v2339 = vadd.f32 %v828, %v2338
        %2340 = vmatprep.mubr.bf16.mxu0 0
        %2341 = vmatmul.mubr.bf16.gmra.mrb[0].mxu0 %v1188
        %v2342 = vpop.f32.mrb[0].mxu0
        %v2343 = vadd.f32 %v833, %v2342
        %v2344 = vpop.f32.mrb[0].mxu0
        %v2345 = vadd.f32 %v833, %v2344
        %v2346 = vpop.f32.mrb[0].mxu0
        %v2347 = vadd.f32 %v838, %v2346
        %v2348 = vpop.f32.mrb[0].mxu0
        %v2349 = vadd.f32 %v838, %v2348
        %2350 = vmatprep.mubr.bf16.mxu0 0
        %2351 = vmatmul.mubr.bf16.gmra.mrb[0].mxu0 %v1191
        %v2352 = vpop.f32.mrb[0].mxu0
        %v2353 = vadd.f32 %v843, %v2352
        %v2354 = vpop.f32.mrb[0].mxu0
        %v2355 = vadd.f32 %v843, %v2354
        %v2356 = vpop.f32.mrb[0].mxu0
        %v2357 = vadd.f32 %v848, %v2356
        %v2358 = vpop.f32.mrb[0].mxu0
        %v2359 = vadd.f32 %v848, %v2358
        %2360 = vmatprep.mubr.bf16.mxu0 0
        %2361 = vmatmul.mubr.bf16.gmra.mrb[0].mxu0 %v1194
        %v2362 = vpop.f32.mrb[0].mxu0
        %v2363 = vadd.f32 %v853, %v2362
        %v2364 = vpop.f32.mrb[0].mxu0
        %v2365 = vadd.f32 %v853, %v2364
        %v2366 = vpop.f32.mrb[0].mxu0
        %v2367 = vadd.f32 %v858, %v2366
        %v2368 = vpop.f32.mrb[0].mxu0
        %v2369 = vadd.f32 %v858, %v2368
        %2370 = vmatprep.mubr.bf16.mxu0 0
        %2371 = vmatmul.mubr.bf16.gmra.mrb[0].mxu0 %v1197
        %v2372 = vpop.f32.mrb[0].mxu0
        %v2373 = vadd.f32 %v863, %v2372
        %v2374 = vpop.f32.mrb[0].mxu0
        %v2375 = vadd.f32 %v863, %v2374
        %v2376 = vpop.f32.mrb[0].mxu0
        %v2377 = vadd.f32 %v868, %v2376
        %v2378 = vpop.f32.mrb[0].mxu0
        %v2379 = vadd.f32 %v868, %v2378
        %2380 = vmatprep.mubr.bf16.mxu0 0
        %2381 = vmatmul.mubr.bf16.gmra.mrb[0].mxu0 %v1200
        %v2382 = vpop.f32.mrb[0].mxu0
        %v2383 = vadd.f32 %v873, %v2382
        %v2384 = vpop.f32.mrb[0].mxu0
        %v2385 = vadd.f32 %v873, %v2384
        %v2386 = vpop.f32.mrb[0].mxu0
        %v2387 = vadd.f32 %v878, %v2386
        %v2388 = vpop.f32.mrb[0].mxu0
        %v2389 = vadd.f32 %v878, %v2388
        %2390 = vmatprep.mubr.bf16.mxu0 0
        %2391 = vmatmul.mubr.bf16.gmra.mrb[0].mxu0 %v1203
        %v2392 = vpop.f32.mrb[0].mxu0
        %v2393 = vadd.f32 %v883, %v2392
        %v2394 = vpop.f32.mrb[0].mxu0
        %v2395 = vadd.f32 %v883, %v2394
        %v2396 = vpop.f32.mrb[0].mxu0
        %v2397 = vadd.f32 %v888, %v2396
        %v2398 = vpop.f32.mrb[0].mxu0
        %v2399 = vadd.f32 %v888, %v2398
        %2400 = vmatprep.mubr.bf16.mxu0 0
        %2401 = vmatmul.mubr.bf16.gmra.mrb[0].mxu0 %v1206
        %v2402 = vpop.f32.mrb[0].mxu0
        %v2403 = vadd.f32 %v893, %v2402
        %v2404 = vpop.f32.mrb[0].mxu0
        %v2405 = vadd.f32 %v893, %v2404
        %v2406 = vpop.f32.mrb[0].mxu0
        %v2407 = vadd.f32 %v898, %v2406
        %v2408 = vpop.f32.mrb[0].mxu0
        %v2409 = vadd.f32 %v898, %v2408
        %2410 = vmatprep.mubr.bf16.mxu0 0
        %2411 = vmatmul.mubr.bf16.gmra.mrb[0].mxu0 %v1209
        %v2412 = vpop.f32.mrb[0].mxu0
        %v2413 = vadd.f32 %v903, %v2412
        %v2414 = vpop.f32.mrb[0].mxu0
        %v2415 = vadd.f32 %v903, %v2414
        %v2416 = vpop.f32.mrb[0].mxu0
        %v2417 = vadd.f32 %v908, %v2416
        %v2418 = vpop.f32.mrb[0].mxu0
        %v2419 = vadd.f32 %v908, %v2418
        %2420 = vmatprep.mubr.bf16.mxu0 0
        %2421 = vmatmul.mubr.bf16.gmra.mrb[0].mxu0 %v1212
        %v2422 = vpop.f32.mrb[0].mxu0
        %v2423 = vadd.f32 %v913, %v2422
        %v2424 = vpop.f32.mrb[0].mxu0
        %v2425 = vadd.f32 %v913, %v2424
        %v2426 = vpop.f32.mrb[0].mxu0
        %v2427 = vadd.f32 %v918, %v2426
        %v2428 = vpop.f32.mrb[0].mxu0
        %v2429 = vadd.f32 %v918, %v2428
        %2430 = vmatprep.mubr.bf16.mxu0 0
        %2431 = vmatmul.mubr.bf16.gmra.mrb[0].mxu0 %v1215
        %v2432 = vpop.f32.mrb[0].mxu0
        %v2433 = vadd.f32 %v923, %v2432
        %v2434 = vpop.f32.mrb[0].mxu0
        %v2435 = vadd.f32 %v923, %v2434
        %v2436 = vpop.f32.mrb[0].mxu0
        %v2437 = vadd.f32 %v928, %v2436
        %v2438 = vpop.f32.mrb[0].mxu0
        %v2439 = vadd.f32 %v928, %v2438
        %2440 = vmatprep.mubr.bf16.mxu0 0
        %2441 = vmatmul.mubr.bf16.gmra.mrb[0].mxu0 %v1218
        %v2442 = vpop.f32.mrb[0].mxu0
        %v2443 = vadd.f32 %v933, %v2442
        %v2444 = vpop.f32.mrb[0].mxu0
        %v2445 = vadd.f32 %v933, %v2444
        %v2446 = vpop.f32.mrb[0].mxu0
        %v2447 = vadd.f32 %v938, %v2446
        %v2448 = vpop.f32.mrb[0].mxu0
        %v2449 = vadd.f32 %v938, %v2448
        %2450 = vmatprep.mubr.bf16.mxu0 0
        %2451 = vmatmul.mubr.bf16.gmra.mrb[0].mxu0 %v1221
        %v2452 = vpop.f32.mrb[0].mxu0
        %v2453 = vadd.f32 %v943, %v2452
        %v2454 = vpop.f32.mrb[0].mxu0
        %v2455 = vadd.f32 %v943, %v2454
        %v2456 = vpop.f32.mrb[0].mxu0
        %v2457 = vadd.f32 %v948, %v2456
        %v2458 = vpop.f32.mrb[0].mxu0
        %v2459 = vadd.f32 %v948, %v2458
        %2460 = vmatprep.mubr.bf16.mxu0 0
        %2461 = vmatmul.mubr.bf16.gmra.mrb[0].mxu0 %v1224
        %v2462 = vpop.f32.mrb[0].mxu0
        %v2463 = vadd.f32 %v953, %v2462
        %v2464 = vpop.f32.mrb[0].mxu0
        %v2465 = vadd.f32 %v953, %v2464
        %v2466 = vpop.f32.mrb[0].mxu0
        %v2467 = vadd.f32 %v958, %v2466
        %v2468 = vpop.f32.mrb[0].mxu0
        %v2469 = vadd.f32 %v958, %v2468
        %2470 = vdwg.mxu0
        %v2471 = vmax.f32 %v2153, 0.0
        %v2472 = vmax.f32 %v2155, 0.0
        %v2473 = vmax.f32 %v2157, 0.0
        %v2474 = vmax.f32 %v2159, 0.0
        %v2475 = vmax.f32 %v2163, 0.0
        %v2476 = vmax.f32 %v2165, 0.0
        %v2477 = vmax.f32 %v2167, 0.0
        %v2478 = vmax.f32 %v2169, 0.0
        %v2479 = vmax.f32 %v2173, 0.0
        %v2480 = vmax.f32 %v2175, 0.0
        %v2481 = vmax.f32 %v2177, 0.0
        %v2482 = vmax.f32 %v2179, 0.0
        %v2483 = vmax.f32 %v2183, 0.0
        %v2484 = vmax.f32 %v2185, 0.0
        %v2485 = vmax.f32 %v2187, 0.0
        %v2486 = vmax.f32 %v2189, 0.0
        %v2487 = vmax.f32 %v2193, 0.0
        %v2488 = vmax.f32 %v2195, 0.0
        %v2489 = vmax.f32 %v2197, 0.0
        %v2490 = vmax.f32 %v2199, 0.0
        %v2491 = vmax.f32 %v2203, 0.0
        %v2492 = vmax.f32 %v2205, 0.0
        %v2493 = vmax.f32 %v2207, 0.0
        %v2494 = vmax.f32 %v2209, 0.0
        %v2495 = vmax.f32 %v2213, 0.0
        %v2496 = vmax.f32 %v2215, 0.0
        %v2497 = vmax.f32 %v2217, 0.0
        %v2498 = vmax.f32 %v2219, 0.0
        %v2499 = vmax.f32 %v2223, 0.0
        %v2500 = vmax.f32 %v2225, 0.0
        %v2501 = vmax.f32 %v2227, 0.0
        %v2502 = vmax.f32 %v2229, 0.0
        %v2503 = vmax.f32 %v2233, 0.0
        %v2504 = vmax.f32 %v2235, 0.0
        %v2505 = vmax.f32 %v2237, 0.0
        %v2506 = vmax.f32 %v2239, 0.0
        %v2507 = vmax.f32 %v2243, 0.0
        %v2508 = vmax.f32 %v2245, 0.0
        %v2509 = vmax.f32 %v2247, 0.0
        %v2510 = vmax.f32 %v2249, 0.0
        %v2511 = vmax.f32 %v2253, 0.0
        %v2512 = vmax.f32 %v2255, 0.0
        %v2513 = vmax.f32 %v2257, 0.0
        %v2514 = vmax.f32 %v2259, 0.0
        %v2515 = vmax.f32 %v2263, 0.0
        %v2516 = vmax.f32 %v2265, 0.0
        %v2517 = vmax.f32 %v2267, 0.0
        %v2518 = vmax.f32 %v2269, 0.0
        %v2519 = vmax.f32 %v2273, 0.0
        %v2520 = vmax.f32 %v2275, 0.0
        %v2521 = vmax.f32 %v2277, 0.0
        %v2522 = vmax.f32 %v2279, 0.0
        %v2523 = vmax.f32 %v2283, 0.0
        %v2524 = vmax.f32 %v2285, 0.0
        %v2525 = vmax.f32 %v2287, 0.0
        %v2526 = vmax.f32 %v2289, 0.0
        %v2527 = vmax.f32 %v2293, 0.0
        %v2528 = vmax.f32 %v2295, 0.0
        %v2529 = vmax.f32 %v2297, 0.0
        %v2530 = vmax.f32 %v2299, 0.0
        %v2531 = vmax.f32 %v2303, 0.0
        %v2532 = vmax.f32 %v2305, 0.0
        %v2533 = vmax.f32 %v2307, 0.0
        %v2534 = vmax.f32 %v2309, 0.0
        %v2535 = vmax.f32 %v2313, 0.0
        %v2536 = vmax.f32 %v2315, 0.0
        %v2537 = vmax.f32 %v2317, 0.0
        %v2538 = vmax.f32 %v2319, 0.0
        %v2539 = vmax.f32 %v2323, 0.0
        %v2540 = vmax.f32 %v2325, 0.0
        %v2541 = vmax.f32 %v2327, 0.0
        %v2542 = vmax.f32 %v2329, 0.0
        %v2543 = vmax.f32 %v2333, 0.0
        %v2544 = vmax.f32 %v2335, 0.0
        %v2545 = vmax.f32 %v2337, 0.0
        %v2546 = vmax.f32 %v2339, 0.0
        %v2547 = vmax.f32 %v2343, 0.0
        %v2548 = vmax.f32 %v2345, 0.0
        %v2549 = vmax.f32 %v2347, 0.0
        %v2550 = vmax.f32 %v2349, 0.0
        %v2551 = vmax.f32 %v2353, 0.0
        %v2552 = vmax.f32 %v2355, 0.0
        %v2553 = vmax.f32 %v2357, 0.0
        %v2554 = vmax.f32 %v2359, 0.0
        %v2555 = vmax.f32 %v2363, 0.0
        %v2556 = vmax.f32 %v2365, 0.0
        %v2557 = vmax.f32 %v2367, 0.0
        %v2558 = vmax.f32 %v2369, 0.0
        %v2559 = vmax.f32 %v2373, 0.0
        %v2560 = vmax.f32 %v2375, 0.0
        %v2561 = vmax.f32 %v2377, 0.0
        %v2562 = vmax.f32 %v2379, 0.0
        %v2563 = vmax.f32 %v2383, 0.0
        %v2564 = vmax.f32 %v2385, 0.0
        %v2565 = vmax.f32 %v2387, 0.0
        %v2566 = vmax.f32 %v2389, 0.0
        %v2567 = vmax.f32 %v2393, 0.0
        %v2568 = vmax.f32 %v2395, 0.0
        %v2569 = vmax.f32 %v2397, 0.0
        %v2570 = vmax.f32 %v2399, 0.0
        %v2571 = vmax.f32 %v2403, 0.0
        %v2572 = vmax.f32 %v2405, 0.0
        %v2573 = vmax.f32 %v2407, 0.0
        %v2574 = vmax.f32 %v2409, 0.0
        %v2575 = vmax.f32 %v2413, 0.0
        %v2576 = vmax.f32 %v2415, 0.0
        %v2577 = vmax.f32 %v2417, 0.0
        %v2578 = vmax.f32 %v2419, 0.0
        %v2579 = vmax.f32 %v2423, 0.0
        %v2580 = vmax.f32 %v2425, 0.0
        %v2581 = vmax.f32 %v2427, 0.0
        %v2582 = vmax.f32 %v2429, 0.0
        %v2583 = vmax.f32 %v2433, 0.0
        %v2584 = vmax.f32 %v2435, 0.0
        %v2585 = vmax.f32 %v2437, 0.0
        %v2586 = vmax.f32 %v2439, 0.0
        %v2587 = vmax.f32 %v2443, 0.0
        %v2588 = vmax.f32 %v2445, 0.0
        %v2589 = vmax.f32 %v2447, 0.0
        %v2590 = vmax.f32 %v2449, 0.0
        %v2591 = vmax.f32 %v2453, 0.0
        %v2592 = vmax.f32 %v2455, 0.0
        %v2593 = vmax.f32 %v2457, 0.0
        %v2594 = vmax.f32 %v2459, 0.0
        %v2595 = vmax.f32 %v2463, 0.0
        %v2596 = vmax.f32 %v2465, 0.0
        %v2597 = vmax.f32 %v2467, 0.0
        %v2598 = vmax.f32 %v2469, 0.0
        %v2599 = vadd.f32 %v2471, %v2472
        %2600 = vadd.xlane.f32.xlu0 %v2599
        %v2601 = vpop.xlane.xlu0 %2600
        %v2602 = vadd.f32 %v2473, %v2474
        %2603 = vadd.xlane.f32.xlu0 %v2602
        %v2604 = vpop.xlane.xlu0 %2603
        %v2605 = vadd.f32 %v2475, %v2476
        %2606 = vadd.xlane.f32.xlu0 %v2605
        %v2607 = vpop.xlane.xlu0 %2606
        %v2608 = vadd.f32 %v2477, %v2478
        %2609 = vadd.xlane.f32.xlu0 %v2608
        %v2610 = vpop.xlane.xlu0 %2609
        %v2611 = vadd.f32 %v2479, %v2480
        %2612 = vadd.xlane.f32.xlu0 %v2611
        %v2613 = vpop.xlane.xlu0 %2612
        %v2614 = vadd.f32 %v2481, %v2482
        %2615 = vadd.xlane.f32.xlu0 %v2614
        %v2616 = vpop.xlane.xlu0 %2615
        %v2617 = vadd.f32 %v2483, %v2484
        %2618 = vadd.xlane.f32.xlu0 %v2617
        %v2619 = vpop.xlane.xlu0 %2618
        %v2620 = vadd.f32 %v2485, %v2486
        %2621 = vadd.xlane.f32.xlu0 %v2620
        %v2622 = vpop.xlane.xlu0 %2621
        %v2623 = vadd.f32 %v2487, %v2488
        %2624 = vadd.xlane.f32.xlu0 %v2623
        %v2625 = vpop.xlane.xlu0 %2624
        %v2626 = vadd.f32 %v2489, %v2490
        %2627 = vadd.xlane.f32.xlu0 %v2626
        %v2628 = vpop.xlane.xlu0 %2627
        %v2629 = vadd.f32 %v2491, %v2492
        %2630 = vadd.xlane.f32.xlu0 %v2629
        %v2631 = vpop.xlane.xlu0 %2630
        %v2632 = vadd.f32 %v2493, %v2494
        %2633 = vadd.xlane.f32.xlu0 %v2632
        %v2634 = vpop.xlane.xlu0 %2633
        %v2635 = vadd.f32 %v2495, %v2496
        %2636 = vadd.xlane.f32.xlu0 %v2635
        %v2637 = vpop.xlane.xlu0 %2636
        %v2638 = vadd.f32 %v2497, %v2498
        %2639 = vadd.xlane.f32.xlu0 %v2638
        %v2640 = vpop.xlane.xlu0 %2639
        %v2641 = vadd.f32 %v2499, %v2500
        %2642 = vadd.xlane.f32.xlu0 %v2641
        %v2643 = vpop.xlane.xlu0 %2642
        %v2644 = vadd.f32 %v2501, %v2502
        %2645 = vadd.xlane.f32.xlu0 %v2644
        %v2646 = vpop.xlane.xlu0 %2645
        %v2647 = vadd.f32 %v2503, %v2504
        %2648 = vadd.xlane.f32.xlu0 %v2647
        %v2649 = vpop.xlane.xlu0 %2648
        %v2650 = vadd.f32 %v2505, %v2506
        %2651 = vadd.xlane.f32.xlu0 %v2650
        %v2652 = vpop.xlane.xlu0 %2651
        %v2653 = vadd.f32 %v2507, %v2508
        %2654 = vadd.xlane.f32.xlu0 %v2653
        %v2655 = vpop.xlane.xlu0 %2654
        %v2656 = vadd.f32 %v2509, %v2510
        %2657 = vadd.xlane.f32.xlu0 %v2656
        %v2658 = vpop.xlane.xlu0 %2657
        %v2659 = vadd.f32 %v2511, %v2512
        %2660 = vadd.xlane.f32.xlu0 %v2659
        %v2661 = vpop.xlane.xlu0 %2660
        %v2662 = vadd.f32 %v2513, %v2514
        %2663 = vadd.xlane.f32.xlu0 %v2662
        %v2664 = vpop.xlane.xlu0 %2663
        %v2665 = vadd.f32 %v2515, %v2516
        %2666 = vadd.xlane.f32.xlu0 %v2665
        %v2667 = vpop.xlane.xlu0 %2666
        %v2668 = vadd.f32 %v2517, %v2518
        %2669 = vadd.xlane.f32.xlu0 %v2668
        %v2670 = vpop.xlane.xlu0 %2669
        %v2671 = vadd.f32 %v2519, %v2520
        %2672 = vadd.xlane.f32.xlu0 %v2671
        %v2673 = vpop.xlane.xlu0 %2672
        %v2674 = vadd.f32 %v2521, %v2522
        %2675 = vadd.xlane.f32.xlu0 %v2674
        %v2676 = vpop.xlane.xlu0 %2675
        %v2677 = vadd.f32 %v2523, %v2524
        %2678 = vadd.xlane.f32.xlu0 %v2677
        %v2679 = vpop.xlane.xlu0 %2678
        %v2680 = vadd.f32 %v2525, %v2526
        %2681 = vadd.xlane.f32.xlu0 %v2680
        %v2682 = vpop.xlane.xlu0 %2681
        %v2683 = vadd.f32 %v2527, %v2528
        %2684 = vadd.xlane.f32.xlu0 %v2683
        %v2685 = vpop.xlane.xlu0 %2684
        %v2686 = vadd.f32 %v2529, %v2530
        %2687 = vadd.xlane.f32.xlu0 %v2686
        %v2688 = vpop.xlane.xlu0 %2687
        %v2689 = vadd.f32 %v2531, %v2532
        %2690 = vadd.xlane.f32.xlu0 %v2689
        %v2691 = vpop.xlane.xlu0 %2690
        %v2692 = vadd.f32 %v2533, %v2534
        %2693 = vadd.xlane.f32.xlu0 %v2692
        %v2694 = vpop.xlane.xlu0 %2693
        %v2695 = vadd.f32 %v2535, %v2536
        %2696 = vadd.xlane.f32.xlu0 %v2695
        %v2697 = vpop.xlane.xlu0 %2696
        %v2698 = vadd.f32 %v2537, %v2538
        %2699 = vadd.xlane.f32.xlu0 %v2698
        %v2700 = vpop.xlane.xlu0 %2699
        %v2701 = vadd.f32 %v2539, %v2540
        %2702 = vadd.xlane.f32.xlu0 %v2701
        %v2703 = vpop.xlane.xlu0 %2702
        %v2704 = vadd.f32 %v2541, %v2542
        %2705 = vadd.xlane.f32.xlu0 %v2704
        %v2706 = vpop.xlane.xlu0 %2705
        %v2707 = vadd.f32 %v2543, %v2544
        %2708 = vadd.xlane.f32.xlu0 %v2707
        %v2709 = vpop.xlane.xlu0 %2708
        %v2710 = vadd.f32 %v2545, %v2546
        %2711 = vadd.xlane.f32.xlu0 %v2710
        %v2712 = vpop.xlane.xlu0 %2711
        %v2713 = vadd.f32 %v2547, %v2548
        %2714 = vadd.xlane.f32.xlu0 %v2713
        %v2715 = vpop.xlane.xlu0 %2714
        %v2716 = vadd.f32 %v2549, %v2550
        %2717 = vadd.xlane.f32.xlu0 %v2716
        %v2718 = vpop.xlane.xlu0 %2717
        %v2719 = vadd.f32 %v2551, %v2552
        %2720 = vadd.xlane.f32.xlu0 %v2719
        %v2721 = vpop.xlane.xlu0 %2720
        %v2722 = vadd.f32 %v2553, %v2554
        %2723 = vadd.xlane.f32.xlu0 %v2722
        %v2724 = vpop.xlane.xlu0 %2723
        %v2725 = vadd.f32 %v2555, %v2556
        %2726 = vadd.xlane.f32.xlu0 %v2725
        %v2727 = vpop.xlane.xlu0 %2726
        %v2728 = vadd.f32 %v2557, %v2558
        %2729 = vadd.xlane.f32.xlu0 %v2728
        %v2730 = vpop.xlane.xlu0 %2729
        %v2731 = vadd.f32 %v2559, %v2560
        %2732 = vadd.xlane.f32.xlu0 %v2731
        %v2733 = vpop.xlane.xlu0 %2732
        %v2734 = vadd.f32 %v2561, %v2562
        %2735 = vadd.xlane.f32.xlu0 %v2734
        %v2736 = vpop.xlane.xlu0 %2735
        %v2737 = vadd.f32 %v2563, %v2564
        %2738 = vadd.xlane.f32.xlu0 %v2737
        %v2739 = vpop.xlane.xlu0 %2738
        %v2740 = vadd.f32 %v2565, %v2566
        %2741 = vadd.xlane.f32.xlu0 %v2740
        %v2742 = vpop.xlane.xlu0 %2741
        %v2743 = vadd.f32 %v2567, %v2568
        %2744 = vadd.xlane.f32.xlu0 %v2743
        %v2745 = vpop.xlane.xlu0 %2744
        %v2746 = vadd.f32 %v2569, %v2570
        %2747 = vadd.xlane.f32.xlu0 %v2746
        %v2748 = vpop.xlane.xlu0 %2747
        %v2749 = vadd.f32 %v2571, %v2572
        %2750 = vadd.xlane.f32.xlu0 %v2749
        %v2751 = vpop.xlane.xlu0 %2750
        %v2752 = vadd.f32 %v2573, %v2574
        %2753 = vadd.xlane.f32.xlu0 %v2752
        %v2754 = vpop.xlane.xlu0 %2753
        %v2755 = vadd.f32 %v2575, %v2576
        %2756 = vadd.xlane.f32.xlu0 %v2755
        %v2757 = vpop.xlane.xlu0 %2756
        %v2758 = vadd.f32 %v2577, %v2578
        %2759 = vadd.xlane.f32.xlu0 %v2758
        %v2760 = vpop.xlane.xlu0 %2759
        %v2761 = vadd.f32 %v2579, %v2580
        %2762 = vadd.xlane.f32.xlu0 %v2761
        %v2763 = vpop.xlane.xlu0 %2762
        %v2764 = vadd.f32 %v2581, %v2582
        %2765 = vadd.xlane.f32.xlu0 %v2764
        %v2766 = vpop.xlane.xlu0 %2765
        %v2767 = vadd.f32 %v2583, %v2584
        %2768 = vadd.xlane.f32.xlu0 %v2767
        %v2769 = vpop.xlane.xlu0 %2768
        %v2770 = vadd.f32 %v2585, %v2586
        %2771 = vadd.xlane.f32.xlu0 %v2770
        %v2772 = vpop.xlane.xlu0 %2771
        %v2773 = vadd.f32 %v2587, %v2588
        %2774 = vadd.xlane.f32.xlu0 %v2773
        %v2775 = vpop.xlane.xlu0 %2774
        %v2776 = vadd.f32 %v2589, %v2590
        %2777 = vadd.xlane.f32.xlu0 %v2776
        %v2778 = vpop.xlane.xlu0 %2777
        %v2779 = vadd.f32 %v2591, %v2592
        %2780 = vadd.xlane.f32.xlu0 %v2779
        %v2781 = vpop.xlane.xlu0 %2780
        %v2782 = vadd.f32 %v2593, %v2594
        %2783 = vadd.xlane.f32.xlu0 %v2782
        %v2784 = vpop.xlane.xlu0 %2783
        %v2785 = vadd.f32 %v2595, %v2596
        %2786 = vadd.xlane.f32.xlu0 %v2785
        %v2787 = vpop.xlane.xlu0 %2786
        %v2788 = vadd.f32 %v2597, %v2598
        %2789 = vadd.xlane.f32.xlu0 %v2788
        %v2790 = vpop.xlane.xlu0 %2789
        %v2791 = vadd.f32 %v2038, %v2601
        %v2792 = vadd.f32 %v2039, %v2604
        %v2793 = vadd.f32 %v2040, %v2607
        %v2794 = vadd.f32 %v2041, %v2610
        %v2795 = vadd.f32 %v2042, %v2613
        %v2796 = vadd.f32 %v2043, %v2616
        %v2797 = vadd.f32 %v2044, %v2619
        %v2798 = vadd.f32 %v2045, %v2622
        %v2799 = vadd.f32 %v2046, %v2625
        %v2800 = vadd.f32 %v2047, %v2628
        %v2801 = vadd.f32 %v2048, %v2631
        %v2802 = vadd.f32 %v2049, %v2634
        %v2803 = vadd.f32 %v2050, %v2637
        %v2804 = vadd.f32 %v2051, %v2640
        %v2805 = vadd.f32 %v2052, %v2643
        %v2806 = vadd.f32 %v2053, %v2646
        %v2807 = vadd.f32 %v2054, %v2649
        %v2808 = vadd.f32 %v2055, %v2652
        %v2809 = vadd.f32 %v2056, %v2655
        %v2810 = vadd.f32 %v2057, %v2658
        %v2811 = vadd.f32 %v2058, %v2661
        %v2812 = vadd.f32 %v2059, %v2664
        %v2813 = vadd.f32 %v2060, %v2667
        %v2814 = vadd.f32 %v2061, %v2670
        %v2815 = vadd.f32 %v2062, %v2673
        %v2816 = vadd.f32 %v2063, %v2676
        %v2817 = vadd.f32 %v2064, %v2679
        %v2818 = vadd.f32 %v2065, %v2682
        %v2819 = vadd.f32 %v2066, %v2685
        %v2820 = vadd.f32 %v2067, %v2688
        %v2821 = vadd.f32 %v2068, %v2691
        %v2822 = vadd.f32 %v2069, %v2694
        %v2823 = vadd.f32 %v2070, %v2697
        %v2824 = vadd.f32 %v2071, %v2700
        %v2825 = vadd.f32 %v2072, %v2703
        %v2826 = vadd.f32 %v2073, %v2706
        %v2827 = vadd.f32 %v2074, %v2709
        %v2828 = vadd.f32 %v2075, %v2712
        %v2829 = vadd.f32 %v2076, %v2715
        %v2830 = vadd.f32 %v2077, %v2718
        %v2831 = vadd.f32 %v2078, %v2721
        %v2832 = vadd.f32 %v2079, %v2724
        %v2833 = vadd.f32 %v2080, %v2727
        %v2834 = vadd.f32 %v2081, %v2730
        %v2835 = vadd.f32 %v2082, %v2733
        %v2836 = vadd.f32 %v2083, %v2736
        %v2837 = vadd.f32 %v2084, %v2739
        %v2838 = vadd.f32 %v2085, %v2742
        %v2839 = vadd.f32 %v2086, %v2745
        %v2840 = vadd.f32 %v2087, %v2748
        %v2841 = vadd.f32 %v2088, %v2751
        %v2842 = vadd.f32 %v2089, %v2754
        %v2843 = vadd.f32 %v2090, %v2757
        %v2844 = vadd.f32 %v2091, %v2760
        %v2845 = vadd.f32 %v2092, %v2763
        %v2846 = vadd.f32 %v2093, %v2766
        %v2847 = vadd.f32 %v2094, %v2769
        %v2848 = vadd.f32 %v2095, %v2772
        %v2849 = vadd.f32 %v2096, %v2775
        %v2850 = vadd.f32 %v2097, %v2778
        %v2851 = vadd.f32 %v2098, %v2781
        %v2852 = vadd.f32 %v2099, %v2784
        %v2853 = vadd.f32 %v2100, %v2787
        %v2854 = vadd.f32 %v2101, %v2790
        %2855 = vst.msk [vmem:[#allocation3] sm:$0xff] %vm1973, %v2791
        %2856 = vst.msk [vmem:[#allocation3 + $0x8] sm:$0xff] %vm1973, %v2792
        %2857 = vst.msk [vmem:[#allocation3 + $0x10] sm:$0xff] %vm1973, %v2793
        %2858 = vst.msk [vmem:[#allocation3 + $0x18] sm:$0xff] %vm1973, %v2794
        %2859 = vst.msk [vmem:[#allocation3 + $0x20] sm:$0xff] %vm1973, %v2795
        %2860 = vst.msk [vmem:[#allocation3 + $0x28] sm:$0xff] %vm1973, %v2796
        %2861 = vst.msk [vmem:[#allocation3 + $0x30] sm:$0xff] %vm1973, %v2797
        %2862 = vst.msk [vmem:[#allocation3 + $0x38] sm:$0xff] %vm1973, %v2798
        %2863 = vst.msk [vmem:[#allocation3 + $0x40] sm:$0xff] %vm1973, %v2799
        %2864 = vst.msk [vmem:[#allocation3 + $0x48] sm:$0xff] %vm1973, %v2800
        %2865 = vst.msk [vmem:[#allocation3 + $0x50] sm:$0xff] %vm1973, %v2801
        %2866 = vst.msk [vmem:[#allocation3 + $0x58] sm:$0xff] %vm1973, %v2802
        %2867 = vst.msk [vmem:[#allocation3 + $0x60] sm:$0xff] %vm1973, %v2803
        %2868 = vst.msk [vmem:[#allocation3 + $0x68] sm:$0xff] %vm1973, %v2804
        %2869 = vst.msk [vmem:[#allocation3 + $0x70] sm:$0xff] %vm1973, %v2805
        %2870 = vst.msk [vmem:[#allocation3 + $0x78] sm:$0xff] %vm1973, %v2806
        %2871 = vst.msk [vmem:[#allocation3 + $0x80] sm:$0xff] %vm1973, %v2807
        %2872 = vst.msk [vmem:[#allocation3 + $0x88] sm:$0xff] %vm1973, %v2808
        %2873 = vst.msk [vmem:[#allocation3 + $0x90] sm:$0xff] %vm1973, %v2809
        %2874 = vst.msk [vmem:[#allocation3 + $0x98] sm:$0xff] %vm1973, %v2810
        %2875 = vst.msk [vmem:[#allocation3 + $0xa0] sm:$0xff] %vm1973, %v2811
        %2876 = vst.msk [vmem:[#allocation3 + $0xa8] sm:$0xff] %vm1973, %v2812
        %2877 = vst.msk [vmem:[#allocation3 + $0xb0] sm:$0xff] %vm1973, %v2813
        %2878 = vst.msk [vmem:[#allocation3 + $0xb8] sm:$0xff] %vm1973, %v2814
        %2879 = vst.msk [vmem:[#allocation3 + $0xc0] sm:$0xff] %vm1973, %v2815
        %2880 = vst.msk [vmem:[#allocation3 + $0xc8] sm:$0xff] %vm1973, %v2816
        %2881 = vst.msk [vmem:[#allocation3 + $0xd0] sm:$0xff] %vm1973, %v2817
        %2882 = vst.msk [vmem:[#allocation3 + $0xd8] sm:$0xff] %vm1973, %v2818
        %2883 = vst.msk [vmem:[#allocation3 + $0xe0] sm:$0xff] %vm1973, %v2819
        %2884 = vst.msk [vmem:[#allocation3 + $0xe8] sm:$0xff] %vm1973, %v2820
        %2885 = vst.msk [vmem:[#allocation3 + $0xf0] sm:$0xff] %vm1973, %v2821
        %2886 = vst.msk [vmem:[#allocation3 + $0xf8] sm:$0xff] %vm1973, %v2822
        %2887 = vst.msk [vmem:[#allocation3 + $0x100] sm:$0xff] %vm1973, %v2823
        %2888 = vst.msk [vmem:[#allocation3 + $0x108] sm:$0xff] %vm1973, %v2824
        %2889 = vst.msk [vmem:[#allocation3 + $0x110] sm:$0xff] %vm1973, %v2825
        %2890 = vst.msk [vmem:[#allocation3 + $0x118] sm:$0xff] %vm1973, %v2826
        %2891 = vst.msk [vmem:[#allocation3 + $0x120] sm:$0xff] %vm1973, %v2827
        %2892 = vst.msk [vmem:[#allocation3 + $0x128] sm:$0xff] %vm1973, %v2828
        %2893 = vst.msk [vmem:[#allocation3 + $0x130] sm:$0xff] %vm1973, %v2829
        %2894 = vst.msk [vmem:[#allocation3 + $0x138] sm:$0xff] %vm1973, %v2830
        %2895 = vst.msk [vmem:[#allocation3 + $0x140] sm:$0xff] %vm1973, %v2831
        %2896 = vst.msk [vmem:[#allocation3 + $0x148] sm:$0xff] %vm1973, %v2832
        %2897 = vst.msk [vmem:[#allocation3 + $0x150] sm:$0xff] %vm1973, %v2833
        %2898 = vst.msk [vmem:[#allocation3 + $0x158] sm:$0xff] %vm1973, %v2834
        %2899 = vst.msk [vmem:[#allocation3 + $0x160] sm:$0xff] %vm1973, %v2835
        %2900 = vst.msk [vmem:[#allocation3 + $0x168] sm:$0xff] %vm1973, %v2836
        %2901 = vst.msk [vmem:[#allocation3 + $0x170] sm:$0xff] %vm1973, %v2837
        %2902 = vst.msk [vmem:[#allocation3 + $0x178] sm:$0xff] %vm1973, %v2838
        %2903 = vst.msk [vmem:[#allocation3 + $0x180] sm:$0xff] %vm1973, %v2839
        %2904 = vst.msk [vmem:[#allocation3 + $0x188] sm:$0xff] %vm1973, %v2840
        %2905 = vst.msk [vmem:[#allocation3 + $0x190] sm:$0xff] %vm1973, %v2841
        %2906 = vst.msk [vmem:[#allocation3 + $0x198] sm:$0xff] %vm1973, %v2842
        %2907 = vst.msk [vmem:[#allocation3 + $0x1a0] sm:$0xff] %vm1973, %v2843
        %2908 = vst.msk [vmem:[#allocation3 + $0x1a8] sm:$0xff] %vm1973, %v2844
        %2909 = vst.msk [vmem:[#allocation3 + $0x1b0] sm:$0xff] %vm1973, %v2845
        %2910 = vst.msk [vmem:[#allocation3 + $0x1b8] sm:$0xff] %vm1973, %v2846
        %2911 = vst.msk [vmem:[#allocation3 + $0x1c0] sm:$0xff] %vm1973, %v2847
        %2912 = vst.msk [vmem:[#allocation3 + $0x1c8] sm:$0xff] %vm1973, %v2848
        %2913 = vst.msk [vmem:[#allocation3 + $0x1d0] sm:$0xff] %vm1973, %v2849
        %2914 = vst.msk [vmem:[#allocation3 + $0x1d8] sm:$0xff] %vm1973, %v2850
        %2915 = vst.msk [vmem:[#allocation3 + $0x1e0] sm:$0xff] %vm1973, %v2851
        %2916 = vst.msk [vmem:[#allocation3 + $0x1e8] sm:$0xff] %vm1973, %v2852
        %2917 = vst.msk [vmem:[#allocation3 + $0x1f0] sm:$0xff] %vm1973, %v2853
        %2918 = vst.msk [vmem:[#allocation3 + $0x1f8] sm:$0xff] %vm1973, %v2854
        // Predicated region
        $region49: #{classify_model_forward.1} parent=43 // pred_check
          %p2919 = pneg %p314
        $region50: #{classify_model_forward.1} parent=43 // pred_check_branch
          %2921 = sbr.rel (%p2919) target = $region52
        $region51: #{classify_model_forward.1} parent=43 // pred_region
          %v2922 = vld [vmem:[#allocation2] sm:$0xff]
          %v2923 = vld [vmem:[#allocation2 + $0x8] sm:$0xff]
          %v2924 = vld [vmem:[#allocation2 + $0x10] sm:$0xff]
          %v2925 = vld [vmem:[#allocation2 + $0x18] sm:$0xff]
          %v2926 = vld [vmem:[#allocation2 + $0x20] sm:$0xff]
          %v2927 = vld [vmem:[#allocation2 + $0x28] sm:$0xff]
          %v2928 = vld [vmem:[#allocation2 + $0x30] sm:$0xff]
          %v2929 = vld [vmem:[#allocation2 + $0x38] sm:$0xff]
          %v2930 = vld [vmem:[#allocation2 + $0x40] sm:$0xff]
          %v2931 = vld [vmem:[#allocation2 + $0x48] sm:$0xff]
          %v2932 = vld [vmem:[#allocation2 + $0x50] sm:$0xff]
          %v2933 = vld [vmem:[#allocation2 + $0x58] sm:$0xff]
          %v2934 = vld [vmem:[#allocation2 + $0x60] sm:$0xff]
          %v2935 = vld [vmem:[#allocation2 + $0x68] sm:$0xff]
          %v2936 = vld [vmem:[#allocation2 + $0x70] sm:$0xff]
          %v2937 = vld [vmem:[#allocation2 + $0x78] sm:$0xff]
          %v2938 = vld [vmem:[#allocation2 + $0x80] sm:$0xff]
          %v2939 = vld [vmem:[#allocation2 + $0x88] sm:$0xff]
          %v2940 = vld [vmem:[#allocation2 + $0x90] sm:$0xff]
          %v2941 = vld [vmem:[#allocation2 + $0x98] sm:$0xff]
          %v2942 = vld [vmem:[#allocation2 + $0xa0] sm:$0xff]
          %v2943 = vld [vmem:[#allocation2 + $0xa8] sm:$0xff]
          %v2944 = vld [vmem:[#allocation2 + $0xb0] sm:$0xff]
          %v2945 = vld [vmem:[#allocation2 + $0xb8] sm:$0xff]
          %v2946 = vld [vmem:[#allocation2 + $0xc0] sm:$0xff]
          %v2947 = vld [vmem:[#allocation2 + $0xc8] sm:$0xff]
          %v2948 = vld [vmem:[#allocation2 + $0xd0] sm:$0xff]
          %v2949 = vld [vmem:[#allocation2 + $0xd8] sm:$0xff]
          %v2950 = vld [vmem:[#allocation2 + $0xe0] sm:$0xff]
          %v2951 = vld [vmem:[#allocation2 + $0xe8] sm:$0xff]
          %v2952 = vld [vmem:[#allocation2 + $0xf0] sm:$0xff]
          %v2953 = vld [vmem:[#allocation2 + $0xf8] sm:$0xff]
          %v2954 = vld [vmem:[#allocation2 + $0x100] sm:$0xff]
          %v2955 = vld [vmem:[#allocation2 + $0x108] sm:$0xff]
          %v2956 = vld [vmem:[#allocation2 + $0x110] sm:$0xff]
          %v2957 = vld [vmem:[#allocation2 + $0x118] sm:$0xff]
          %v2958 = vld [vmem:[#allocation2 + $0x120] sm:$0xff]
          %v2959 = vld [vmem:[#allocation2 + $0x128] sm:$0xff]
          %v2960 = vld [vmem:[#allocation2 + $0x130] sm:$0xff]
          %v2961 = vld [vmem:[#allocation2 + $0x138] sm:$0xff]
          %v2962 = vld [vmem:[#allocation2 + $0x140] sm:$0xff]
          %v2963 = vld [vmem:[#allocation2 + $0x148] sm:$0xff]
          %v2964 = vld [vmem:[#allocation2 + $0x150] sm:$0xff]
          %v2965 = vld [vmem:[#allocation2 + $0x158] sm:$0xff]
          %v2966 = vld [vmem:[#allocation2 + $0x160] sm:$0xff]
          %v2967 = vld [vmem:[#allocation2 + $0x168] sm:$0xff]
          %v2968 = vld [vmem:[#allocation2 + $0x170] sm:$0xff]
          %v2969 = vld [vmem:[#allocation2 + $0x178] sm:$0xff]
          %v2970 = vld [vmem:[#allocation2 + $0x180] sm:$0xff]
          %v2971 = vld [vmem:[#allocation2 + $0x188] sm:$0xff]
          %v2972 = vld [vmem:[#allocation2 + $0x190] sm:$0xff]
          %v2973 = vld [vmem:[#allocation2 + $0x198] sm:$0xff]
          %v2974 = vld [vmem:[#allocation2 + $0x1a0] sm:$0xff]
          %v2975 = vld [vmem:[#allocation2 + $0x1a8] sm:$0xff]
          %v2976 = vld [vmem:[#allocation2 + $0x1b0] sm:$0xff]
          %v2977 = vld [vmem:[#allocation2 + $0x1b8] sm:$0xff]
          %v2978 = vld [vmem:[#allocation2 + $0x1c0] sm:$0xff]
          %v2979 = vld [vmem:[#allocation2 + $0x1c8] sm:$0xff]
          %v2980 = vld [vmem:[#allocation2 + $0x1d0] sm:$0xff]
          %v2981 = vld [vmem:[#allocation2 + $0x1d8] sm:$0xff]
          %v2982 = vld [vmem:[#allocation2 + $0x1e0] sm:$0xff]
          %v2983 = vld [vmem:[#allocation2 + $0x1e8] sm:$0xff]
          %v2984 = vld [vmem:[#allocation2 + $0x1f0] sm:$0xff]
          %v2985 = vld [vmem:[#allocation2 + $0x1f8] sm:$0xff]
          %v2986 = vmul.f32 %v2922, 0.00390625
          %v2987 = vmul.f32 %v2923, 0.00390625
          %v2988 = vmul.f32 %v2924, 0.00390625
          %v2989 = vmul.f32 %v2925, 0.00390625
          %v2990 = vmul.f32 %v2926, 0.00390625
          %v2991 = vmul.f32 %v2927, 0.00390625
          %v2992 = vmul.f32 %v2928, 0.00390625
          %v2993 = vmul.f32 %v2929, 0.00390625
          %v2994 = vmul.f32 %v2930, 0.00390625
          %v2995 = vmul.f32 %v2931, 0.00390625
          %v2996 = vmul.f32 %v2932, 0.00390625
          %v2997 = vmul.f32 %v2933, 0.00390625
          %v2998 = vmul.f32 %v2934, 0.00390625
          %v2999 = vmul.f32 %v2935, 0.00390625
          %v3000 = vmul.f32 %v2936, 0.00390625
          %v3001 = vmul.f32 %v2937, 0.00390625
          %v3002 = vmul.f32 %v2938, 0.00390625
          %v3003 = vmul.f32 %v2939, 0.00390625
          %v3004 = vmul.f32 %v2940, 0.00390625
          %v3005 = vmul.f32 %v2941, 0.00390625
          %v3006 = vmul.f32 %v2942, 0.00390625
          %v3007 = vmul.f32 %v2943, 0.00390625
          %v3008 = vmul.f32 %v2944, 0.00390625
          %v3009 = vmul.f32 %v2945, 0.00390625
          %v3010 = vmul.f32 %v2946, 0.00390625
          %v3011 = vmul.f32 %v2947, 0.00390625
          %v3012 = vmul.f32 %v2948, 0.00390625
          %v3013 = vmul.f32 %v2949, 0.00390625
          %v3014 = vmul.f32 %v2950, 0.00390625
          %v3015 = vmul.f32 %v2951, 0.00390625
          %v3016 = vmul.f32 %v2952, 0.00390625
          %v3017 = vmul.f32 %v2953, 0.00390625
          %v3018 = vmul.f32 %v2954, 0.00390625
          %v3019 = vmul.f32 %v2955, 0.00390625
          %v3020 = vmul.f32 %v2956, 0.00390625
          %v3021 = vmul.f32 %v2957, 0.00390625
          %v3022 = vmul.f32 %v2958, 0.00390625
          %v3023 = vmul.f32 %v2959, 0.00390625
          %v3024 = vmul.f32 %v2960, 0.00390625
          %v3025 = vmul.f32 %v2961, 0.00390625
          %v3026 = vmul.f32 %v2962, 0.00390625
          %v3027 = vmul.f32 %v2963, 0.00390625
          %v3028 = vmul.f32 %v2964, 0.00390625
          %v3029 = vmul.f32 %v2965, 0.00390625
          %v3030 = vmul.f32 %v2966, 0.00390625
          %v3031 = vmul.f32 %v2967, 0.00390625
          %v3032 = vmul.f32 %v2968, 0.00390625
          %v3033 = vmul.f32 %v2969, 0.00390625
          %v3034 = vmul.f32 %v2970, 0.00390625
          %v3035 = vmul.f32 %v2971, 0.00390625
          %v3036 = vmul.f32 %v2972, 0.00390625
          %v3037 = vmul.f32 %v2973, 0.00390625
          %v3038 = vmul.f32 %v2974, 0.00390625
          %v3039 = vmul.f32 %v2975, 0.00390625
          %v3040 = vmul.f32 %v2976, 0.00390625
          %v3041 = vmul.f32 %v2977, 0.00390625
          %v3042 = vmul.f32 %v2978, 0.00390625
          %v3043 = vmul.f32 %v2979, 0.00390625
          %v3044 = vmul.f32 %v2980, 0.00390625
          %v3045 = vmul.f32 %v2981, 0.00390625
          %v3046 = vmul.f32 %v2982, 0.00390625
          %v3047 = vmul.f32 %v2983, 0.00390625
          %v3048 = vmul.f32 %v2984, 0.00390625
          %v3049 = vmul.f32 %v2985, 0.00390625
          %v3050 = vld [vmem:[#allocation3] sm:$0xff]
          %v3051 = vld [vmem:[#allocation3 + $0x8] sm:$0xff]
          %v3052 = vld [vmem:[#allocation3 + $0x10] sm:$0xff]
          %v3053 = vld [vmem:[#allocation3 + $0x18] sm:$0xff]
          %v3054 = vld [vmem:[#allocation3 + $0x20] sm:$0xff]
          %v3055 = vld [vmem:[#allocation3 + $0x28] sm:$0xff]
          %v3056 = vld [vmem:[#allocation3 + $0x30] sm:$0xff]
          %v3057 = vld [vmem:[#allocation3 + $0x38] sm:$0xff]
          %v3058 = vld [vmem:[#allocation3 + $0x40] sm:$0xff]
          %v3059 = vld [vmem:[#allocation3 + $0x48] sm:$0xff]
          %v3060 = vld [vmem:[#allocation3 + $0x50] sm:$0xff]
          %v3061 = vld [vmem:[#allocation3 + $0x58] sm:$0xff]
          %v3062 = vld [vmem:[#allocation3 + $0x60] sm:$0xff]
          %v3063 = vld [vmem:[#allocation3 + $0x68] sm:$0xff]
          %v3064 = vld [vmem:[#allocation3 + $0x70] sm:$0xff]
          %v3065 = vld [vmem:[#allocation3 + $0x78] sm:$0xff]
          %v3066 = vld [vmem:[#allocation3 + $0x80] sm:$0xff]
          %v3067 = vld [vmem:[#allocation3 + $0x88] sm:$0xff]
          %v3068 = vld [vmem:[#allocation3 + $0x90] sm:$0xff]
          %v3069 = vld [vmem:[#allocation3 + $0x98] sm:$0xff]
          %v3070 = vld [vmem:[#allocation3 + $0xa0] sm:$0xff]
          %v3071 = vld [vmem:[#allocation3 + $0xa8] sm:$0xff]
          %v3072 = vld [vmem:[#allocation3 + $0xb0] sm:$0xff]
          %v3073 = vld [vmem:[#allocation3 + $0xb8] sm:$0xff]
          %v3074 = vld [vmem:[#allocation3 + $0xc0] sm:$0xff]
          %v3075 = vld [vmem:[#allocation3 + $0xc8] sm:$0xff]
          %v3076 = vld [vmem:[#allocation3 + $0xd0] sm:$0xff]
          %v3077 = vld [vmem:[#allocation3 + $0xd8] sm:$0xff]
          %v3078 = vld [vmem:[#allocation3 + $0xe0] sm:$0xff]
          %v3079 = vld [vmem:[#allocation3 + $0xe8] sm:$0xff]
          %v3080 = vld [vmem:[#allocation3 + $0xf0] sm:$0xff]
          %v3081 = vld [vmem:[#allocation3 + $0xf8] sm:$0xff]
          %v3082 = vld [vmem:[#allocation3 + $0x100] sm:$0xff]
          %v3083 = vld [vmem:[#allocation3 + $0x108] sm:$0xff]
          %v3084 = vld [vmem:[#allocation3 + $0x110] sm:$0xff]
          %v3085 = vld [vmem:[#allocation3 + $0x118] sm:$0xff]
          %v3086 = vld [vmem:[#allocation3 + $0x120] sm:$0xff]
          %v3087 = vld [vmem:[#allocation3 + $0x128] sm:$0xff]
          %v3088 = vld [vmem:[#allocation3 + $0x130] sm:$0xff]
          %v3089 = vld [vmem:[#allocation3 + $0x138] sm:$0xff]
          %v3090 = vld [vmem:[#allocation3 + $0x140] sm:$0xff]
          %v3091 = vld [vmem:[#allocation3 + $0x148] sm:$0xff]
          %v3092 = vld [vmem:[#allocation3 + $0x150] sm:$0xff]
          %v3093 = vld [vmem:[#allocation3 + $0x158] sm:$0xff]
          %v3094 = vld [vmem:[#allocation3 + $0x160] sm:$0xff]
          %v3095 = vld [vmem:[#allocation3 + $0x168] sm:$0xff]
          %v3096 = vld [vmem:[#allocation3 + $0x170] sm:$0xff]
          %v3097 = vld [vmem:[#allocation3 + $0x178] sm:$0xff]
          %v3098 = vld [vmem:[#allocation3 + $0x180] sm:$0xff]
          %v3099 = vld [vmem:[#allocation3 + $0x188] sm:$0xff]
          %v3100 = vld [vmem:[#allocation3 + $0x190] sm:$0xff]
          %v3101 = vld [vmem:[#allocation3 + $0x198] sm:$0xff]
          %v3102 = vld [vmem:[#allocation3 + $0x1a0] sm:$0xff]
          %v3103 = vld [vmem:[#allocation3 + $0x1a8] sm:$0xff]
          %v3104 = vld [vmem:[#allocation3 + $0x1b0] sm:$0xff]
          %v3105 = vld [vmem:[#allocation3 + $0x1b8] sm:$0xff]
          %v3106 = vld [vmem:[#allocation3 + $0x1c0] sm:$0xff]
          %v3107 = vld [vmem:[#allocation3 + $0x1c8] sm:$0xff]
          %v3108 = vld [vmem:[#allocation3 + $0x1d0] sm:$0xff]
          %v3109 = vld [vmem:[#allocation3 + $0x1d8] sm:$0xff]
          %v3110 = vld [vmem:[#allocation3 + $0x1e0] sm:$0xff]
          %v3111 = vld [vmem:[#allocation3 + $0x1e8] sm:$0xff]
          %v3112 = vld [vmem:[#allocation3 + $0x1f0] sm:$0xff]
          %v3113 = vld [vmem:[#allocation3 + $0x1f8] sm:$0xff]
          %v3114 = vmul.f32 %v3050, 0.00390625
          %v3115 = vmul.f32 %v3051, 0.00390625
          %v3116 = vmul.f32 %v3052, 0.00390625
          %v3117 = vmul.f32 %v3053, 0.00390625
          %v3118 = vmul.f32 %v3054, 0.00390625
          %v3119 = vmul.f32 %v3055, 0.00390625
          %v3120 = vmul.f32 %v3056, 0.00390625
          %v3121 = vmul.f32 %v3057, 0.00390625
          %v3122 = vmul.f32 %v3058, 0.00390625
          %v3123 = vmul.f32 %v3059, 0.00390625
          %v3124 = vmul.f32 %v3060, 0.00390625
          %v3125 = vmul.f32 %v3061, 0.00390625
          %v3126 = vmul.f32 %v3062, 0.00390625
          %v3127 = vmul.f32 %v3063, 0.00390625
          %v3128 = vmul.f32 %v3064, 0.00390625
          %v3129 = vmul.f32 %v3065, 0.00390625
          %v3130 = vmul.f32 %v3066, 0.00390625
          %v3131 = vmul.f32 %v3067, 0.00390625
          %v3132 = vmul.f32 %v3068, 0.00390625
          %v3133 = vmul.f32 %v3069, 0.00390625
          %v3134 = vmul.f32 %v3070, 0.00390625
          %v3135 = vmul.f32 %v3071, 0.00390625
          %v3136 = vmul.f32 %v3072, 0.00390625
          %v3137 = vmul.f32 %v3073, 0.00390625
          %v3138 = vmul.f32 %v3074, 0.00390625
          %v3139 = vmul.f32 %v3075, 0.00390625
          %v3140 = vmul.f32 %v3076, 0.00390625
          %v3141 = vmul.f32 %v3077, 0.00390625
          %v3142 = vmul.f32 %v3078, 0.00390625
          %v3143 = vmul.f32 %v3079, 0.00390625
          %v3144 = vmul.f32 %v3080, 0.00390625
          %v3145 = vmul.f32 %v3081, 0.00390625
          %v3146 = vmul.f32 %v3082, 0.00390625
          %v3147 = vmul.f32 %v3083, 0.00390625
          %v3148 = vmul.f32 %v3084, 0.00390625
          %v3149 = vmul.f32 %v3085, 0.00390625
          %v3150 = vmul.f32 %v3086, 0.00390625
          %v3151 = vmul.f32 %v3087, 0.00390625
          %v3152 = vmul.f32 %v3088, 0.00390625
          %v3153 = vmul.f32 %v3089, 0.00390625
          %v3154 = vmul.f32 %v3090, 0.00390625
          %v3155 = vmul.f32 %v3091, 0.00390625
          %v3156 = vmul.f32 %v3092, 0.00390625
          %v3157 = vmul.f32 %v3093, 0.00390625
          %v3158 = vmul.f32 %v3094, 0.00390625
          %v3159 = vmul.f32 %v3095, 0.00390625
          %v3160 = vmul.f32 %v3096, 0.00390625
          %v3161 = vmul.f32 %v3097, 0.00390625
          %v3162 = vmul.f32 %v3098, 0.00390625
          %v3163 = vmul.f32 %v3099, 0.00390625
          %v3164 = vmul.f32 %v3100, 0.00390625
          %v3165 = vmul.f32 %v3101, 0.00390625
          %v3166 = vmul.f32 %v3102, 0.00390625
          %v3167 = vmul.f32 %v3103, 0.00390625
          %v3168 = vmul.f32 %v3104, 0.00390625
          %v3169 = vmul.f32 %v3105, 0.00390625
          %v3170 = vmul.f32 %v3106, 0.00390625
          %v3171 = vmul.f32 %v3107, 0.00390625
          %v3172 = vmul.f32 %v3108, 0.00390625
          %v3173 = vmul.f32 %v3109, 0.00390625
          %v3174 = vmul.f32 %v3110, 0.00390625
          %v3175 = vmul.f32 %v3111, 0.00390625
          %v3176 = vmul.f32 %v3112, 0.00390625
          %v3177 = vmul.f32 %v3113, 0.00390625
          %v3178 = vld [vmem:[%s4] sm:$0xff]
          %v3179 = vld [vmem:[%s4 + $0x8] sm:$0xff]
          %v3180 = vld [vmem:[%s4 + $0x10] sm:$0xff]
          %v3181 = vld [vmem:[%s4 + $0x18] sm:$0xff]
          %v3182 = vld [vmem:[%s4 + $0x20] sm:$0xff]
          %v3183 = vld [vmem:[%s4 + $0x28] sm:$0xff]
          %v3184 = vld [vmem:[%s4 + $0x30] sm:$0xff]
          %v3185 = vld [vmem:[%s4 + $0x38] sm:$0xff]
          %v3186 = vld [vmem:[%s4 + $0x40] sm:$0xff]
          %v3187 = vld [vmem:[%s4 + $0x48] sm:$0xff]
          %v3188 = vld [vmem:[%s4 + $0x50] sm:$0xff]
          %v3189 = vld [vmem:[%s4 + $0x58] sm:$0xff]
          %v3190 = vld [vmem:[%s4 + $0x60] sm:$0xff]
          %v3191 = vld [vmem:[%s4 + $0x68] sm:$0xff]
          %v3192 = vld [vmem:[%s4 + $0x70] sm:$0xff]
          %v3193 = vld [vmem:[%s4 + $0x78] sm:$0xff]
          %v3194 = vld [vmem:[%s4 + $0x80] sm:$0xff]
          %v3195 = vld [vmem:[%s4 + $0x88] sm:$0xff]
          %v3196 = vld [vmem:[%s4 + $0x90] sm:$0xff]
          %v3197 = vld [vmem:[%s4 + $0x98] sm:$0xff]
          %v3198 = vld [vmem:[%s4 + $0xa0] sm:$0xff]
          %v3199 = vld [vmem:[%s4 + $0xa8] sm:$0xff]
          %v3200 = vld [vmem:[%s4 + $0xb0] sm:$0xff]
          %v3201 = vld [vmem:[%s4 + $0xb8] sm:$0xff]
          %v3202 = vld [vmem:[%s4 + $0xc0] sm:$0xff]
          %v3203 = vld [vmem:[%s4 + $0xc8] sm:$0xff]
          %v3204 = vld [vmem:[%s4 + $0xd0] sm:$0xff]
          %v3205 = vld [vmem:[%s4 + $0xd8] sm:$0xff]
          %v3206 = vld [vmem:[%s4 + $0xe0] sm:$0xff]
          %v3207 = vld [vmem:[%s4 + $0xe8] sm:$0xff]
          %v3208 = vld [vmem:[%s4 + $0xf0] sm:$0xff]
          %v3209 = vld [vmem:[%s4 + $0xf8] sm:$0xff]
          %v3210 = vld [vmem:[%s4 + $0x100] sm:$0xff]
          %v3211 = vld [vmem:[%s4 + $0x108] sm:$0xff]
          %v3212 = vld [vmem:[%s4 + $0x110] sm:$0xff]
          %v3213 = vld [vmem:[%s4 + $0x118] sm:$0xff]
          %v3214 = vld [vmem:[%s4 + $0x120] sm:$0xff]
          %v3215 = vld [vmem:[%s4 + $0x128] sm:$0xff]
          %v3216 = vld [vmem:[%s4 + $0x130] sm:$0xff]
          %v3217 = vld [vmem:[%s4 + $0x138] sm:$0xff]
          %v3218 = vld [vmem:[%s4 + $0x140] sm:$0xff]
          %v3219 = vld [vmem:[%s4 + $0x148] sm:$0xff]
          %v3220 = vld [vmem:[%s4 + $0x150] sm:$0xff]
          %v3221 = vld [vmem:[%s4 + $0x158] sm:$0xff]
          %v3222 = vld [vmem:[%s4 + $0x160] sm:$0xff]
          %v3223 = vld [vmem:[%s4 + $0x168] sm:$0xff]
          %v3224 = vld [vmem:[%s4 + $0x170] sm:$0xff]
          %v3225 = vld [vmem:[%s4 + $0x178] sm:$0xff]
          %v3226 = vld [vmem:[%s4 + $0x180] sm:$0xff]
          %v3227 = vld [vmem:[%s4 + $0x188] sm:$0xff]
          %v3228 = vld [vmem:[%s4 + $0x190] sm:$0xff]
          %v3229 = vld [vmem:[%s4 + $0x198] sm:$0xff]
          %v3230 = vld [vmem:[%s4 + $0x1a0] sm:$0xff]
          %v3231 = vld [vmem:[%s4 + $0x1a8] sm:$0xff]
          %v3232 = vld [vmem:[%s4 + $0x1b0] sm:$0xff]
          %v3233 = vld [vmem:[%s4 + $0x1b8] sm:$0xff]
          %v3234 = vld [vmem:[%s4 + $0x1c0] sm:$0xff]
          %v3235 = vld [vmem:[%s4 + $0x1c8] sm:$0xff]
          %v3236 = vld [vmem:[%s4 + $0x1d0] sm:$0xff]
          %v3237 = vld [vmem:[%s4 + $0x1d8] sm:$0xff]
          %v3238 = vld [vmem:[%s4 + $0x1e0] sm:$0xff]
          %v3239 = vld [vmem:[%s4 + $0x1e8] sm:$0xff]
          %v3240 = vld [vmem:[%s4 + $0x1f0] sm:$0xff]
          %v3241 = vld [vmem:[%s4 + $0x1f8] sm:$0xff]
          %3243 = vset.pattern.permute.xlu0 0
          %3244 = vperm.xlu0 %3243, %v2986
          %v3245 = vpop.permute.xlu0 %3244
          %3248 = vset.pattern.permute.xlu0 0
          %3249 = vperm.xlu0 %3248, %v2987
          %v3250 = vpop.permute.xlu0 %3249
          %3253 = vset.pattern.permute.xlu0 0
          %3254 = vperm.xlu0 %3253, %v2988
          %v3255 = vpop.permute.xlu0 %3254
          %3258 = vset.pattern.permute.xlu0 0
          %3259 = vperm.xlu0 %3258, %v2989
          %v3260 = vpop.permute.xlu0 %3259
          %3263 = vset.pattern.permute.xlu0 0
          %3264 = vperm.xlu0 %3263, %v2990
          %v3265 = vpop.permute.xlu0 %3264
          %3268 = vset.pattern.permute.xlu0 0
          %3269 = vperm.xlu0 %3268, %v2991
          %v3270 = vpop.permute.xlu0 %3269
          %3273 = vset.pattern.permute.xlu0 0
          %3274 = vperm.xlu0 %3273, %v2992
          %v3275 = vpop.permute.xlu0 %3274
          %3278 = vset.pattern.permute.xlu0 0
          %3279 = vperm.xlu0 %3278, %v2993
          %v3280 = vpop.permute.xlu0 %3279
          %3283 = vset.pattern.permute.xlu0 0
          %3284 = vperm.xlu0 %3283, %v2994
          %v3285 = vpop.permute.xlu0 %3284
          %3288 = vset.pattern.permute.xlu0 0
          %3289 = vperm.xlu0 %3288, %v2995
          %v3290 = vpop.permute.xlu0 %3289
          %3293 = vset.pattern.permute.xlu0 0
          %3294 = vperm.xlu0 %3293, %v2996
          %v3295 = vpop.permute.xlu0 %3294
          %3298 = vset.pattern.permute.xlu0 0
          %3299 = vperm.xlu0 %3298, %v2997
          %v3300 = vpop.permute.xlu0 %3299
          %3303 = vset.pattern.permute.xlu0 0
          %3304 = vperm.xlu0 %3303, %v2998
          %v3305 = vpop.permute.xlu0 %3304
          %3308 = vset.pattern.permute.xlu0 0
          %3309 = vperm.xlu0 %3308, %v2999
          %v3310 = vpop.permute.xlu0 %3309
          %3313 = vset.pattern.permute.xlu0 0
          %3314 = vperm.xlu0 %3313, %v3000
          %v3315 = vpop.permute.xlu0 %3314
          %3318 = vset.pattern.permute.xlu0 0
          %3319 = vperm.xlu0 %3318, %v3001
          %v3320 = vpop.permute.xlu0 %3319
          %3323 = vset.pattern.permute.xlu0 0
          %3324 = vperm.xlu0 %3323, %v3002
          %v3325 = vpop.permute.xlu0 %3324
          %3328 = vset.pattern.permute.xlu0 0
          %3329 = vperm.xlu0 %3328, %v3003
          %v3330 = vpop.permute.xlu0 %3329
          %3333 = vset.pattern.permute.xlu0 0
          %3334 = vperm.xlu0 %3333, %v3004
          %v3335 = vpop.permute.xlu0 %3334
          %3338 = vset.pattern.permute.xlu0 0
          %3339 = vperm.xlu0 %3338, %v3005
          %v3340 = vpop.permute.xlu0 %3339
          %3343 = vset.pattern.permute.xlu0 0
          %3344 = vperm.xlu0 %3343, %v3006
          %v3345 = vpop.permute.xlu0 %3344
          %3348 = vset.pattern.permute.xlu0 0
          %3349 = vperm.xlu0 %3348, %v3007
          %v3350 = vpop.permute.xlu0 %3349
          %3353 = vset.pattern.permute.xlu0 0
          %3354 = vperm.xlu0 %3353, %v3008
          %v3355 = vpop.permute.xlu0 %3354
          %3358 = vset.pattern.permute.xlu0 0
          %3359 = vperm.xlu0 %3358, %v3009
          %v3360 = vpop.permute.xlu0 %3359
          %3363 = vset.pattern.permute.xlu0 0
          %3364 = vperm.xlu0 %3363, %v3010
          %v3365 = vpop.permute.xlu0 %3364
          %3368 = vset.pattern.permute.xlu0 0
          %3369 = vperm.xlu0 %3368, %v3011
          %v3370 = vpop.permute.xlu0 %3369
          %3373 = vset.pattern.permute.xlu0 0
          %3374 = vperm.xlu0 %3373, %v3012
          %v3375 = vpop.permute.xlu0 %3374
          %3378 = vset.pattern.permute.xlu0 0
          %3379 = vperm.xlu0 %3378, %v3013
          %v3380 = vpop.permute.xlu0 %3379
          %3383 = vset.pattern.permute.xlu0 0
          %3384 = vperm.xlu0 %3383, %v3014
          %v3385 = vpop.permute.xlu0 %3384
          %3388 = vset.pattern.permute.xlu0 0
          %3389 = vperm.xlu0 %3388, %v3015
          %v3390 = vpop.permute.xlu0 %3389
          %3393 = vset.pattern.permute.xlu0 0
          %3394 = vperm.xlu0 %3393, %v3016
          %v3395 = vpop.permute.xlu0 %3394
          %3398 = vset.pattern.permute.xlu0 0
          %3399 = vperm.xlu0 %3398, %v3017
          %v3400 = vpop.permute.xlu0 %3399
          %3403 = vset.pattern.permute.xlu0 0
          %3404 = vperm.xlu0 %3403, %v3018
          %v3405 = vpop.permute.xlu0 %3404
          %3408 = vset.pattern.permute.xlu0 0
          %3409 = vperm.xlu0 %3408, %v3019
          %v3410 = vpop.permute.xlu0 %3409
          %3413 = vset.pattern.permute.xlu0 0
          %3414 = vperm.xlu0 %3413, %v3020
          %v3415 = vpop.permute.xlu0 %3414
          %3418 = vset.pattern.permute.xlu0 0
          %3419 = vperm.xlu0 %3418, %v3021
          %v3420 = vpop.permute.xlu0 %3419
          %3423 = vset.pattern.permute.xlu0 0
          %3424 = vperm.xlu0 %3423, %v3022
          %v3425 = vpop.permute.xlu0 %3424
          %3428 = vset.pattern.permute.xlu0 0
          %3429 = vperm.xlu0 %3428, %v3023
          %v3430 = vpop.permute.xlu0 %3429
          %3433 = vset.pattern.permute.xlu0 0
          %3434 = vperm.xlu0 %3433, %v3024
          %v3435 = vpop.permute.xlu0 %3434
          %3438 = vset.pattern.permute.xlu0 0
          %3439 = vperm.xlu0 %3438, %v3025
          %v3440 = vpop.permute.xlu0 %3439
          %3443 = vset.pattern.permute.xlu0 0
          %3444 = vperm.xlu0 %3443, %v3026
          %v3445 = vpop.permute.xlu0 %3444
          %3448 = vset.pattern.permute.xlu0 0
          %3449 = vperm.xlu0 %3448, %v3027
          %v3450 = vpop.permute.xlu0 %3449
          %3453 = vset.pattern.permute.xlu0 0
          %3454 = vperm.xlu0 %3453, %v3028
          %v3455 = vpop.permute.xlu0 %3454
          %3458 = vset.pattern.permute.xlu0 0
          %3459 = vperm.xlu0 %3458, %v3029
          %v3460 = vpop.permute.xlu0 %3459
          %3463 = vset.pattern.permute.xlu0 0
          %3464 = vperm.xlu0 %3463, %v3030
          %v3465 = vpop.permute.xlu0 %3464
          %3468 = vset.pattern.permute.xlu0 0
          %3469 = vperm.xlu0 %3468, %v3031
          %v3470 = vpop.permute.xlu0 %3469
          %3473 = vset.pattern.permute.xlu0 0
          %3474 = vperm.xlu0 %3473, %v3032
          %v3475 = vpop.permute.xlu0 %3474
          %3478 = vset.pattern.permute.xlu0 0
          %3479 = vperm.xlu0 %3478, %v3033
          %v3480 = vpop.permute.xlu0 %3479
          %3483 = vset.pattern.permute.xlu0 0
          %3484 = vperm.xlu0 %3483, %v3034
          %v3485 = vpop.permute.xlu0 %3484
          %3488 = vset.pattern.permute.xlu0 0
          %3489 = vperm.xlu0 %3488, %v3035
          %v3490 = vpop.permute.xlu0 %3489
          %3493 = vset.pattern.permute.xlu0 0
          %3494 = vperm.xlu0 %3493, %v3036
          %v3495 = vpop.permute.xlu0 %3494
          %3498 = vset.pattern.permute.xlu0 0
          %3499 = vperm.xlu0 %3498, %v3037
          %v3500 = vpop.permute.xlu0 %3499
          %3503 = vset.pattern.permute.xlu0 0
          %3504 = vperm.xlu0 %3503, %v3038
          %v3505 = vpop.permute.xlu0 %3504
          %3508 = vset.pattern.permute.xlu0 0
          %3509 = vperm.xlu0 %3508, %v3039
          %v3510 = vpop.permute.xlu0 %3509
          %3513 = vset.pattern.permute.xlu0 0
          %3514 = vperm.xlu0 %3513, %v3040
          %v3515 = vpop.permute.xlu0 %3514
          %3518 = vset.pattern.permute.xlu0 0
          %3519 = vperm.xlu0 %3518, %v3041
          %v3520 = vpop.permute.xlu0 %3519
          %3523 = vset.pattern.permute.xlu0 0
          %3524 = vperm.xlu0 %3523, %v3042
          %v3525 = vpop.permute.xlu0 %3524
          %3528 = vset.pattern.permute.xlu0 0
          %3529 = vperm.xlu0 %3528, %v3043
          %v3530 = vpop.permute.xlu0 %3529
          %3533 = vset.pattern.permute.xlu0 0
          %3534 = vperm.xlu0 %3533, %v3044
          %v3535 = vpop.permute.xlu0 %3534
          %3538 = vset.pattern.permute.xlu0 0
          %3539 = vperm.xlu0 %3538, %v3045
          %v3540 = vpop.permute.xlu0 %3539
          %3543 = vset.pattern.permute.xlu0 0
          %3544 = vperm.xlu0 %3543, %v3046
          %v3545 = vpop.permute.xlu0 %3544
          %3548 = vset.pattern.permute.xlu0 0
          %3549 = vperm.xlu0 %3548, %v3047
          %v3550 = vpop.permute.xlu0 %3549
          %3553 = vset.pattern.permute.xlu0 0
          %3554 = vperm.xlu0 %3553, %v3048
          %v3555 = vpop.permute.xlu0 %3554
          %3558 = vset.pattern.permute.xlu0 0
          %3559 = vperm.xlu0 %3558, %v3049
          %v3560 = vpop.permute.xlu0 %3559
          %v3562 = vmul.f32 %v3245, %v3178
          %v3563 = vmul.f32 %v3250, %v3179
          %v3564 = vmul.f32 %v3255, %v3180
          %v3565 = vmul.f32 %v3260, %v3181
          %v3566 = vmul.f32 %v3265, %v3182
          %v3567 = vmul.f32 %v3270, %v3183
          %v3568 = vmul.f32 %v3275, %v3184
          %v3569 = vmul.f32 %v3280, %v3185
          %v3570 = vmul.f32 %v3285, %v3186
          %v3571 = vmul.f32 %v3290, %v3187
          %v3572 = vmul.f32 %v3295, %v3188
          %v3573 = vmul.f32 %v3300, %v3189
          %v3574 = vmul.f32 %v3305, %v3190
          %v3575 = vmul.f32 %v3310, %v3191
          %v3576 = vmul.f32 %v3315, %v3192
          %v3577 = vmul.f32 %v3320, %v3193
          %v3578 = vmul.f32 %v3325, %v3194
          %v3579 = vmul.f32 %v3330, %v3195
          %v3580 = vmul.f32 %v3335, %v3196
          %v3581 = vmul.f32 %v3340, %v3197
          %v3582 = vmul.f32 %v3345, %v3198
          %v3583 = vmul.f32 %v3350, %v3199
          %v3584 = vmul.f32 %v3355, %v3200
          %v3585 = vmul.f32 %v3360, %v3201
          %v3586 = vmul.f32 %v3365, %v3202
          %v3587 = vmul.f32 %v3370, %v3203
          %v3588 = vmul.f32 %v3375, %v3204
          %v3589 = vmul.f32 %v3380, %v3205
          %v3590 = vmul.f32 %v3385, %v3206
          %v3591 = vmul.f32 %v3390, %v3207
          %v3592 = vmul.f32 %v3395, %v3208
          %v3593 = vmul.f32 %v3400, %v3209
          %v3594 = vmul.f32 %v3405, %v3210
          %v3595 = vmul.f32 %v3410, %v3211
          %v3596 = vmul.f32 %v3415, %v3212
          %v3597 = vmul.f32 %v3420, %v3213
          %v3598 = vmul.f32 %v3425, %v3214
          %v3599 = vmul.f32 %v3430, %v3215
          %v3600 = vmul.f32 %v3435, %v3216
          %v3601 = vmul.f32 %v3440, %v3217
          %v3602 = vmul.f32 %v3445, %v3218
          %v3603 = vmul.f32 %v3450, %v3219
          %v3604 = vmul.f32 %v3455, %v3220
          %v3605 = vmul.f32 %v3460, %v3221
          %v3606 = vmul.f32 %v3465, %v3222
          %v3607 = vmul.f32 %v3470, %v3223
          %v3608 = vmul.f32 %v3475, %v3224
          %v3609 = vmul.f32 %v3480, %v3225
          %v3610 = vmul.f32 %v3485, %v3226
          %v3611 = vmul.f32 %v3490, %v3227
          %v3612 = vmul.f32 %v3495, %v3228
          %v3613 = vmul.f32 %v3500, %v3229
          %v3614 = vmul.f32 %v3505, %v3230
          %v3615 = vmul.f32 %v3510, %v3231
          %v3616 = vmul.f32 %v3515, %v3232
          %v3617 = vmul.f32 %v3520, %v3233
          %v3618 = vmul.f32 %v3525, %v3234
          %v3619 = vmul.f32 %v3530, %v3235
          %v3620 = vmul.f32 %v3535, %v3236
          %v3621 = vmul.f32 %v3540, %v3237
          %v3622 = vmul.f32 %v3545, %v3238
          %v3623 = vmul.f32 %v3550, %v3239
          %v3624 = vmul.f32 %v3555, %v3240
          %v3625 = vmul.f32 %v3560, %v3241
          %v3626 = vadd.f32 %v3562, %v3563
          %v3627 = vadd.f32 %v3626, %v3564
          %v3628 = vadd.f32 %v3627, %v3565
          %v3629 = vadd.f32 %v3628, %v3566
          %v3630 = vadd.f32 %v3629, %v3567
          %v3631 = vadd.f32 %v3630, %v3568
          %v3632 = vadd.f32 %v3631, %v3569
          %v3633 = vadd.f32 %v3632, %v3570
          %v3634 = vadd.f32 %v3633, %v3571
          %v3635 = vadd.f32 %v3634, %v3572
          %v3636 = vadd.f32 %v3635, %v3573
          %v3637 = vadd.f32 %v3636, %v3574
          %v3638 = vadd.f32 %v3637, %v3575
          %v3639 = vadd.f32 %v3638, %v3576
          %v3640 = vadd.f32 %v3639, %v3577
          %v3641 = vadd.f32 %v3640, %v3578
          %v3642 = vadd.f32 %v3641, %v3579
          %v3643 = vadd.f32 %v3642, %v3580
          %v3644 = vadd.f32 %v3643, %v3581
          %v3645 = vadd.f32 %v3644, %v3582
          %v3646 = vadd.f32 %v3645, %v3583
          %v3647 = vadd.f32 %v3646, %v3584
          %v3648 = vadd.f32 %v3647, %v3585
          %v3649 = vadd.f32 %v3648, %v3586
          %v3650 = vadd.f32 %v3649, %v3587
          %v3651 = vadd.f32 %v3650, %v3588
          %v3652 = vadd.f32 %v3651, %v3589
          %v3653 = vadd.f32 %v3652, %v3590
          %v3654 = vadd.f32 %v3653, %v3591
          %v3655 = vadd.f32 %v3654, %v3592
          %v3656 = vadd.f32 %v3655, %v3593
          %v3657 = vadd.f32 %v3656, %v3594
          %v3658 = vadd.f32 %v3657, %v3595
          %v3659 = vadd.f32 %v3658, %v3596
          %v3660 = vadd.f32 %v3659, %v3597
          %v3661 = vadd.f32 %v3660, %v3598
          %v3662 = vadd.f32 %v3661, %v3599
          %v3663 = vadd.f32 %v3662, %v3600
          %v3664 = vadd.f32 %v3663, %v3601
          %v3665 = vadd.f32 %v3664, %v3602
          %v3666 = vadd.f32 %v3665, %v3603
          %v3667 = vadd.f32 %v3666, %v3604
          %v3668 = vadd.f32 %v3667, %v3605
          %v3669 = vadd.f32 %v3668, %v3606
          %v3670 = vadd.f32 %v3669, %v3607
          %v3671 = vadd.f32 %v3670, %v3608
          %v3672 = vadd.f32 %v3671, %v3609
          %v3673 = vadd.f32 %v3672, %v3610
          %v3674 = vadd.f32 %v3673, %v3611
          %v3675 = vadd.f32 %v3674, %v3612
          %v3676 = vadd.f32 %v3675, %v3613
          %v3677 = vadd.f32 %v3676, %v3614
          %v3678 = vadd.f32 %v3677, %v3615
          %v3679 = vadd.f32 %v3678, %v3616
          %v3680 = vadd.f32 %v3679, %v3617
          %v3681 = vadd.f32 %v3680, %v3618
          %v3682 = vadd.f32 %v3681, %v3619
          %v3683 = vadd.f32 %v3682, %v3620
          %v3684 = vadd.f32 %v3683, %v3621
          %v3685 = vadd.f32 %v3684, %v3622
          %v3686 = vadd.f32 %v3685, %v3623
          %v3687 = vadd.f32 %v3686, %v3624
          %v3688 = vadd.f32 %v3687, %v3625
          %v3689 = vrot.slane %v3688, 4
          %v3690 = vadd.f32 %v3688, %v3689
          %v3691 = vrot.slane %v3690, 2
          %v3692 = vadd.f32 %v3690, %v3691
          %v3693 = vrot.slane %v3692, 1
          %v3694 = vadd.f32 %v3692, %v3693
          %s3695 = scalar_lea.vmem %s4, 512
          %v3696 = vld [vmem:[%s3695] sm:$0xff]
          %v3697 = vld [vmem:[%s3695 + $0x8] sm:$0xff]
          %v3698 = vld [vmem:[%s3695 + $0x10] sm:$0xff]
          %v3699 = vld [vmem:[%s3695 + $0x18] sm:$0xff]
          %v3700 = vld [vmem:[%s3695 + $0x20] sm:$0xff]
          %v3701 = vld [vmem:[%s3695 + $0x28] sm:$0xff]
          %v3702 = vld [vmem:[%s3695 + $0x30] sm:$0xff]
          %v3703 = vld [vmem:[%s3695 + $0x38] sm:$0xff]
          %v3704 = vld [vmem:[%s3695 + $0x40] sm:$0xff]
          %v3705 = vld [vmem:[%s3695 + $0x48] sm:$0xff]
          %v3706 = vld [vmem:[%s3695 + $0x50] sm:$0xff]
          %v3707 = vld [vmem:[%s3695 + $0x58] sm:$0xff]
          %v3708 = vld [vmem:[%s3695 + $0x60] sm:$0xff]
          %v3709 = vld [vmem:[%s3695 + $0x68] sm:$0xff]
          %v3710 = vld [vmem:[%s3695 + $0x70] sm:$0xff]
          %v3711 = vld [vmem:[%s3695 + $0x78] sm:$0xff]
          %v3712 = vld [vmem:[%s3695 + $0x80] sm:$0xff]
          %v3713 = vld [vmem:[%s3695 + $0x88] sm:$0xff]
          %v3714 = vld [vmem:[%s3695 + $0x90] sm:$0xff]
          %v3715 = vld [vmem:[%s3695 + $0x98] sm:$0xff]
          %v3716 = vld [vmem:[%s3695 + $0xa0] sm:$0xff]
          %v3717 = vld [vmem:[%s3695 + $0xa8] sm:$0xff]
          %v3718 = vld [vmem:[%s3695 + $0xb0] sm:$0xff]
          %v3719 = vld [vmem:[%s3695 + $0xb8] sm:$0xff]
          %v3720 = vld [vmem:[%s3695 + $0xc0] sm:$0xff]
          %v3721 = vld [vmem:[%s3695 + $0xc8] sm:$0xff]
          %v3722 = vld [vmem:[%s3695 + $0xd0] sm:$0xff]
          %v3723 = vld [vmem:[%s3695 + $0xd8] sm:$0xff]
          %v3724 = vld [vmem:[%s3695 + $0xe0] sm:$0xff]
          %v3725 = vld [vmem:[%s3695 + $0xe8] sm:$0xff]
          %v3726 = vld [vmem:[%s3695 + $0xf0] sm:$0xff]
          %v3727 = vld [vmem:[%s3695 + $0xf8] sm:$0xff]
          %v3728 = vld [vmem:[%s3695 + $0x100] sm:$0xff]
          %v3729 = vld [vmem:[%s3695 + $0x108] sm:$0xff]
          %v3730 = vld [vmem:[%s3695 + $0x110] sm:$0xff]
          %v3731 = vld [vmem:[%s3695 + $0x118] sm:$0xff]
          %v3732 = vld [vmem:[%s3695 + $0x120] sm:$0xff]
          %v3733 = vld [vmem:[%s3695 + $0x128] sm:$0xff]
          %v3734 = vld [vmem:[%s3695 + $0x130] sm:$0xff]
          %v3735 = vld [vmem:[%s3695 + $0x138] sm:$0xff]
          %v3736 = vld [vmem:[%s3695 + $0x140] sm:$0xff]
          %v3737 = vld [vmem:[%s3695 + $0x148] sm:$0xff]
          %v3738 = vld [vmem:[%s3695 + $0x150] sm:$0xff]
          %v3739 = vld [vmem:[%s3695 + $0x158] sm:$0xff]
          %v3740 = vld [vmem:[%s3695 + $0x160] sm:$0xff]
          %v3741 = vld [vmem:[%s3695 + $0x168] sm:$0xff]
          %v3742 = vld [vmem:[%s3695 + $0x170] sm:$0xff]
          %v3743 = vld [vmem:[%s3695 + $0x178] sm:$0xff]
          %v3744 = vld [vmem:[%s3695 + $0x180] sm:$0xff]
          %v3745 = vld [vmem:[%s3695 + $0x188] sm:$0xff]
          %v3746 = vld [vmem:[%s3695 + $0x190] sm:$0xff]
          %v3747 = vld [vmem:[%s3695 + $0x198] sm:$0xff]
          %v3748 = vld [vmem:[%s3695 + $0x1a0] sm:$0xff]
          %v3749 = vld [vmem:[%s3695 + $0x1a8] sm:$0xff]
          %v3750 = vld [vmem:[%s3695 + $0x1b0] sm:$0xff]
          %v3751 = vld [vmem:[%s3695 + $0x1b8] sm:$0xff]
          %v3752 = vld [vmem:[%s3695 + $0x1c0] sm:$0xff]
          %v3753 = vld [vmem:[%s3695 + $0x1c8] sm:$0xff]
          %v3754 = vld [vmem:[%s3695 + $0x1d0] sm:$0xff]
          %v3755 = vld [vmem:[%s3695 + $0x1d8] sm:$0xff]
          %v3756 = vld [vmem:[%s3695 + $0x1e0] sm:$0xff]
          %v3757 = vld [vmem:[%s3695 + $0x1e8] sm:$0xff]
          %v3758 = vld [vmem:[%s3695 + $0x1f0] sm:$0xff]
          %v3759 = vld [vmem:[%s3695 + $0x1f8] sm:$0xff]
          %3761 = vset.pattern.permute.xlu0 0
          %3762 = vperm.xlu0 %3761, %v3114
          %v3763 = vpop.permute.xlu0 %3762
          %3766 = vset.pattern.permute.xlu0 0
          %3767 = vperm.xlu0 %3766, %v3115
          %v3768 = vpop.permute.xlu0 %3767
          %3771 = vset.pattern.permute.xlu0 0
          %3772 = vperm.xlu0 %3771, %v3116
          %v3773 = vpop.permute.xlu0 %3772
          %3776 = vset.pattern.permute.xlu0 0
          %3777 = vperm.xlu0 %3776, %v3117
          %v3778 = vpop.permute.xlu0 %3777
          %3781 = vset.pattern.permute.xlu0 0
          %3782 = vperm.xlu0 %3781, %v3118
          %v3783 = vpop.permute.xlu0 %3782
          %3786 = vset.pattern.permute.xlu0 0
          %3787 = vperm.xlu0 %3786, %v3119
          %v3788 = vpop.permute.xlu0 %3787
          %3791 = vset.pattern.permute.xlu0 0
          %3792 = vperm.xlu0 %3791, %v3120
          %v3793 = vpop.permute.xlu0 %3792
          %3796 = vset.pattern.permute.xlu0 0
          %3797 = vperm.xlu0 %3796, %v3121
          %v3798 = vpop.permute.xlu0 %3797
          %3801 = vset.pattern.permute.xlu0 0
          %3802 = vperm.xlu0 %3801, %v3122
          %v3803 = vpop.permute.xlu0 %3802
          %3806 = vset.pattern.permute.xlu0 0
          %3807 = vperm.xlu0 %3806, %v3123
          %v3808 = vpop.permute.xlu0 %3807
          %3811 = vset.pattern.permute.xlu0 0
          %3812 = vperm.xlu0 %3811, %v3124
          %v3813 = vpop.permute.xlu0 %3812
          %3816 = vset.pattern.permute.xlu0 0
          %3817 = vperm.xlu0 %3816, %v3125
          %v3818 = vpop.permute.xlu0 %3817
          %3821 = vset.pattern.permute.xlu0 0
          %3822 = vperm.xlu0 %3821, %v3126
          %v3823 = vpop.permute.xlu0 %3822
          %3826 = vset.pattern.permute.xlu0 0
          %3827 = vperm.xlu0 %3826, %v3127
          %v3828 = vpop.permute.xlu0 %3827
          %3831 = vset.pattern.permute.xlu0 0
          %3832 = vperm.xlu0 %3831, %v3128
          %v3833 = vpop.permute.xlu0 %3832
          %3836 = vset.pattern.permute.xlu0 0
          %3837 = vperm.xlu0 %3836, %v3129
          %v3838 = vpop.permute.xlu0 %3837
          %3841 = vset.pattern.permute.xlu0 0
          %3842 = vperm.xlu0 %3841, %v3130
          %v3843 = vpop.permute.xlu0 %3842
          %3846 = vset.pattern.permute.xlu0 0
          %3847 = vperm.xlu0 %3846, %v3131
          %v3848 = vpop.permute.xlu0 %3847
          %3851 = vset.pattern.permute.xlu0 0
          %3852 = vperm.xlu0 %3851, %v3132
          %v3853 = vpop.permute.xlu0 %3852
          %3856 = vset.pattern.permute.xlu0 0
          %3857 = vperm.xlu0 %3856, %v3133
          %v3858 = vpop.permute.xlu0 %3857
          %3861 = vset.pattern.permute.xlu0 0
          %3862 = vperm.xlu0 %3861, %v3134
          %v3863 = vpop.permute.xlu0 %3862
          %3866 = vset.pattern.permute.xlu0 0
          %3867 = vperm.xlu0 %3866, %v3135
          %v3868 = vpop.permute.xlu0 %3867
          %3871 = vset.pattern.permute.xlu0 0
          %3872 = vperm.xlu0 %3871, %v3136
          %v3873 = vpop.permute.xlu0 %3872
          %3876 = vset.pattern.permute.xlu0 0
          %3877 = vperm.xlu0 %3876, %v3137
          %v3878 = vpop.permute.xlu0 %3877
          %3881 = vset.pattern.permute.xlu0 0
          %3882 = vperm.xlu0 %3881, %v3138
          %v3883 = vpop.permute.xlu0 %3882
          %3886 = vset.pattern.permute.xlu0 0
          %3887 = vperm.xlu0 %3886, %v3139
          %v3888 = vpop.permute.xlu0 %3887
          %3891 = vset.pattern.permute.xlu0 0
          %3892 = vperm.xlu0 %3891, %v3140
          %v3893 = vpop.permute.xlu0 %3892
          %3896 = vset.pattern.permute.xlu0 0
          %3897 = vperm.xlu0 %3896, %v3141
          %v3898 = vpop.permute.xlu0 %3897
          %3901 = vset.pattern.permute.xlu0 0
          %3902 = vperm.xlu0 %3901, %v3142
          %v3903 = vpop.permute.xlu0 %3902
          %3906 = vset.pattern.permute.xlu0 0
          %3907 = vperm.xlu0 %3906, %v3143
          %v3908 = vpop.permute.xlu0 %3907
          %3911 = vset.pattern.permute.xlu0 0
          %3912 = vperm.xlu0 %3911, %v3144
          %v3913 = vpop.permute.xlu0 %3912
          %3916 = vset.pattern.permute.xlu0 0
          %3917 = vperm.xlu0 %3916, %v3145
          %v3918 = vpop.permute.xlu0 %3917
          %3921 = vset.pattern.permute.xlu0 0
          %3922 = vperm.xlu0 %3921, %v3146
          %v3923 = vpop.permute.xlu0 %3922
          %3926 = vset.pattern.permute.xlu0 0
          %3927 = vperm.xlu0 %3926, %v3147
          %v3928 = vpop.permute.xlu0 %3927
          %3931 = vset.pattern.permute.xlu0 0
          %3932 = vperm.xlu0 %3931, %v3148
          %v3933 = vpop.permute.xlu0 %3932
          %3936 = vset.pattern.permute.xlu0 0
          %3937 = vperm.xlu0 %3936, %v3149
          %v3938 = vpop.permute.xlu0 %3937
          %3941 = vset.pattern.permute.xlu0 0
          %3942 = vperm.xlu0 %3941, %v3150
          %v3943 = vpop.permute.xlu0 %3942
          %3946 = vset.pattern.permute.xlu0 0
          %3947 = vperm.xlu0 %3946, %v3151
          %v3948 = vpop.permute.xlu0 %3947
          %3951 = vset.pattern.permute.xlu0 0
          %3952 = vperm.xlu0 %3951, %v3152
          %v3953 = vpop.permute.xlu0 %3952
          %3956 = vset.pattern.permute.xlu0 0
          %3957 = vperm.xlu0 %3956, %v3153
          %v3958 = vpop.permute.xlu0 %3957
          %3961 = vset.pattern.permute.xlu0 0
          %3962 = vperm.xlu0 %3961, %v3154
          %v3963 = vpop.permute.xlu0 %3962
          %3966 = vset.pattern.permute.xlu0 0
          %3967 = vperm.xlu0 %3966, %v3155
          %v3968 = vpop.permute.xlu0 %3967
          %3971 = vset.pattern.permute.xlu0 0
          %3972 = vperm.xlu0 %3971, %v3156
          %v3973 = vpop.permute.xlu0 %3972
          %3976 = vset.pattern.permute.xlu0 0
          %3977 = vperm.xlu0 %3976, %v3157
          %v3978 = vpop.permute.xlu0 %3977
          %3981 = vset.pattern.permute.xlu0 0
          %3982 = vperm.xlu0 %3981, %v3158
          %v3983 = vpop.permute.xlu0 %3982
          %3986 = vset.pattern.permute.xlu0 0
          %3987 = vperm.xlu0 %3986, %v3159
          %v3988 = vpop.permute.xlu0 %3987
          %3991 = vset.pattern.permute.xlu0 0
          %3992 = vperm.xlu0 %3991, %v3160
          %v3993 = vpop.permute.xlu0 %3992
          %3996 = vset.pattern.permute.xlu0 0
          %3997 = vperm.xlu0 %3996, %v3161
          %v3998 = vpop.permute.xlu0 %3997
          %4001 = vset.pattern.permute.xlu0 0
          %4002 = vperm.xlu0 %4001, %v3162
          %v4003 = vpop.permute.xlu0 %4002
          %4006 = vset.pattern.permute.xlu0 0
          %4007 = vperm.xlu0 %4006, %v3163
          %v4008 = vpop.permute.xlu0 %4007
          %4011 = vset.pattern.permute.xlu0 0
          %4012 = vperm.xlu0 %4011, %v3164
          %v4013 = vpop.permute.xlu0 %4012
          %4016 = vset.pattern.permute.xlu0 0
          %4017 = vperm.xlu0 %4016, %v3165
          %v4018 = vpop.permute.xlu0 %4017
          %4021 = vset.pattern.permute.xlu0 0
          %4022 = vperm.xlu0 %4021, %v3166
          %v4023 = vpop.permute.xlu0 %4022
          %4026 = vset.pattern.permute.xlu0 0
          %4027 = vperm.xlu0 %4026, %v3167
          %v4028 = vpop.permute.xlu0 %4027
          %4031 = vset.pattern.permute.xlu0 0
          %4032 = vperm.xlu0 %4031, %v3168
          %v4033 = vpop.permute.xlu0 %4032
          %4036 = vset.pattern.permute.xlu0 0
          %4037 = vperm.xlu0 %4036, %v3169
          %v4038 = vpop.permute.xlu0 %4037
          %4041 = vset.pattern.permute.xlu0 0
          %4042 = vperm.xlu0 %4041, %v3170
          %v4043 = vpop.permute.xlu0 %4042
          %4046 = vset.pattern.permute.xlu0 0
          %4047 = vperm.xlu0 %4046, %v3171
          %v4048 = vpop.permute.xlu0 %4047
          %4051 = vset.pattern.permute.xlu0 0
          %4052 = vperm.xlu0 %4051, %v3172
          %v4053 = vpop.permute.xlu0 %4052
          %4056 = vset.pattern.permute.xlu0 0
          %4057 = vperm.xlu0 %4056, %v3173
          %v4058 = vpop.permute.xlu0 %4057
          %4061 = vset.pattern.permute.xlu0 0
          %4062 = vperm.xlu0 %4061, %v3174
          %v4063 = vpop.permute.xlu0 %4062
          %4066 = vset.pattern.permute.xlu0 0
          %4067 = vperm.xlu0 %4066, %v3175
          %v4068 = vpop.permute.xlu0 %4067
          %4071 = vset.pattern.permute.xlu0 0
          %4072 = vperm.xlu0 %4071, %v3176
          %v4073 = vpop.permute.xlu0 %4072
          %4076 = vset.pattern.permute.xlu0 0
          %4077 = vperm.xlu0 %4076, %v3177
          %v4078 = vpop.permute.xlu0 %4077
          %v4080 = vmul.f32 %v3763, %v3696
          %v4081 = vmul.f32 %v3768, %v3697
          %v4082 = vmul.f32 %v3773, %v3698
          %v4083 = vmul.f32 %v3778, %v3699
          %v4084 = vmul.f32 %v3783, %v3700
          %v4085 = vmul.f32 %v3788, %v3701
          %v4086 = vmul.f32 %v3793, %v3702
          %v4087 = vmul.f32 %v3798, %v3703
          %v4088 = vmul.f32 %v3803, %v3704
          %v4089 = vmul.f32 %v3808, %v3705
          %v4090 = vmul.f32 %v3813, %v3706
          %v4091 = vmul.f32 %v3818, %v3707
          %v4092 = vmul.f32 %v3823, %v3708
          %v4093 = vmul.f32 %v3828, %v3709
          %v4094 = vmul.f32 %v3833, %v3710
          %v4095 = vmul.f32 %v3838, %v3711
          %v4096 = vmul.f32 %v3843, %v3712
          %v4097 = vmul.f32 %v3848, %v3713
          %v4098 = vmul.f32 %v3853, %v3714
          %v4099 = vmul.f32 %v3858, %v3715
          %v4100 = vmul.f32 %v3863, %v3716
          %v4101 = vmul.f32 %v3868, %v3717
          %v4102 = vmul.f32 %v3873, %v3718
          %v4103 = vmul.f32 %v3878, %v3719
          %v4104 = vmul.f32 %v3883, %v3720
          %v4105 = vmul.f32 %v3888, %v3721
          %v4106 = vmul.f32 %v3893, %v3722
          %v4107 = vmul.f32 %v3898, %v3723
          %v4108 = vmul.f32 %v3903, %v3724
          %v4109 = vmul.f32 %v3908, %v3725
          %v4110 = vmul.f32 %v3913, %v3726
          %v4111 = vmul.f32 %v3918, %v3727
          %v4112 = vmul.f32 %v3923, %v3728
          %v4113 = vmul.f32 %v3928, %v3729
          %v4114 = vmul.f32 %v3933, %v3730
          %v4115 = vmul.f32 %v3938, %v3731
          %v4116 = vmul.f32 %v3943, %v3732
          %v4117 = vmul.f32 %v3948, %v3733
          %v4118 = vmul.f32 %v3953, %v3734
          %v4119 = vmul.f32 %v3958, %v3735
          %v4120 = vmul.f32 %v3963, %v3736
          %v4121 = vmul.f32 %v3968, %v3737
          %v4122 = vmul.f32 %v3973, %v3738
          %v4123 = vmul.f32 %v3978, %v3739
          %v4124 = vmul.f32 %v3983, %v3740
          %v4125 = vmul.f32 %v3988, %v3741
          %v4126 = vmul.f32 %v3993, %v3742
          %v4127 = vmul.f32 %v3998, %v3743
          %v4128 = vmul.f32 %v4003, %v3744
          %v4129 = vmul.f32 %v4008, %v3745
          %v4130 = vmul.f32 %v4013, %v3746
          %v4131 = vmul.f32 %v4018, %v3747
          %v4132 = vmul.f32 %v4023, %v3748
          %v4133 = vmul.f32 %v4028, %v3749
          %v4134 = vmul.f32 %v4033, %v3750
          %v4135 = vmul.f32 %v4038, %v3751
          %v4136 = vmul.f32 %v4043, %v3752
          %v4137 = vmul.f32 %v4048, %v3753
          %v4138 = vmul.f32 %v4053, %v3754
          %v4139 = vmul.f32 %v4058, %v3755
          %v4140 = vmul.f32 %v4063, %v3756
          %v4141 = vmul.f32 %v4068, %v3757
          %v4142 = vmul.f32 %v4073, %v3758
          %v4143 = vmul.f32 %v4078, %v3759
          %v4144 = vadd.f32 %v4080, %v4081
          %v4145 = vadd.f32 %v4144, %v4082
          %v4146 = vadd.f32 %v4145, %v4083
          %v4147 = vadd.f32 %v4146, %v4084
          %v4148 = vadd.f32 %v4147, %v4085
          %v4149 = vadd.f32 %v4148, %v4086
          %v4150 = vadd.f32 %v4149, %v4087
          %v4151 = vadd.f32 %v4150, %v4088
          %v4152 = vadd.f32 %v4151, %v4089
          %v4153 = vadd.f32 %v4152, %v4090
          %v4154 = vadd.f32 %v4153, %v4091
          %v4155 = vadd.f32 %v4154, %v4092
          %v4156 = vadd.f32 %v4155, %v4093
          %v4157 = vadd.f32 %v4156, %v4094
          %v4158 = vadd.f32 %v4157, %v4095
          %v4159 = vadd.f32 %v4158, %v4096
          %v4160 = vadd.f32 %v4159, %v4097
          %v4161 = vadd.f32 %v4160, %v4098
          %v4162 = vadd.f32 %v4161, %v4099
          %v4163 = vadd.f32 %v4162, %v4100
          %v4164 = vadd.f32 %v4163, %v4101
          %v4165 = vadd.f32 %v4164, %v4102
          %v4166 = vadd.f32 %v4165, %v4103
          %v4167 = vadd.f32 %v4166, %v4104
          %v4168 = vadd.f32 %v4167, %v4105
          %v4169 = vadd.f32 %v4168, %v4106
          %v4170 = vadd.f32 %v4169, %v4107
          %v4171 = vadd.f32 %v4170, %v4108
          %v4172 = vadd.f32 %v4171, %v4109
          %v4173 = vadd.f32 %v4172, %v4110
          %v4174 = vadd.f32 %v4173, %v4111
          %v4175 = vadd.f32 %v4174, %v4112
          %v4176 = vadd.f32 %v4175, %v4113
          %v4177 = vadd.f32 %v4176, %v4114
          %v4178 = vadd.f32 %v4177, %v4115
          %v4179 = vadd.f32 %v4178, %v4116
          %v4180 = vadd.f32 %v4179, %v4117
          %v4181 = vadd.f32 %v4180, %v4118
          %v4182 = vadd.f32 %v4181, %v4119
          %v4183 = vadd.f32 %v4182, %v4120
          %v4184 = vadd.f32 %v4183, %v4121
          %v4185 = vadd.f32 %v4184, %v4122
          %v4186 = vadd.f32 %v4185, %v4123
          %v4187 = vadd.f32 %v4186, %v4124
          %v4188 = vadd.f32 %v4187, %v4125
          %v4189 = vadd.f32 %v4188, %v4126
          %v4190 = vadd.f32 %v4189, %v4127
          %v4191 = vadd.f32 %v4190, %v4128
          %v4192 = vadd.f32 %v4191, %v4129
          %v4193 = vadd.f32 %v4192, %v4130
          %v4194 = vadd.f32 %v4193, %v4131
          %v4195 = vadd.f32 %v4194, %v4132
          %v4196 = vadd.f32 %v4195, %v4133
          %v4197 = vadd.f32 %v4196, %v4134
          %v4198 = vadd.f32 %v4197, %v4135
          %v4199 = vadd.f32 %v4198, %v4136
          %v4200 = vadd.f32 %v4199, %v4137
          %v4201 = vadd.f32 %v4200, %v4138
          %v4202 = vadd.f32 %v4201, %v4139
          %v4203 = vadd.f32 %v4202, %v4140
          %v4204 = vadd.f32 %v4203, %v4141
          %v4205 = vadd.f32 %v4204, %v4142
          %v4206 = vadd.f32 %v4205, %v4143
          %v4207 = vrot.slane %v4206, 4
          %v4208 = vadd.f32 %v4206, %v4207
          %v4209 = vrot.slane %v4208, 2
          %v4210 = vadd.f32 %v4208, %v4209
          %v4211 = vrot.slane %v4210, 1
          %v4212 = vadd.f32 %v4210, %v4211
          %v4213 = vadd.f32 %v3694, %v4212
          %v4214 = vld [vmem:[%s5] sm:$0x1]
          %v4215 = vadd.f32 %v4213, %v4214
          %4216 = vst [vmem:[%s292] sm:$0x1] %v4215
        $region52: #{classify_model_forward.1} parent=43 // pred_fallthru
          _
        %s4217 = sand.u32 %s180, 1
        %s4218 = scalar_lea.sflag [#allocation5], %s4217
        %s4219 = sand.u32 %s180, 1
        %s4220 = scalar_lea.vmem [#allocation4], %s4219
        // Predicated region
        $region53: #{classify_model_forward.1} parent=43 // pred_check
          %p4221 = pneg %p190
        $region54: #{classify_model_forward.1} parent=43 // pred_check_branch
          %4223 = sbr.rel (%p4221) target = $region56
        $region55: #{classify_model_forward.1} parent=43 // pred_region
          %s4225 = ssub.s32 16, 16
          %4226 = vsyncadd %s4218, %s4225
          %s4227 = smul.addr %s24, 16
          %s4228 = scalar_lea.hbm %s6, %s4227
          %s4230 = sshll.u32 %s4220, 4
          %s4231 = int_to_ptr.vmem [resolvable:$true] %s4230
          %4233 = dma.vmem_to_hbm [thread:$0]  %s4231, 16, %s4228, %s4218
        $region56: #{classify_model_forward.1} parent=43 // pred_fallthru
          _
      $region44: #{classify_model_forward.1} parent=5 // pred_fallthru
        _
      %p4234 = scmp.le.s32.totalorder 2, %s15
      // Predicated region
      $region57: #{classify_model_forward.1} parent=5 // pred_check
        %p4235 = pneg %p4234
      $region58: #{classify_model_forward.1} parent=5 // pred_check_branch
        %4237 = sbr.rel (%p4235) target = $region60
      $region59: #{classify_model_forward.1} parent=5 // pred_region
        %s4238 = ssub.s32 %s15, 2
        // Predicated region
        $region61: #{classify_model_forward.1} parent=59 // pred_check
          %p4239 = pneg %p196
        $region62: #{classify_model_forward.1} parent=59 // pred_check_branch
          %4241 = sbr.rel (%p4239) target = $region64
        $region63: #{classify_model_forward.1} parent=59 // pred_region
          %s4242 = sand.u32 %s181, 1
          %s4243 = scalar_lea.sflag [#allocation5], %s4242
          %s4244 = sand.u32 %s181, 1
          %s4245 = scalar_lea.vmem [#allocation4], %s4244
          %4246 = dma.done %s4243, 16
        $region64: #{classify_model_forward.1} parent=59 // pred_fallthru
          _
      $region60: #{classify_model_forward.1} parent=5 // pred_fallthru
        _
    $region6: #{classify_model_forward.1} parent=1 // loop_footer
      %s19 = sadd.s32 1, %s15
    $region7: #{classify_model_forward.1} parent=1 // loop_footer_branch
      %14 = sbr.rel target = $region3
    $region8: #{classify_model_forward.1} parent=1 // loop_exit
      _
    %4247 = vsyncpa [#allocation5], 1
    %s4248 = scalar_lea.sflag [#allocation5], 1
    %4249 = vsyncpa %s4248, 1

</llo_original>
